<compile_context>
chip_gen: v7x
topology: tpu7x:2x2x1
jax: 0.10.0
libtpu: 0.0.40
codegen_flags: <defaults>
</compile_context>

<pallas_src>
import math

import numpy as np

import jax
import jax.numpy as jnp
from jax import lax
from jax.experimental import pallas as pl
from jax.experimental.pallas import tpu as pltpu


def _round_up(x, m):
    return (x + m - 1) // m * m


def _make_row_kernel(kwc, w2p):
    """Per-output-row fused kernel: 19-tap composite correlation + bias + sigmoid.

    Refs:
      xidx_ref, bidx_ref : SMEM scalar-prefetch tables (used only by index_maps)
      x_ref   : (1, Cp, Wxp)    zero-padded source row (or the synthetic zero row)
      wc_ref  : (KWc, C2, Cp)   composite, tap-flipped weights (Cp zero padded)
      bias_ref: (1, C2, W2P)    per-position bias row (bias_map or broadcast b2)
      o_ref   : (C2, W2P)       lane-dense output slab for this row
    """
    def kernel(xidx_ref, bidx_ref, x_ref, wc_ref, bias_ref, o_ref):
        del xidx_ref, bidx_ref
        acc = bias_ref[0]                               # (C2, W2P) f32
        for u in range(kwc):                            # static unroll: 19 MXU matmuls
            acc = acc + jnp.dot(wc_ref[u], x_ref[0, :, u:u + w2p],
                                preferred_element_type=jnp.float32)
        o_ref[...] = jax.nn.sigmoid(acc)
    return kernel


def fused_double_conv_transpose(x, w1, b1, stride1, pad1, opad1,
                                w2, b2, stride2, pad2, opad2):
    """sigmoid(convT2(convT1(x))) with PyTorch ConvTranspose2d semantics (NCHW).

    Requires kernel-height-1 layers, stride_w == 1 and zero W padding/output_padding
    (true for this module), which lets the two layers compose into a single
    (KW1+KW2-1)-tap correlation along W and a pure row scatter along H.
    """
    N, Cin, H_in, W_in = x.shape
    _, C1, KH1, KW1 = w1.shape
    _, C2, KH2, KW2 = w2.shape
    (sh1, sw1), (ph1, pw1), (oh1, ow1) = stride1, pad1, opad1
    (sh2, sw2), (ph2, pw2), (oh2, ow2) = stride2, pad2, opad2
    assert KH1 == 1 and KH2 == 1 and sw1 == 1 and sw2 == 1
    assert pw1 == 0 and ow1 == 0 and pw2 == 0 and ow2 == 0

    H1 = (H_in - 1) * sh1 - 2 * ph1 + KH1 + oh1
    W1o = W_in + KW1 - 1
    H2 = (H1 - 1) * sh2 - 2 * ph2 + KH2 + oh2
    W2o = W1o + KW2 - 1
    assert H1 > 0 and H2 > 0

    KWc = KW1 + KW2 - 1                 # composite taps along W (19)
    W2P = _round_up(W2o, 128)           # lane-dense output width
    Wxp = W2P + KWc - 1                 # padded source-row width
    Cp = 128                            # contraction dim padded -> well-shaped MXU K
    f32 = jnp.float32
    hi = lax.Precision.HIGHEST

    # ---- composite weight: Wc[cin,c2,t] = sum_{k1+k2=t} W1[cin,:,k1] @ W2[:,c2,k2],
    #      stored tap-flipped as (KWc, C2, Cp) for the correlation form ------------
    W1m = w1[:, :, 0, :].astype(f32)    # (Cin, C1, KW1)
    W2m = w2[:, :, 0, :].astype(f32)    # (C1, C2, KW2)
    tap = np.zeros((KW1, KW2, KWc), np.float32)
    for k1 in range(KW1):
        for k2 in range(KW2):
            tap[k1, k2, KWc - 1 - (k1 + k2)] = 1.0      # fold in the tap flip
    wc_k = jnp.einsum('ack,cdl,klu->uda', W1m, W2m, jnp.asarray(tap), precision=hi)
    wc_k = jnp.pad(wc_k, ((0, 0), (0, 0), (0, Cp - Cin)))          # (KWc, C2, Cp)

    # ---- per-position bias map (captures b1 edge effects) + plain-b2 row ---------
    s = jnp.einsum('c,cdk->kd', b1.astype(f32), W2m, precision=hi)  # (KW2, C2)
    m_i = np.arange(W2o)[:, None]
    k_i = np.arange(KW2)[None, :]
    mask = ((k_i <= m_i) & (k_i >= m_i - (W1o - 1))).astype(np.float32)   # (W2o, KW2)
    bias_map = b2[None, :].astype(f32) + jnp.einsum(
        'mk,kd->md', jnp.asarray(mask), s, precision=hi)            # (W2o, C2)
    bias0 = jnp.pad(bias_map.T, ((0, 0), (0, W2P - W2o)))           # (C2, W2P)
    bias1 = jnp.broadcast_to(b2.astype(f32)[:, None], (C2, W2P))
    bias_tbl = jnp.stack([bias0, bias1], axis=0)                    # (2, C2, W2P)

    # ---- static H bookkeeping (kernel height 1 => pure row scatter) --------------
    h1_src = [-1] * H1                  # layer-1 out row -> input row (-1: bias only)
    for h in range(H_in):
        ho = h * sh1 - ph1
        if 0 <= ho < H1:
            h1_src[ho] = h
    h2_src = [-1] * H2                  # layer-2 out row -> layer-1 row (-1: zero)
    for h in range(H1):
        ho = h * sh2 - ph2
        if 0 <= ho < H2:
            h2_src[ho] = h

    ZROW = N * H_in                     # index of the synthetic all-zero row
    xidx = np.zeros((N, H2), np.int32)
    bidx = np.zeros((N, H2), np.int32)
    for n in range(N):
        for h2 in range(H2):
            h1 = h2_src[h2]
            if h1 < 0:
                xidx[n, h2], bidx[n, h2] = ZROW, 1      # sigmoid(b2) row
            elif h1_src[h1] < 0:
                xidx[n, h2], bidx[n, h2] = ZROW, 0      # sigmoid(bias_map) row
            else:
                xidx[n, h2], bidx[n, h2] = n * H_in + h1_src[h1], 0
    xidx = jnp.asarray(xidx.reshape(-1))
    bidx = jnp.asarray(bidx.reshape(-1))

    # ---- source rows: raw (Cin, W) rows + one zero row, channel & W zero padded --
    xr = x.transpose(0, 2, 1, 3).reshape(N * H_in, Cin, W_in).astype(f32)
    xrows = jnp.pad(xr, ((0, 1), (0, Cp - Cin),
                         (KWc - 1, Wxp - (KWc - 1) - W_in)))        # (N*H_in+1, Cp, Wxp)

    R = N * H2
    # TODO(synk): for large N*H_in, batch several output rows per grid step
    # (bigger MXU tiles, fewer per-step overheads); one row per step is optimal at
    # these sizes and keeps the scalar-prefetch row indexing trivial.
    y = pl.pallas_call(
        _make_row_kernel(KWc, W2P),
        out_shape=jax.ShapeDtypeStruct((C2, R * W2P), f32),
        grid_spec=pltpu.PrefetchScalarGridSpec(
            num_scalar_prefetch=2,
            grid=(R,),
            in_specs=[
                pl.BlockSpec((1, Cp, Wxp), lambda r, xi, bi: (xi[r], 0, 0)),
                pl.BlockSpec((KWc, C2, Cp), lambda r, xi, bi: (0, 0, 0)),
                pl.BlockSpec((1, C2, W2P), lambda r, xi, bi: (bi[r], 0, 0)),
            ],
            out_specs=pl.BlockSpec((C2, W2P), lambda r, xi, bi: (0, r)),
        ),
        compiler_params=pltpu.CompilerParams(dimension_semantics=("parallel",)),
    )(xidx, bidx, xrows, wc_k, bias_tbl)

    # ---- NCHW assembly: drop the W padding; for N == 1 the transpose is free -----
    out = y.reshape(C2, N, H2, W2P)[:, :, :, :W2o]
    return out.transpose(1, 0, 2, 3)


def _conv_transpose2d_ref(x, weight, bias, stride, padding, output_padding):
    """Pure-JAX reference via lhs-dilated conv (matches PyTorch ConvTranspose2d)."""
    kh, kw = weight.shape[2], weight.shape[3]
    rhs = jnp.flip(weight, (2, 3)).transpose(1, 0, 2, 3)   # (O, I, kh, kw)
    pad = [(kh - 1 - padding[0], kh - 1 - padding[0] + output_padding[0]),
           (kw - 1 - padding[1], kw - 1 - padding[1] + output_padding[1])]
    out = lax.conv_general_dilated(
        x, rhs, window_strides=(1, 1), padding=pad,
        lhs_dilation=stride, rhs_dilation=(1, 1),
        dimension_numbers=('NCHW', 'OIHW', 'NCHW'),
        precision=lax.Precision.HIGHEST)
    return out + bias.reshape(1, -1, 1, 1)


if __name__ == "__main__":
    key = jax.random.PRNGKey(0)
    kx, kw1, kb1, kw2, kb2 = jax.random.split(key, 5)

    # NOTE: the module's example input (1, 39, 1, 189) is invalid for its own
    # conv_transpose1 (output height would be 0), so we use the smallest valid
    # height H=2 and keep the module's channel/width sizes.
    N, CIN, H, W = 1, 39, 2, 189
    x1 = jax.random.normal(kx, (N, CIN, H, W), jnp.float32)

    def init_convt(kw_key, kb_key, cin, cout, kh, kw):
        # Deterministic PyTorch-like init: U(-1/sqrt(fan), 1/sqrt(fan)).
        fan = cout * kh * kw
        bound = 1.0 / math.sqrt(fan)
        w = jax.random.uniform(kw_key, (cin, cout, kh, kw), jnp.float32, -bound, bound)
        b = jax.random.uniform(kb_key, (cout,), jnp.float32, -bound, bound)
        return w, b

    w1, b1 = init_convt(kw1, kb1, 39, 64, 1, 11)   # ConvTranspose2d(39,64,(1,11),s=(2,1),p=(1,0),op=(1,0))
    w2, b2 = init_convt(kw2, kb2, 64, 64, 1, 9)    # ConvTranspose2d(64,64,(1,9), s=(8,1),p=(0,0),op=(0,0))

    @jax.jit
    def model(x):
        return fused_double_conv_transpose(
            x, w1, b1, (2, 1), (1, 0), (1, 0),
            w2, b2, (8, 1), (0, 0), (0, 0))

    out = jax.block_until_ready(model(x1))

    # Correctness check against a pure-JAX reference of the PyTorch forward.
    r1 = _conv_transpose2d_ref(x1, w1, b1, (2, 1), (1, 0), (1, 0))
    r3 = jax.nn.sigmoid(_conv_transpose2d_ref(r1, w2, b2, (8, 1), (0, 0), (0, 0)))
    assert out.shape == r3.shape, (out.shape, r3.shape)
    err = float(jnp.max(jnp.abs(out - r3)))
    assert jnp.allclose(out, r3, rtol=1e-4, atol=1e-4), err

    print("KERNEL_OK")
</pallas_src>

<mosaic_0001>
module attributes {stable_mosaic.version = 11 : i64} {
  func.func @kernel(%arg0: i32, %arg1: memref<9xi32, #tpu.memory_space<smem>>, %arg2: memref<9xi32, #tpu.memory_space<smem>>, %arg3: memref<1x128x274xf32, #tpu.memory_space<vmem>>, %arg4: memref<19x64x128xf32, #tpu.memory_space<vmem>>, %arg5: memref<1x64x256xf32, #tpu.memory_space<vmem>>, %arg6: memref<64x256xf32, #tpu.memory_space<vmem>>) attributes {dimension_semantics = [#tpu.dimension_semantics<parallel>], iteration_bounds = array<i64: 9>, scalar_prefetch = 2 : i64, scratch_operands = 0 : i64, tpu.core_type = #tpu.core_type<tc>, window_params = [{transform_indices = @transform_0, window_bounds = array<i64: 1, 128, 274>}, {pipeline_mode = #tpu.pipeline_mode<synchronous>, transform_indices = @transform_1, window_bounds = array<i64: 19, 64, 128>}, {transform_indices = @transform_2, window_bounds = array<i64: 1, 64, 256>}, {transform_indices = @transform_3, window_bounds = array<i64: 64, 256>}]} {
    %c0 = arith.constant 0 : index
    %c0_0 = arith.constant 0 : index
    %c0_1 = arith.constant 0 : index
    %0 = vector.load %arg5[%c0, %c0_0, %c0_1] : memref<1x64x256xf32, #tpu.memory_space<vmem>>, vector<1x64x256xf32>
    %1 = vector.shape_cast %0 : vector<1x64x256xf32> to vector<64x256xf32>
    %c0_2 = arith.constant 0 : index
    %c0_3 = arith.constant 0 : index
    %c0_4 = arith.constant 0 : index
    %2 = vector.load %arg4[%c0_2, %c0_3, %c0_4] : memref<19x64x128xf32, #tpu.memory_space<vmem>>, vector<1x64x128xf32>
    %3 = vector.shape_cast %2 : vector<1x64x128xf32> to vector<64x128xf32>
    %c0_5 = arith.constant 0 : index
    %c0_6 = arith.constant 0 : index
    %c0_7 = arith.constant 0 : index
    %4 = vector.load %arg3[%c0_5, %c0_6, %c0_7] : memref<1x128x274xf32, #tpu.memory_space<vmem>>, vector<1x128x256xf32>
    %5 = vector.shape_cast %4 : vector<1x128x256xf32> to vector<128x256xf32>
    %cst = arith.constant dense<0.000000e+00> : vector<64x256xf32>
    %6 = tpu.matmul %3, %5, %cst {dimension_numbers = #tpu.dot_dimension_numbers<[1], [0], [0], [1], [0, 0, 1, 1], [], []>} : vector<64x128xf32>, vector<128x256xf32>, vector<64x256xf32> -> vector<64x256xf32>
    %7 = arith.addf %1, %6 : vector<64x256xf32>
    %c1 = arith.constant 1 : index
    %c0_8 = arith.constant 0 : index
    %c0_9 = arith.constant 0 : index
    %8 = vector.load %arg4[%c1, %c0_8, %c0_9] : memref<19x64x128xf32, #tpu.memory_space<vmem>>, vector<1x64x128xf32>
    %9 = vector.shape_cast %8 : vector<1x64x128xf32> to vector<64x128xf32>
    %c0_10 = arith.constant 0 : index
    %c0_11 = arith.constant 0 : index
    %c1_12 = arith.constant 1 : index
    %10 = vector.load %arg3[%c0_10, %c0_11, %c1_12] : memref<1x128x274xf32, #tpu.memory_space<vmem>>, vector<1x128x256xf32>
    %11 = vector.shape_cast %10 : vector<1x128x256xf32> to vector<128x256xf32>
    %cst_13 = arith.constant dense<0.000000e+00> : vector<64x256xf32>
    %12 = tpu.matmul %9, %11, %cst_13 {dimension_numbers = #tpu.dot_dimension_numbers<[1], [0], [0], [1], [0, 0, 1, 1], [], []>} : vector<64x128xf32>, vector<128x256xf32>, vector<64x256xf32> -> vector<64x256xf32>
    %13 = arith.addf %7, %12 : vector<64x256xf32>
    %c2 = arith.constant 2 : index
    %c0_14 = arith.constant 0 : index
    %c0_15 = arith.constant 0 : index
    %14 = vector.load %arg4[%c2, %c0_14, %c0_15] : memref<19x64x128xf32, #tpu.memory_space<vmem>>, vector<1x64x128xf32>
    %15 = vector.shape_cast %14 : vector<1x64x128xf32> to vector<64x128xf32>
    %c0_16 = arith.constant 0 : index
    %c0_17 = arith.constant 0 : index
    %c2_18 = arith.constant 2 : index
    %16 = vector.load %arg3[%c0_16, %c0_17, %c2_18] : memref<1x128x274xf32, #tpu.memory_space<vmem>>, vector<1x128x256xf32>
    %17 = vector.shape_cast %16 : vector<1x128x256xf32> to vector<128x256xf32>
    %cst_19 = arith.constant dense<0.000000e+00> : vector<64x256xf32>
    %18 = tpu.matmul %15, %17, %cst_19 {dimension_numbers = #tpu.dot_dimension_numbers<[1], [0], [0], [1], [0, 0, 1, 1], [], []>} : vector<64x128xf32>, vector<128x256xf32>, vector<64x256xf32> -> vector<64x256xf32>
    %19 = arith.addf %13, %18 : vector<64x256xf32>
    %c3 = arith.constant 3 : index
    %c0_20 = arith.constant 0 : index
    %c0_21 = arith.constant 0 : index
    %20 = vector.load %arg4[%c3, %c0_20, %c0_21] : memref<19x64x128xf32, #tpu.memory_space<vmem>>, vector<1x64x128xf32>
    %21 = vector.shape_cast %20 : vector<1x64x128xf32> to vector<64x128xf32>
    %c0_22 = arith.constant 0 : index
    %c0_23 = arith.constant 0 : index
    %c3_24 = arith.constant 3 : index
    %22 = vector.load %arg3[%c0_22, %c0_23, %c3_24] : memref<1x128x274xf32, #tpu.memory_space<vmem>>, vector<1x128x256xf32>
    %23 = vector.shape_cast %22 : vector<1x128x256xf32> to vector<128x256xf32>
    %cst_25 = arith.constant dense<0.000000e+00> : vector<64x256xf32>
    %24 = tpu.matmul %21, %23, %cst_25 {dimension_numbers = #tpu.dot_dimension_numbers<[1], [0], [0], [1], [0, 0, 1, 1], [], []>} : vector<64x128xf32>, vector<128x256xf32>, vector<64x256xf32> -> vector<64x256xf32>
    %25 = arith.addf %19, %24 : vector<64x256xf32>
    %c4 = arith.constant 4 : index
    %c0_26 = arith.constant 0 : index
    %c0_27 = arith.constant 0 : index
    %26 = vector.load %arg4[%c4, %c0_26, %c0_27] : memref<19x64x128xf32, #tpu.memory_space<vmem>>, vector<1x64x128xf32>
    %27 = vector.shape_cast %26 : vector<1x64x128xf32> to vector<64x128xf32>
    %c0_28 = arith.constant 0 : index
    %c0_29 = arith.constant 0 : index
    %c4_30 = arith.constant 4 : index
    %28 = vector.load %arg3[%c0_28, %c0_29, %c4_30] : memref<1x128x274xf32, #tpu.memory_space<vmem>>, vector<1x128x256xf32>
    %29 = vector.shape_cast %28 : vector<1x128x256xf32> to vector<128x256xf32>
    %cst_31 = arith.constant dense<0.000000e+00> : vector<64x256xf32>
    %30 = tpu.matmul %27, %29, %cst_31 {dimension_numbers = #tpu.dot_dimension_numbers<[1], [0], [0], [1], [0, 0, 1, 1], [], []>} : vector<64x128xf32>, vector<128x256xf32>, vector<64x256xf32> -> vector<64x256xf32>
    %31 = arith.addf %25, %30 : vector<64x256xf32>
    %c5 = arith.constant 5 : index
    %c0_32 = arith.constant 0 : index
    %c0_33 = arith.constant 0 : index
    %32 = vector.load %arg4[%c5, %c0_32, %c0_33] : memref<19x64x128xf32, #tpu.memory_space<vmem>>, vector<1x64x128xf32>
    %33 = vector.shape_cast %32 : vector<1x64x128xf32> to vector<64x128xf32>
    %c0_34 = arith.constant 0 : index
    %c0_35 = arith.constant 0 : index
    %c5_36 = arith.constant 5 : index
    %34 = vector.load %arg3[%c0_34, %c0_35, %c5_36] : memref<1x128x274xf32, #tpu.memory_space<vmem>>, vector<1x128x256xf32>
    %35 = vector.shape_cast %34 : vector<1x128x256xf32> to vector<128x256xf32>
    %cst_37 = arith.constant dense<0.000000e+00> : vector<64x256xf32>
    %36 = tpu.matmul %33, %35, %cst_37 {dimension_numbers = #tpu.dot_dimension_numbers<[1], [0], [0], [1], [0, 0, 1, 1], [], []>} : vector<64x128xf32>, vector<128x256xf32>, vector<64x256xf32> -> vector<64x256xf32>
    %37 = arith.addf %31, %36 : vector<64x256xf32>
    %c6 = arith.constant 6 : index
    %c0_38 = arith.constant 0 : index
    %c0_39 = arith.constant 0 : index
    %38 = vector.load %arg4[%c6, %c0_38, %c0_39] : memref<19x64x128xf32, #tpu.memory_space<vmem>>, vector<1x64x128xf32>
    %39 = vector.shape_cast %38 : vector<1x64x128xf32> to vector<64x128xf32>
    %c0_40 = arith.constant 0 : index
    %c0_41 = arith.constant 0 : index
    %c6_42 = arith.constant 6 : index
    %40 = vector.load %arg3[%c0_40, %c0_41, %c6_42] : memref<1x128x274xf32, #tpu.memory_space<vmem>>, vector<1x128x256xf32>
    %41 = vector.shape_cast %40 : vector<1x128x256xf32> to vector<128x256xf32>
    %cst_43 = arith.constant dense<0.000000e+00> : vector<64x256xf32>
    %42 = tpu.matmul %39, %41, %cst_43 {dimension_numbers = #tpu.dot_dimension_numbers<[1], [0], [0], [1], [0, 0, 1, 1], [], []>} : vector<64x128xf32>, vector<128x256xf32>, vector<64x256xf32> -> vector<64x256xf32>
    %43 = arith.addf %37, %42 : vector<64x256xf32>
    %c7 = arith.constant 7 : index
    %c0_44 = arith.constant 0 : index
    %c0_45 = arith.constant 0 : index
    %44 = vector.load %arg4[%c7, %c0_44, %c0_45] : memref<19x64x128xf32, #tpu.memory_space<vmem>>, vector<1x64x128xf32>
    %45 = vector.shape_cast %44 : vector<1x64x128xf32> to vector<64x128xf32>
    %c0_46 = arith.constant 0 : index
    %c0_47 = arith.constant 0 : index
    %c7_48 = arith.constant 7 : index
    %46 = vector.load %arg3[%c0_46, %c0_47, %c7_48] : memref<1x128x274xf32, #tpu.memory_space<vmem>>, vector<1x128x256xf32>
    %47 = vector.shape_cast %46 : vector<1x128x256xf32> to vector<128x256xf32>
    %cst_49 = arith.constant dense<0.000000e+00> : vector<64x256xf32>
    %48 = tpu.matmul %45, %47, %cst_49 {dimension_numbers = #tpu.dot_dimension_numbers<[1], [0], [0], [1], [0, 0, 1, 1], [], []>} : vector<64x128xf32>, vector<128x256xf32>, vector<64x256xf32> -> vector<64x256xf32>
    %49 = arith.addf %43, %48 : vector<64x256xf32>
    %c8 = arith.constant 8 : index
    %c0_50 = arith.constant 0 : index
    %c0_51 = arith.constant 0 : index
    %50 = vector.load %arg4[%c8, %c0_50, %c0_51] : memref<19x64x128xf32, #tpu.memory_space<vmem>>, vector<1x64x128xf32>
    %51 = vector.shape_cast %50 : vector<1x64x128xf32> to vector<64x128xf32>
    %c0_52 = arith.constant 0 : index
    %c0_53 = arith.constant 0 : index
    %c8_54 = arith.constant 8 : index
    %52 = vector.load %arg3[%c0_52, %c0_53, %c8_54] : memref<1x128x274xf32, #tpu.memory_space<vmem>>, vector<1x128x256xf32>
    %53 = vector.shape_cast %52 : vector<1x128x256xf32> to vector<128x256xf32>
    %cst_55 = arith.constant dense<0.000000e+00> : vector<64x256xf32>
    %54 = tpu.matmul %51, %53, %cst_55 {dimension_numbers = #tpu.dot_dimension_numbers<[1], [0], [0], [1], [0, 0, 1, 1], [], []>} : vector<64x128xf32>, vector<128x256xf32>, vector<64x256xf32> -> vector<64x256xf32>
    %55 = arith.addf %49, %54 : vector<64x256xf32>
    %c9 = arith.constant 9 : index
    %c0_56 = arith.constant 0 : index
    %c0_57 = arith.constant 0 : index
    %56 = vector.load %arg4[%c9, %c0_56, %c0_57] : memref<19x64x128xf32, #tpu.memory_space<vmem>>, vector<1x64x128xf32>
    %57 = vector.shape_cast %56 : vector<1x64x128xf32> to vector<64x128xf32>
    %c0_58 = arith.constant 0 : index
    %c0_59 = arith.constant 0 : index
    %c9_60 = arith.constant 9 : index
    %58 = vector.load %arg3[%c0_58, %c0_59, %c9_60] : memref<1x128x274xf32, #tpu.memory_space<vmem>>, vector<1x128x256xf32>
    %59 = vector.shape_cast %58 : vector<1x128x256xf32> to vector<128x256xf32>
    %cst_61 = arith.constant dense<0.000000e+00> : vector<64x256xf32>
    %60 = tpu.matmul %57, %59, %cst_61 {dimension_numbers = #tpu.dot_dimension_numbers<[1], [0], [0], [1], [0, 0, 1, 1], [], []>} : vector<64x128xf32>, vector<128x256xf32>, vector<64x256xf32> -> vector<64x256xf32>
    %61 = arith.addf %55, %60 : vector<64x256xf32>
    %c10 = arith.constant 10 : index
    %c0_62 = arith.constant 0 : index
    %c0_63 = arith.constant 0 : index
    %62 = vector.load %arg4[%c10, %c0_62, %c0_63] : memref<19x64x128xf32, #tpu.memory_space<vmem>>, vector<1x64x128xf32>
    %63 = vector.shape_cast %62 : vector<1x64x128xf32> to vector<64x128xf32>
    %c0_64 = arith.constant 0 : index
    %c0_65 = arith.constant 0 : index
    %c10_66 = arith.constant 10 : index
    %64 = vector.load %arg3[%c0_64, %c0_65, %c10_66] : memref<1x128x274xf32, #tpu.memory_space<vmem>>, vector<1x128x256xf32>
    %65 = vector.shape_cast %64 : vector<1x128x256xf32> to vector<128x256xf32>
    %cst_67 = arith.constant dense<0.000000e+00> : vector<64x256xf32>
    %66 = tpu.matmul %63, %65, %cst_67 {dimension_numbers = #tpu.dot_dimension_numbers<[1], [0], [0], [1], [0, 0, 1, 1], [], []>} : vector<64x128xf32>, vector<128x256xf32>, vector<64x256xf32> -> vector<64x256xf32>
    %67 = arith.addf %61, %66 : vector<64x256xf32>
    %c11 = arith.constant 11 : index
    %c0_68 = arith.constant 0 : index
    %c0_69 = arith.constant 0 : index
    %68 = vector.load %arg4[%c11, %c0_68, %c0_69] : memref<19x64x128xf32, #tpu.memory_space<vmem>>, vector<1x64x128xf32>
    %69 = vector.shape_cast %68 : vector<1x64x128xf32> to vector<64x128xf32>
    %c0_70 = arith.constant 0 : index
    %c0_71 = arith.constant 0 : index
    %c11_72 = arith.constant 11 : index
    %70 = vector.load %arg3[%c0_70, %c0_71, %c11_72] : memref<1x128x274xf32, #tpu.memory_space<vmem>>, vector<1x128x256xf32>
    %71 = vector.shape_cast %70 : vector<1x128x256xf32> to vector<128x256xf32>
    %cst_73 = arith.constant dense<0.000000e+00> : vector<64x256xf32>
    %72 = tpu.matmul %69, %71, %cst_73 {dimension_numbers = #tpu.dot_dimension_numbers<[1], [0], [0], [1], [0, 0, 1, 1], [], []>} : vector<64x128xf32>, vector<128x256xf32>, vector<64x256xf32> -> vector<64x256xf32>
    %73 = arith.addf %67, %72 : vector<64x256xf32>
    %c12 = arith.constant 12 : index
    %c0_74 = arith.constant 0 : index
    %c0_75 = arith.constant 0 : index
    %74 = vector.load %arg4[%c12, %c0_74, %c0_75] : memref<19x64x128xf32, #tpu.memory_space<vmem>>, vector<1x64x128xf32>
    %75 = vector.shape_cast %74 : vector<1x64x128xf32> to vector<64x128xf32>
    %c0_76 = arith.constant 0 : index
    %c0_77 = arith.constant 0 : index
    %c12_78 = arith.constant 12 : index
    %76 = vector.load %arg3[%c0_76, %c0_77, %c12_78] : memref<1x128x274xf32, #tpu.memory_space<vmem>>, vector<1x128x256xf32>
    %77 = vector.shape_cast %76 : vector<1x128x256xf32> to vector<128x256xf32>
    %cst_79 = arith.constant dense<0.000000e+00> : vector<64x256xf32>
    %78 = tpu.matmul %75, %77, %cst_79 {dimension_numbers = #tpu.dot_dimension_numbers<[1], [0], [0], [1], [0, 0, 1, 1], [], []>} : vector<64x128xf32>, vector<128x256xf32>, vector<64x256xf32> -> vector<64x256xf32>
    %79 = arith.addf %73, %78 : vector<64x256xf32>
    %c13 = arith.constant 13 : index
    %c0_80 = arith.constant 0 : index
    %c0_81 = arith.constant 0 : index
    %80 = vector.load %arg4[%c13, %c0_80, %c0_81] : memref<19x64x128xf32, #tpu.memory_space<vmem>>, vector<1x64x128xf32>
    %81 = vector.shape_cast %80 : vector<1x64x128xf32> to vector<64x128xf32>
    %c0_82 = arith.constant 0 : index
    %c0_83 = arith.constant 0 : index
    %c13_84 = arith.constant 13 : index
    %82 = vector.load %arg3[%c0_82, %c0_83, %c13_84] : memref<1x128x274xf32, #tpu.memory_space<vmem>>, vector<1x128x256xf32>
    %83 = vector.shape_cast %82 : vector<1x128x256xf32> to vector<128x256xf32>
    %cst_85 = arith.constant dense<0.000000e+00> : vector<64x256xf32>
    %84 = tpu.matmul %81, %83, %cst_85 {dimension_numbers = #tpu.dot_dimension_numbers<[1], [0], [0], [1], [0, 0, 1, 1], [], []>} : vector<64x128xf32>, vector<128x256xf32>, vector<64x256xf32> -> vector<64x256xf32>
    %85 = arith.addf %79, %84 : vector<64x256xf32>
    %c14 = arith.constant 14 : index
    %c0_86 = arith.constant 0 : index
    %c0_87 = arith.constant 0 : index
    %86 = vector.load %arg4[%c14, %c0_86, %c0_87] : memref<19x64x128xf32, #tpu.memory_space<vmem>>, vector<1x64x128xf32>
    %87 = vector.shape_cast %86 : vector<1x64x128xf32> to vector<64x128xf32>
    %c0_88 = arith.constant 0 : index
    %c0_89 = arith.constant 0 : index
    %c14_90 = arith.constant 14 : index
    %88 = vector.load %arg3[%c0_88, %c0_89, %c14_90] : memref<1x128x274xf32, #tpu.memory_space<vmem>>, vector<1x128x256xf32>
    %89 = vector.shape_cast %88 : vector<1x128x256xf32> to vector<128x256xf32>
    %cst_91 = arith.constant dense<0.000000e+00> : vector<64x256xf32>
    %90 = tpu.matmul %87, %89, %cst_91 {dimension_numbers = #tpu.dot_dimension_numbers<[1], [0], [0], [1], [0, 0, 1, 1], [], []>} : vector<64x128xf32>, vector<128x256xf32>, vector<64x256xf32> -> vector<64x256xf32>
    %91 = arith.addf %85, %90 : vector<64x256xf32>
    %c15 = arith.constant 15 : index
    %c0_92 = arith.constant 0 : index
    %c0_93 = arith.constant 0 : index
    %92 = vector.load %arg4[%c15, %c0_92, %c0_93] : memref<19x64x128xf32, #tpu.memory_space<vmem>>, vector<1x64x128xf32>
    %93 = vector.shape_cast %92 : vector<1x64x128xf32> to vector<64x128xf32>
    %c0_94 = arith.constant 0 : index
    %c0_95 = arith.constant 0 : index
    %c15_96 = arith.constant 15 : index
    %94 = vector.load %arg3[%c0_94, %c0_95, %c15_96] : memref<1x128x274xf32, #tpu.memory_space<vmem>>, vector<1x128x256xf32>
    %95 = vector.shape_cast %94 : vector<1x128x256xf32> to vector<128x256xf32>
    %cst_97 = arith.constant dense<0.000000e+00> : vector<64x256xf32>
    %96 = tpu.matmul %93, %95, %cst_97 {dimension_numbers = #tpu.dot_dimension_numbers<[1], [0], [0], [1], [0, 0, 1, 1], [], []>} : vector<64x128xf32>, vector<128x256xf32>, vector<64x256xf32> -> vector<64x256xf32>
    %97 = arith.addf %91, %96 : vector<64x256xf32>
    %c16 = arith.constant 16 : index
    %c0_98 = arith.constant 0 : index
    %c0_99 = arith.constant 0 : index
    %98 = vector.load %arg4[%c16, %c0_98, %c0_99] : memref<19x64x128xf32, #tpu.memory_space<vmem>>, vector<1x64x128xf32>
    %99 = vector.shape_cast %98 : vector<1x64x128xf32> to vector<64x128xf32>
    %c0_100 = arith.constant 0 : index
    %c0_101 = arith.constant 0 : index
    %c16_102 = arith.constant 16 : index
    %100 = vector.load %arg3[%c0_100, %c0_101, %c16_102] : memref<1x128x274xf32, #tpu.memory_space<vmem>>, vector<1x128x256xf32>
    %101 = vector.shape_cast %100 : vector<1x128x256xf32> to vector<128x256xf32>
    %cst_103 = arith.constant dense<0.000000e+00> : vector<64x256xf32>
    %102 = tpu.matmul %99, %101, %cst_103 {dimension_numbers = #tpu.dot_dimension_numbers<[1], [0], [0], [1], [0, 0, 1, 1], [], []>} : vector<64x128xf32>, vector<128x256xf32>, vector<64x256xf32> -> vector<64x256xf32>
    %103 = arith.addf %97, %102 : vector<64x256xf32>
    %c17 = arith.constant 17 : index
    %c0_104 = arith.constant 0 : index
    %c0_105 = arith.constant 0 : index
    %104 = vector.load %arg4[%c17, %c0_104, %c0_105] : memref<19x64x128xf32, #tpu.memory_space<vmem>>, vector<1x64x128xf32>
    %105 = vector.shape_cast %104 : vector<1x64x128xf32> to vector<64x128xf32>
    %c0_106 = arith.constant 0 : index
    %c0_107 = arith.constant 0 : index
    %c17_108 = arith.constant 17 : index
    %106 = vector.load %arg3[%c0_106, %c0_107, %c17_108] : memref<1x128x274xf32, #tpu.memory_space<vmem>>, vector<1x128x256xf32>
    %107 = vector.shape_cast %106 : vector<1x128x256xf32> to vector<128x256xf32>
    %cst_109 = arith.constant dense<0.000000e+00> : vector<64x256xf32>
    %108 = tpu.matmul %105, %107, %cst_109 {dimension_numbers = #tpu.dot_dimension_numbers<[1], [0], [0], [1], [0, 0, 1, 1], [], []>} : vector<64x128xf32>, vector<128x256xf32>, vector<64x256xf32> -> vector<64x256xf32>
    %109 = arith.addf %103, %108 : vector<64x256xf32>
    %c18 = arith.constant 18 : index
    %c0_110 = arith.constant 0 : index
    %c0_111 = arith.constant 0 : index
    %110 = vector.load %arg4[%c18, %c0_110, %c0_111] : memref<19x64x128xf32, #tpu.memory_space<vmem>>, vector<1x64x128xf32>
    %111 = vector.shape_cast %110 : vector<1x64x128xf32> to vector<64x128xf32>
    %c0_112 = arith.constant 0 : index
    %c0_113 = arith.constant 0 : index
    %c18_114 = arith.constant 18 : index
    %112 = vector.load %arg3[%c0_112, %c0_113, %c18_114] : memref<1x128x274xf32, #tpu.memory_space<vmem>>, vector<1x128x256xf32>
    %113 = vector.shape_cast %112 : vector<1x128x256xf32> to vector<128x256xf32>
    %cst_115 = arith.constant dense<0.000000e+00> : vector<64x256xf32>
    %114 = tpu.matmul %111, %113, %cst_115 {dimension_numbers = #tpu.dot_dimension_numbers<[1], [0], [0], [1], [0, 0, 1, 1], [], []>} : vector<64x128xf32>, vector<128x256xf32>, vector<64x256xf32> -> vector<64x256xf32>
    %115 = arith.addf %109, %114 : vector<64x256xf32>
    %116 = arith.negf %115 : vector<64x256xf32>
    %117 = math.exp %116 : vector<64x256xf32>
    %cst_116 = arith.constant 1.000000e+00 : f32
    %118 = vector.broadcast %cst_116 : f32 to vector<64x256xf32>
    %119 = arith.addf %118, %117 : vector<64x256xf32>
    %120 = arith.divf %118, %119 : vector<64x256xf32>
    %c0_117 = arith.constant 0 : index
    %c0_118 = arith.constant 0 : index
    %121 = vector.load %arg6[%c0_117, %c0_118] : memref<64x256xf32, #tpu.memory_space<vmem>>, vector<64x256xf32>
    tpu.vector_store %arg6[%c0_117, %c0_118], %120 {strides = array<i32>} : memref<64x256xf32, #tpu.memory_space<vmem>>, vector<64x256xf32>,
    return
  }
  func.func @transform_0(%arg0: i32, %arg1: memref<9xi32, #tpu.memory_space<smem>>, %arg2: memref<9xi32, #tpu.memory_space<smem>>) -> (i32, i32, i32) {
    %0 = arith.index_cast %arg0 : i32 to index
    %1 = memref.load %arg1[%0] : memref<9xi32, #tpu.memory_space<smem>>
    %c0_i32 = arith.constant 0 : i32
    %c0_i32_0 = arith.constant 0 : i32
    %c0_i32_1 = arith.constant 0 : i32
    return %1, %c0_i32, %c0_i32_0 : i32, i32, i32
  }
  func.func @transform_1(%arg0: i32, %arg1: memref<9xi32, #tpu.memory_space<smem>>, %arg2: memref<9xi32, #tpu.memory_space<smem>>) -> (i32, i32, i32) {
    %c0_i32 = arith.constant 0 : i32
    %c0_i32_0 = arith.constant 0 : i32
    %c0_i32_1 = arith.constant 0 : i32
    %c0_i32_2 = arith.constant 0 : i32
    return %c0_i32, %c0_i32_0, %c0_i32_1 : i32, i32, i32
  }
  func.func @transform_2(%arg0: i32, %arg1: memref<9xi32, #tpu.memory_space<smem>>, %arg2: memref<9xi32, #tpu.memory_space<smem>>) -> (i32, i32, i32) {
    %0 = arith.index_cast %arg0 : i32 to index
    %1 = memref.load %arg2[%0] : memref<9xi32, #tpu.memory_space<smem>>
    %c0_i32 = arith.constant 0 : i32
    %c0_i32_0 = arith.constant 0 : i32
    %c0_i32_1 = arith.constant 0 : i32
    return %1, %c0_i32, %c0_i32_0 : i32, i32, i32
  }
  func.func @transform_3(%arg0: i32, %arg1: memref<9xi32, #tpu.memory_space<smem>>, %arg2: memref<9xi32, #tpu.memory_space<smem>>) -> (i32, i32) {
    %c0_i32 = arith.constant 0 : i32
    %c0_i32_0 = arith.constant 0 : i32
    return %c0_i32, %arg0 : i32, i32
  }
}

</mosaic_0001>

<llo_original>
// kernel: model.1
$region0: #{model.1}
  #allocation0 [shape = 'u32[]', space=smem, size = 0x4, offset = 0x4, fixed_abs, tag = 'smem constant byte address 0x4 - core index']
  #allocation1 [shape = 'u32[144,128]{1,0:T(1,128)}', space=vmem, size = 0x12000, scoped, tag = 'internal scratch']
  #allocation2 [shape = 's32[1]{0}', space=sflag, size = 0x4, scoped, tag = 'scoped memory for model.1']
  #allocation3 [shape = 'u8[512]{0}', space=smem, size = 0x200, scoped, tag = 'prefetched SMEM operand 0']
  #allocation4 [shape = 'u8[512]{0}', space=smem, size = 0x200, scoped, tag = 'prefetched SMEM operand 1']
  %s0 = inlined_call_operand.vmem [shape: s32[9], index: 0, kind: input, shape index: {}]
  %s1 = inlined_call_operand.vmem [shape: s32[9], index: 1, kind: input, shape index: {}]
  %s2 = inlined_call_operand.vmem [shape: f32[3,128,274], index: 2, kind: input, shape index: {}]
  %s3 = inlined_call_operand.vmem [shape: f32[19,64,128], index: 3, kind: input, shape index: {}]
  %s4 = inlined_call_operand.vmem [shape: f32[2,64,256], index: 4, kind: input, shape index: {}]
  %s5 = inlined_call_operand.vmem [shape: f32[64,2304], index: 5, kind: output, shape index: {}]
  %s6 = sld [smem:[#allocation0]]
  $region64: #{model.1} parent=0
    _
  %s8 = ssub.s32 1, %s6
  %s9 = scalar_select 0, %s8, %s6
  %s10 = sshll.u32 %s0, 4
  %s11 = int_to_ptr.vmem [resolvable:$true] %s10
  %13 = dma.vmem_to_smem %s11, 16, [#allocation3], [#allocation2]
  %s14 = sshll.u32 %s1, 4
  %s15 = int_to_ptr.vmem [resolvable:$true] %s14
  %17 = dma.vmem_to_smem %s15, 16, [#allocation4], [#allocation2]
  %18 = dma.done [#allocation2], 32
  %19 = sfence
  $region1: #{model.1} parent=0
    #allocation5 [shape = 'u8[131072]{0}', space=vmem, size = 0x20000, scoped, tag = 'output window, operand 0']
    loop: start=0, step=1, limit=11
    $region2: #{model.1} parent=1 // loop_pre_header
      _
    $region3: #{model.1} parent=1 // loop_header
      %s21 = sphi 0, %s25
      %p22 = scmp.ge.s32.totalorder %s21, 11
      %s33 = sphi 0, %s35
      %s36 = sphi 0, %s33
      %s37 = sphi 0, %s36
      %s53 = sphi 0, %s37
      %s57 = sphi 0, %s57
      %s59 = sphi 0, %s57
      %s60 = sphi 0, %s59
      %s74 = sphi 0, %s60
      %s82 = sphi 0, %s84
      %s85 = sphi 0, %s82
      %s86 = sphi 0, %s85
      %s102 = sphi 0, %s86
      %s108 = sphi 0, %s110
      %s111 = sphi 0, %s108
      %s112 = sphi 0, %s111
      %s128 = sphi 0, %s112
    $region4: #{model.1} parent=1 // loop_header_branch
      %24 = sbr.rel (%p22) target = $region8
    $region5: #{model.1} parent=1 // loop_body
      %s26 = ssub.s32 %s21, 1
      %s27 = ssub.s32 %s21, 2
      %s28 = sadd.s32 %s21, 1
      %s29 = sld [smem:[#allocation3 + %s21]]
      %s30 = sld [smem:[#allocation3 + %s28]]
      %s31 = ssub.s32 %s29, %s30
      %p32 = scmp.eq.s32.totalorder %s31, 0
      %s34 = sadd.s32 %s33, 1
      %s35 = scalar_select %p32, %s33, %s34
      %p38 = pneg %p32
      %p39 = scmp.eq.s32.totalorder %s21, 8
      %p40 = por %p38, %p39
      %p41 = scmp.ne.s32.totalorder %s33, %s36
      %p42 = scmp.eq.s32.totalorder %s21, 0
      %p43 = por %p41, %p42
      %p44 = scmp.ne.s32.totalorder %s33, %s36
      %p45 = scmp.eq.s32.totalorder %s26, 8
      %p46 = por %p44, %p45
      %p47 = scmp.ne.s32.totalorder %s36, %s37
      %p48 = scmp.eq.s32.totalorder %s26, 0
      %p49 = por %p47, %p48
      %p50 = scmp.ne.s32.totalorder %s36, %s37
      %p51 = scmp.eq.s32.totalorder %s27, 8
      %p52 = por %p50, %p51
      %p54 = scmp.ne.s32.totalorder %s37, %s53
      %p55 = scmp.eq.s32.totalorder %s27, 0
      %p56 = por %p54, %p55
      %s58 = sadd.s32 %s57, 1
      %p61 = scmp.eq.s32.totalorder %s21, 8
      %p62 = scmp.ne.s32.totalorder %s57, %s59
      %p63 = scmp.eq.s32.totalorder %s21, 0
      %p64 = por %p62, %p63
      %p65 = scmp.ne.s32.totalorder %s57, %s59
      %p66 = scmp.eq.s32.totalorder %s26, 8
      %p67 = por %p65, %p66
      %p68 = scmp.ne.s32.totalorder %s59, %s60
      %p69 = scmp.eq.s32.totalorder %s26, 0
      %p70 = por %p68, %p69
      %p71 = scmp.ne.s32.totalorder %s59, %s60
      %p72 = scmp.eq.s32.totalorder %s27, 8
      %p73 = por %p71, %p72
      %p75 = scmp.ne.s32.totalorder %s60, %s74
      %p76 = scmp.eq.s32.totalorder %s27, 0
      %p77 = por %p75, %p76
      %s78 = sld [smem:[#allocation4 + %s21]]
      %s79 = sld [smem:[#allocation4 + %s28]]
      %s80 = ssub.s32 %s78, %s79
      %p81 = scmp.eq.s32.totalorder %s80, 0
      %s83 = sadd.s32 %s82, 1
      %s84 = scalar_select %p81, %s82, %s83
      %p87 = pneg %p81
      %p88 = scmp.eq.s32.totalorder %s21, 8
      %p89 = por %p87, %p88
      %p90 = scmp.ne.s32.totalorder %s82, %s85
      %p91 = scmp.eq.s32.totalorder %s21, 0
      %p92 = por %p90, %p91
      %p93 = scmp.ne.s32.totalorder %s82, %s85
      %p94 = scmp.eq.s32.totalorder %s26, 8
      %p95 = por %p93, %p94
      %p96 = scmp.ne.s32.totalorder %s85, %s86
      %p97 = scmp.eq.s32.totalorder %s26, 0
      %p98 = por %p96, %p97
      %p99 = scmp.ne.s32.totalorder %s85, %s86
      %p100 = scmp.eq.s32.totalorder %s27, 8
      %p101 = por %p99, %p100
      %p103 = scmp.ne.s32.totalorder %s86, %s102
      %p104 = scmp.eq.s32.totalorder %s27, 0
      %p105 = por %p103, %p104
      %s106 = ssub.s32 %s21, %s28
      %p107 = scmp.eq.s32.totalorder %s106, 0
      %s109 = sadd.s32 %s108, 1
      %s110 = scalar_select %p107, %s108, %s109
      %p113 = pneg %p107
      %p114 = scmp.eq.s32.totalorder %s21, 8
      %p115 = por %p113, %p114
      %p116 = scmp.ne.s32.totalorder %s108, %s111
      %p117 = scmp.eq.s32.totalorder %s21, 0
      %p118 = por %p116, %p117
      %p119 = scmp.ne.s32.totalorder %s108, %s111
      %p120 = scmp.eq.s32.totalorder %s26, 8
      %p121 = por %p119, %p120
      %p122 = scmp.ne.s32.totalorder %s111, %s112
      %p123 = scmp.eq.s32.totalorder %s26, 0
      %p124 = por %p122, %p123
      %p125 = scmp.ne.s32.totalorder %s111, %s112
      %p126 = scmp.eq.s32.totalorder %s27, 8
      %p127 = por %p125, %p126
      %p129 = scmp.ne.s32.totalorder %s112, %s128
      %p130 = scmp.eq.s32.totalorder %s27, 0
      %p131 = por %p129, %p130
      %p132 = scmp.le.s32.totalorder 1, %s21
      %p133 = scmp.lt.s32.totalorder %s21, 10
      %p134 = pnand %p132, %p133
      %p135 = pneg %p134
      // Predicated region
      $region9: #{model.1} parent=5 // pred_check
        _
      $region10: #{model.1} parent=5 // pred_check_branch
        %137 = sbr.rel (%p134) target = $region12
      $region11: #{model.1} parent=5 // pred_region
        %s138 = ssub.s32 %s21, 1
        // Predicated region
        $region13: #{model.1} parent=11 // pred_check
          %p139 = pneg %p70
        $region14: #{model.1} parent=11 // pred_check_branch
          %141 = sbr.rel (%p139) target = $region16
        $region15: #{model.1} parent=11 // pred_region
          _
        $region16: #{model.1} parent=11 // pred_fallthru
          _
      $region12: #{model.1} parent=5 // pred_fallthru
        _
      %p142 = scmp.lt.s32.totalorder %s21, 9
      // Predicated region
      $region17: #{model.1} parent=5 // pred_check
        %p143 = pneg %p142
      $region18: #{model.1} parent=5 // pred_check_branch
        %145 = sbr.rel (%p143) target = $region20
      $region19: #{model.1} parent=5 // pred_region
        // Predicated region
        $region21: #{model.1} parent=19 // pred_check
          %p146 = pneg %p43
        $region22: #{model.1} parent=19 // pred_check_branch
          %148 = sbr.rel (%p146) target = $region24
        $region23: #{model.1} parent=19 // pred_region
          %s149 = sld [smem:[#allocation3 + %s21]]
          %p150 = scmp.lt.s32.totalorder %s149, 2
          %s151 = scalar_select %p150, %s149, 2
          %s152 = smul.addr %s151, 48
          %s153 = smul.addr %s152, 8
          %s154 = scalar_lea.vmem %s2, %s153
          %s155 = sld [smem:[#allocation3 + %s21]]
        $region24: #{model.1} parent=19 // pred_fallthru
          _
        // Predicated region
        $region25: #{model.1} parent=19 // pred_check
          %p156 = pneg %p92
        $region26: #{model.1} parent=19 // pred_check_branch
          %158 = sbr.rel (%p156) target = $region28
        $region27: #{model.1} parent=19 // pred_region
          %s159 = sld [smem:[#allocation4 + %s21]]
          %p160 = scmp.lt.s32.totalorder %s159, 1
          %s161 = scalar_select %p160, %s159, 1
          %s162 = smul.addr %s161, 16
          %s163 = smul.addr %s162, 8
          %s164 = scalar_lea.vmem %s4, %s163
          %s165 = sld [smem:[#allocation4 + %s21]]
        $region28: #{model.1} parent=19 // pred_fallthru
          _
      $region20: #{model.1} parent=5 // pred_fallthru
        _
      %p166 = scmp.le.s32.totalorder 1, %s21
      %p167 = scmp.lt.s32.totalorder %s21, 10
      %p168 = pnand %p166, %p167
      %p169 = pneg %p168
      // Predicated region
      $region29: #{model.1} parent=5 // pred_check
        _
      $region30: #{model.1} parent=5 // pred_check_branch
        %171 = sbr.rel (%p168) target = $region32
      $region31: #{model.1} parent=5 // pred_region
        %s172 = ssub.s32 %s21, 1
        %s173 = sld [smem:[#allocation3 + %s26]]
        %p174 = scmp.lt.s32.totalorder %s173, 2
        %s175 = scalar_select %p174, %s173, 2
        %s176 = smul.addr %s175, 48
        %s177 = smul.addr %s176, 8
        %s178 = scalar_lea.vmem %s2, %s177
        %p179 = pneg %p49
        %p180 = pneg %p46
        %p181 = pneg %p70
        %p182 = pneg %p67
        %s183 = sld [smem:[#allocation4 + %s26]]
        %p184 = scmp.lt.s32.totalorder %s183, 1
        %s185 = scalar_select %p184, %s183, 1
        %s186 = smul.addr %s185, 16
        %s187 = smul.addr %s186, 8
        %s188 = scalar_lea.vmem %s4, %s187
        %p189 = pneg %p98
        %p190 = pneg %p95
        %p191 = pneg %p124
        %p192 = pneg %p121
        %s193 = sand.u32 %s111, 1
        %s194 = sand.u32 %s111, 1
        %s195 = smul.addr %s194, 128
        %s196 = scalar_lea.vmem [#allocation5], %s195
        %s197 = sld [smem:[#allocation3 + %s26]]
        %p198 = scmp.lt.s32.totalorder %s197, 2
        %s199 = scalar_select %p198, %s197, 2
        %s200 = smul.addr %s199, 48
        %s201 = smul.addr %s200, 8
        %s202 = scalar_lea.vmem %s2, %s201
        %s203 = sld [smem:[#allocation3 + %s26]]
        %s204 = sld [smem:[#allocation4 + %s26]]
        %p205 = scmp.lt.s32.totalorder %s204, 1
        %s206 = scalar_select %p205, %s204, 1
        %s207 = smul.addr %s206, 16
        %s208 = smul.addr %s207, 8
        %s209 = scalar_lea.vmem %s4, %s208
        %s210 = sld [smem:[#allocation4 + %s26]]
        %s211 = smul.u32 2, %s26
        %v212 = vld [vmem:[%s209] sm:$0xff]
        %v213 = vld [vmem:[%s209 + $0x8] sm:$0xff]
        %v214 = vld [vmem:[%s209 + $0x10] sm:$0xff]
        %v215 = vld [vmem:[%s209 + $0x18] sm:$0xff]
        %v216 = vld [vmem:[%s209 + $0x20] sm:$0xff]
        %v217 = vld [vmem:[%s209 + $0x28] sm:$0xff]
        %v218 = vld [vmem:[%s209 + $0x30] sm:$0xff]
        %v219 = vld [vmem:[%s209 + $0x38] sm:$0xff]
        %v220 = vld [vmem:[%s209 + $0x40] sm:$0xff]
        %v221 = vld [vmem:[%s209 + $0x48] sm:$0xff]
        %v222 = vld [vmem:[%s209 + $0x50] sm:$0xff]
        %v223 = vld [vmem:[%s209 + $0x58] sm:$0xff]
        %v224 = vld [vmem:[%s209 + $0x60] sm:$0xff]
        %v225 = vld [vmem:[%s209 + $0x68] sm:$0xff]
        %v226 = vld [vmem:[%s209 + $0x70] sm:$0xff]
        %v227 = vld [vmem:[%s209 + $0x78] sm:$0xff]
        %v228 = vld [vmem:[%s3] sm:$0xff]
        %v229 = vld [vmem:[%s3 + $0x8] sm:$0xff]
        %v230 = vld [vmem:[%s3 + $0x10] sm:$0xff]
        %v231 = vld [vmem:[%s3 + $0x18] sm:$0xff]
        %v232 = vld [vmem:[%s3 + $0x20] sm:$0xff]
        %v233 = vld [vmem:[%s3 + $0x28] sm:$0xff]
        %v234 = vld [vmem:[%s3 + $0x30] sm:$0xff]
        %v235 = vld [vmem:[%s3 + $0x38] sm:$0xff]
        %v236 = vld [vmem:[%s202] sm:$0xff]
        %v237 = vld [vmem:[%s202 + $0x8] sm:$0xff]
        %v238 = vld [vmem:[%s202 + $0x18] sm:$0xff]
        %v239 = vld [vmem:[%s202 + $0x20] sm:$0xff]
        %v240 = vld [vmem:[%s202 + $0x30] sm:$0xff]
        %v241 = vld [vmem:[%s202 + $0x38] sm:$0xff]
        %v242 = vld [vmem:[%s202 + $0x48] sm:$0xff]
        %v243 = vld [vmem:[%s202 + $0x50] sm:$0xff]
        %v244 = vld [vmem:[%s202 + $0x60] sm:$0xff]
        %v245 = vld [vmem:[%s202 + $0x68] sm:$0xff]
        %v246 = vld [vmem:[%s202 + $0x78] sm:$0xff]
        %v247 = vld [vmem:[%s202 + $0x80] sm:$0xff]
        %v248 = vld [vmem:[%s202 + $0x90] sm:$0xff]
        %v249 = vld [vmem:[%s202 + $0x98] sm:$0xff]
        %v250 = vld [vmem:[%s202 + $0xa8] sm:$0xff]
        %v251 = vld [vmem:[%s202 + $0xb0] sm:$0xff]
        %v252 = vld [vmem:[%s202 + $0xc0] sm:$0xff]
        %v253 = vld [vmem:[%s202 + $0xc8] sm:$0xff]
        %v254 = vld [vmem:[%s202 + $0xd8] sm:$0xff]
        %v255 = vld [vmem:[%s202 + $0xe0] sm:$0xff]
        %v256 = vld [vmem:[%s202 + $0xf0] sm:$0xff]
        %v257 = vld [vmem:[%s202 + $0xf8] sm:$0xff]
        %v258 = vld [vmem:[%s202 + $0x108] sm:$0xff]
        %v259 = vld [vmem:[%s202 + $0x110] sm:$0xff]
        %v260 = vld [vmem:[%s202 + $0x120] sm:$0xff]
        %v261 = vld [vmem:[%s202 + $0x128] sm:$0xff]
        %v262 = vld [vmem:[%s202 + $0x138] sm:$0xff]
        %v263 = vld [vmem:[%s202 + $0x140] sm:$0xff]
        %v264 = vld [vmem:[%s202 + $0x150] sm:$0xff]
        %v265 = vld [vmem:[%s202 + $0x158] sm:$0xff]
        %v266 = vld [vmem:[%s202 + $0x168] sm:$0xff]
        %v267 = vld [vmem:[%s202 + $0x170] sm:$0xff]
        %268 = vmatprep.subr.mxu0 %v237
        %269 = vmatpush1.msra.mxu0 %v236
        %270 = vmatprep.subr.mxu0 %v239
        %271 = vmatpush1.msra.mxu0 %v238
        %272 = vmatprep.subr.mxu0 %v241
        %273 = vmatpush1.msra.mxu0 %v240
        %274 = vmatprep.subr.mxu0 %v243
        %275 = vmatpush1.msra.mxu0 %v242
        %276 = vmatprep.subr.mxu0 %v245
        %277 = vmatpush1.msra.mxu0 %v244
        %278 = vmatprep.subr.mxu0 %v247
        %279 = vmatpush1.msra.mxu0 %v246
        %280 = vmatprep.subr.mxu0 %v249
        %281 = vmatpush1.msra.mxu0 %v248
        %282 = vmatprep.subr.mxu0 %v251
        %283 = vmatpush1.msra.mxu0 %v250
        %284 = vmatprep.subr.mxu0 %v253
        %285 = vmatpush1.msra.mxu0 %v252
        %286 = vmatprep.subr.mxu0 %v255
        %287 = vmatpush1.msra.mxu0 %v254
        %288 = vmatprep.subr.mxu0 %v257
        %289 = vmatpush1.msra.mxu0 %v256
        %290 = vmatprep.subr.mxu0 %v259
        %291 = vmatpush1.msra.mxu0 %v258
        %292 = vmatprep.subr.mxu0 %v261
        %293 = vmatpush1.msra.mxu0 %v260
        %294 = vmatprep.subr.mxu0 %v263
        %295 = vmatpush1.msra.mxu0 %v262
        %296 = vmatprep.subr.mxu0 %v265
        %297 = vmatpush1.msra.mxu0 %v264
        %298 = vmatprep.subr.mxu0 %v267
        %299 = vmatpush1.msra.mxu0 %v266
        %300 = vmatprep.subr.mxu0 0.0
        %301 = vmatpush1.msra.mxu0 0.0
        %302 = vmatprep.subr.mxu0 0.0
        %303 = vmatpush1.msra.mxu0 0.0
        %304 = vmatprep.subr.mxu0 0.0
        %305 = vmatpush1.msra.mxu0 0.0
        %306 = vmatprep.subr.mxu0 0.0
        %307 = vmatpush1.msra.mxu0 0.0
        %308 = vmatprep.subr.mxu0 0.0
        %309 = vmatpush1.msra.mxu0 0.0
        %310 = vmatprep.subr.mxu0 0.0
        %311 = vmatpush1.msra.mxu0 0.0
        %312 = vmatprep.subr.mxu0 0.0
        %313 = vmatpush1.msra.mxu0 0.0
        %314 = vmatprep.subr.mxu0 0.0
        %315 = vmatpush1.msra.mxu0 0.0
        %316 = vmatprep.subr.mxu0 0.0
        %317 = vmatpush1.msra.mxu0 0.0
        %318 = vmatprep.subr.mxu0 0.0
        %319 = vmatpush1.msra.mxu0 0.0
        %320 = vmatprep.subr.mxu0 0.0
        %321 = vmatpush1.msra.mxu0 0.0
        %322 = vmatprep.subr.mxu0 0.0
        %323 = vmatpush1.msra.mxu0 0.0
        %324 = vmatprep.subr.mxu0 0.0
        %325 = vmatpush1.msra.mxu0 0.0
        %326 = vmatprep.subr.mxu0 0.0
        %327 = vmatpush1.msra.mxu0 0.0
        %328 = vmatprep.subr.mxu0 0.0
        %329 = vmatpush1.msra.mxu0 0.0
        %330 = vmatprep.subr.mxu0 0.0
        %331 = vmatpush1.msra.mxu0 0.0
        %332 = vmatprep.mubr.f32.mxu0 0.0
        %333 = vmatmul.mubr.f32.gmra.mrb[0].mxu0 %v228
        %v334 = vpop.f32.mrb[0].mxu0
        %v335 = vadd.f32 0.0, %v334
        %v336 = vpop.f32.mrb[0].mxu0
        %v337 = vadd.f32 0.0, %v336
        %338 = vmatprep.mubr.f32.mxu0 0.0
        %339 = vmatmul.mubr.f32.gmra.mrb[0].mxu0 %v229
        %v340 = vpop.f32.mrb[0].mxu0
        %v341 = vadd.f32 0.0, %v340
        %v342 = vpop.f32.mrb[0].mxu0
        %v343 = vadd.f32 0.0, %v342
        %344 = vmatprep.mubr.f32.mxu0 0.0
        %345 = vmatmul.mubr.f32.gmra.mrb[0].mxu0 %v230
        %v346 = vpop.f32.mrb[0].mxu0
        %v347 = vadd.f32 0.0, %v346
        %v348 = vpop.f32.mrb[0].mxu0
        %v349 = vadd.f32 0.0, %v348
        %350 = vmatprep.mubr.f32.mxu0 0.0
        %351 = vmatmul.mubr.f32.gmra.mrb[0].mxu0 %v231
        %v352 = vpop.f32.mrb[0].mxu0
        %v353 = vadd.f32 0.0, %v352
        %v354 = vpop.f32.mrb[0].mxu0
        %v355 = vadd.f32 0.0, %v354
        %356 = vmatprep.mubr.f32.mxu0 0.0
        %357 = vmatmul.mubr.f32.gmra.mrb[0].mxu0 %v232
        %v358 = vpop.f32.mrb[0].mxu0
        %v359 = vadd.f32 0.0, %v358
        %v360 = vpop.f32.mrb[0].mxu0
        %v361 = vadd.f32 0.0, %v360
        %362 = vmatprep.mubr.f32.mxu0 0.0
        %363 = vmatmul.mubr.f32.gmra.mrb[0].mxu0 %v233
        %v364 = vpop.f32.mrb[0].mxu0
        %v365 = vadd.f32 0.0, %v364
        %v366 = vpop.f32.mrb[0].mxu0
        %v367 = vadd.f32 0.0, %v366
        %368 = vmatprep.mubr.f32.mxu0 0.0
        %369 = vmatmul.mubr.f32.gmra.mrb[0].mxu0 %v234
        %v370 = vpop.f32.mrb[0].mxu0
        %v371 = vadd.f32 0.0, %v370
        %v372 = vpop.f32.mrb[0].mxu0
        %v373 = vadd.f32 0.0, %v372
        %374 = vmatprep.mubr.f32.mxu0 0.0
        %375 = vmatmul.mubr.f32.gmra.mrb[0].mxu0 %v235
        %v376 = vpop.f32.mrb[0].mxu0
        %v377 = vadd.f32 0.0, %v376
        %v378 = vpop.f32.mrb[0].mxu0
        %v379 = vadd.f32 0.0, %v378
        %380 = vdwg.mxu0
        %v381 = vadd.f32 %v212, %v335
        %v382 = vadd.f32 %v213, %v337
        %v383 = vadd.f32 %v214, %v341
        %v384 = vadd.f32 %v215, %v343
        %v385 = vadd.f32 %v216, %v347
        %v386 = vadd.f32 %v217, %v349
        %v387 = vadd.f32 %v218, %v353
        %v388 = vadd.f32 %v219, %v355
        %v389 = vadd.f32 %v220, %v359
        %v390 = vadd.f32 %v221, %v361
        %v391 = vadd.f32 %v222, %v365
        %v392 = vadd.f32 %v223, %v367
        %v393 = vadd.f32 %v224, %v371
        %v394 = vadd.f32 %v225, %v373
        %v395 = vadd.f32 %v226, %v377
        %v396 = vadd.f32 %v227, %v379
        %s397 = scalar_lea.vmem %s3, 64
        %v398 = vld [vmem:[%s397] sm:$0xff]
        %v399 = vld [vmem:[%s397 + $0x8] sm:$0xff]
        %v400 = vld [vmem:[%s397 + $0x10] sm:$0xff]
        %v401 = vld [vmem:[%s397 + $0x18] sm:$0xff]
        %v402 = vld [vmem:[%s397 + $0x20] sm:$0xff]
        %v403 = vld [vmem:[%s397 + $0x28] sm:$0xff]
        %v404 = vld [vmem:[%s397 + $0x30] sm:$0xff]
        %v405 = vld [vmem:[%s397 + $0x38] sm:$0xff]
        %v406 = vld [vmem:[%s202] sm:$0xff]
        %v407 = vld [vmem:[%s202 + $0x8] sm:$0xff]
        %v408 = vld [vmem:[%s202 + $0x10] sm:$0xff]
        %v409 = vld [vmem:[%s202 + $0x18] sm:$0xff]
        %v410 = vld [vmem:[%s202 + $0x20] sm:$0xff]
        %v411 = vld [vmem:[%s202 + $0x28] sm:$0xff]
        %v412 = vld [vmem:[%s202 + $0x30] sm:$0xff]
        %v413 = vld [vmem:[%s202 + $0x38] sm:$0xff]
        %v414 = vld [vmem:[%s202 + $0x40] sm:$0xff]
        %v415 = vld [vmem:[%s202 + $0x48] sm:$0xff]
        %v416 = vld [vmem:[%s202 + $0x50] sm:$0xff]
        %v417 = vld [vmem:[%s202 + $0x58] sm:$0xff]
        %v418 = vld [vmem:[%s202 + $0x60] sm:$0xff]
        %v419 = vld [vmem:[%s202 + $0x68] sm:$0xff]
        %v420 = vld [vmem:[%s202 + $0x70] sm:$0xff]
        %v421 = vld [vmem:[%s202 + $0x78] sm:$0xff]
        %v422 = vld [vmem:[%s202 + $0x80] sm:$0xff]
        %v423 = vld [vmem:[%s202 + $0x88] sm:$0xff]
        %v424 = vld [vmem:[%s202 + $0x90] sm:$0xff]
        %v425 = vld [vmem:[%s202 + $0x98] sm:$0xff]
        %v426 = vld [vmem:[%s202 + $0xa0] sm:$0xff]
        %v427 = vld [vmem:[%s202 + $0xa8] sm:$0xff]
        %v428 = vld [vmem:[%s202 + $0xb0] sm:$0xff]
        %v429 = vld [vmem:[%s202 + $0xb8] sm:$0xff]
        %v430 = vld [vmem:[%s202 + $0xc0] sm:$0xff]
        %v431 = vld [vmem:[%s202 + $0xc8] sm:$0xff]
        %v432 = vld [vmem:[%s202 + $0xd0] sm:$0xff]
        %v433 = vld [vmem:[%s202 + $0xd8] sm:$0xff]
        %v434 = vld [vmem:[%s202 + $0xe0] sm:$0xff]
        %v435 = vld [vmem:[%s202 + $0xe8] sm:$0xff]
        %v436 = vld [vmem:[%s202 + $0xf0] sm:$0xff]
        %v437 = vld [vmem:[%s202 + $0xf8] sm:$0xff]
        %v438 = vld [vmem:[%s202 + $0x100] sm:$0xff]
        %v439 = vld [vmem:[%s202 + $0x108] sm:$0xff]
        %v440 = vld [vmem:[%s202 + $0x110] sm:$0xff]
        %v441 = vld [vmem:[%s202 + $0x118] sm:$0xff]
        %v442 = vld [vmem:[%s202 + $0x120] sm:$0xff]
        %v443 = vld [vmem:[%s202 + $0x128] sm:$0xff]
        %v444 = vld [vmem:[%s202 + $0x130] sm:$0xff]
        %v445 = vld [vmem:[%s202 + $0x138] sm:$0xff]
        %v446 = vld [vmem:[%s202 + $0x140] sm:$0xff]
        %v447 = vld [vmem:[%s202 + $0x148] sm:$0xff]
        %v448 = vld [vmem:[%s202 + $0x150] sm:$0xff]
        %v449 = vld [vmem:[%s202 + $0x158] sm:$0xff]
        %v450 = vld [vmem:[%s202 + $0x160] sm:$0xff]
        %v451 = vld [vmem:[%s202 + $0x168] sm:$0xff]
        %v452 = vld [vmem:[%s202 + $0x170] sm:$0xff]
        %v453 = vld [vmem:[%s202 + $0x178] sm:$0xff]
        %502 = vrot.lane.b32.xlu0 %v406, 127
        %v503 = vpop.permute.xlu0 %502
        %504 = vrot.lane.b32.xlu0 %v407, 127
        %v505 = vpop.permute.xlu0 %504
        %506 = vrot.lane.b32.xlu0 %v408, 127
        %v507 = vpop.permute.xlu0 %506
        %508 = vrot.lane.b32.xlu0 %v409, 127
        %v509 = vpop.permute.xlu0 %508
        %510 = vrot.lane.b32.xlu0 %v410, 127
        %v511 = vpop.permute.xlu0 %510
        %512 = vrot.lane.b32.xlu0 %v411, 127
        %v513 = vpop.permute.xlu0 %512
        %514 = vrot.lane.b32.xlu0 %v412, 127
        %v515 = vpop.permute.xlu0 %514
        %516 = vrot.lane.b32.xlu0 %v413, 127
        %v517 = vpop.permute.xlu0 %516
        %518 = vrot.lane.b32.xlu0 %v414, 127
        %v519 = vpop.permute.xlu0 %518
        %520 = vrot.lane.b32.xlu0 %v415, 127
        %v521 = vpop.permute.xlu0 %520
        %522 = vrot.lane.b32.xlu0 %v416, 127
        %v523 = vpop.permute.xlu0 %522
        %524 = vrot.lane.b32.xlu0 %v417, 127
        %v525 = vpop.permute.xlu0 %524
        %526 = vrot.lane.b32.xlu0 %v418, 127
        %v527 = vpop.permute.xlu0 %526
        %528 = vrot.lane.b32.xlu0 %v419, 127
        %v529 = vpop.permute.xlu0 %528
        %530 = vrot.lane.b32.xlu0 %v420, 127
        %v531 = vpop.permute.xlu0 %530
        %532 = vrot.lane.b32.xlu0 %v421, 127
        %v533 = vpop.permute.xlu0 %532
        %534 = vrot.lane.b32.xlu0 %v422, 127
        %v535 = vpop.permute.xlu0 %534
        %536 = vrot.lane.b32.xlu0 %v423, 127
        %v537 = vpop.permute.xlu0 %536
        %538 = vrot.lane.b32.xlu0 %v424, 127
        %v539 = vpop.permute.xlu0 %538
        %540 = vrot.lane.b32.xlu0 %v425, 127
        %v541 = vpop.permute.xlu0 %540
        %542 = vrot.lane.b32.xlu0 %v426, 127
        %v543 = vpop.permute.xlu0 %542
        %544 = vrot.lane.b32.xlu0 %v427, 127
        %v545 = vpop.permute.xlu0 %544
        %546 = vrot.lane.b32.xlu0 %v428, 127
        %v547 = vpop.permute.xlu0 %546
        %548 = vrot.lane.b32.xlu0 %v429, 127
        %v549 = vpop.permute.xlu0 %548
        %550 = vrot.lane.b32.xlu0 %v430, 127
        %v551 = vpop.permute.xlu0 %550
        %552 = vrot.lane.b32.xlu0 %v431, 127
        %v553 = vpop.permute.xlu0 %552
        %554 = vrot.lane.b32.xlu0 %v432, 127
        %v555 = vpop.permute.xlu0 %554
        %556 = vrot.lane.b32.xlu0 %v433, 127
        %v557 = vpop.permute.xlu0 %556
        %558 = vrot.lane.b32.xlu0 %v434, 127
        %v559 = vpop.permute.xlu0 %558
        %560 = vrot.lane.b32.xlu0 %v435, 127
        %v561 = vpop.permute.xlu0 %560
        %562 = vrot.lane.b32.xlu0 %v436, 127
        %v563 = vpop.permute.xlu0 %562
        %564 = vrot.lane.b32.xlu0 %v437, 127
        %v565 = vpop.permute.xlu0 %564
        %566 = vrot.lane.b32.xlu0 %v438, 127
        %v567 = vpop.permute.xlu0 %566
        %568 = vrot.lane.b32.xlu0 %v439, 127
        %v569 = vpop.permute.xlu0 %568
        %570 = vrot.lane.b32.xlu0 %v440, 127
        %v571 = vpop.permute.xlu0 %570
        %572 = vrot.lane.b32.xlu0 %v441, 127
        %v573 = vpop.permute.xlu0 %572
        %574 = vrot.lane.b32.xlu0 %v442, 127
        %v575 = vpop.permute.xlu0 %574
        %576 = vrot.lane.b32.xlu0 %v443, 127
        %v577 = vpop.permute.xlu0 %576
        %578 = vrot.lane.b32.xlu0 %v444, 127
        %v579 = vpop.permute.xlu0 %578
        %580 = vrot.lane.b32.xlu0 %v445, 127
        %v581 = vpop.permute.xlu0 %580
        %582 = vrot.lane.b32.xlu0 %v446, 127
        %v583 = vpop.permute.xlu0 %582
        %584 = vrot.lane.b32.xlu0 %v447, 127
        %v585 = vpop.permute.xlu0 %584
        %586 = vrot.lane.b32.xlu0 %v448, 127
        %v587 = vpop.permute.xlu0 %586
        %588 = vrot.lane.b32.xlu0 %v449, 127
        %v589 = vpop.permute.xlu0 %588
        %590 = vrot.lane.b32.xlu0 %v450, 127
        %v591 = vpop.permute.xlu0 %590
        %592 = vrot.lane.b32.xlu0 %v451, 127
        %v593 = vpop.permute.xlu0 %592
        %594 = vrot.lane.b32.xlu0 %v452, 127
        %v595 = vpop.permute.xlu0 %594
        %596 = vrot.lane.b32.xlu0 %v453, 127
        %v597 = vpop.permute.xlu0 %596
        %vm598 = vcmask 1039360
        %v599 = vsel %vm598, %v503, %v505
        %v600 = vsel %vm598, %v505, %v507
        %v601 = vsel %vm598, %v509, %v511
        %v602 = vsel %vm598, %v511, %v513
        %v603 = vsel %vm598, %v515, %v517
        %v604 = vsel %vm598, %v517, %v519
        %v605 = vsel %vm598, %v521, %v523
        %v606 = vsel %vm598, %v523, %v525
        %v607 = vsel %vm598, %v527, %v529
        %v608 = vsel %vm598, %v529, %v531
        %v609 = vsel %vm598, %v533, %v535
        %v610 = vsel %vm598, %v535, %v537
        %v611 = vsel %vm598, %v539, %v541
        %v612 = vsel %vm598, %v541, %v543
        %v613 = vsel %vm598, %v545, %v547
        %v614 = vsel %vm598, %v547, %v549
        %v615 = vsel %vm598, %v551, %v553
        %v616 = vsel %vm598, %v553, %v555
        %v617 = vsel %vm598, %v557, %v559
        %v618 = vsel %vm598, %v559, %v561
        %v619 = vsel %vm598, %v563, %v565
        %v620 = vsel %vm598, %v565, %v567
        %v621 = vsel %vm598, %v569, %v571
        %v622 = vsel %vm598, %v571, %v573
        %v623 = vsel %vm598, %v575, %v577
        %v624 = vsel %vm598, %v577, %v579
        %v625 = vsel %vm598, %v581, %v583
        %v626 = vsel %vm598, %v583, %v585
        %v627 = vsel %vm598, %v587, %v589
        %v628 = vsel %vm598, %v589, %v591
        %v629 = vsel %vm598, %v593, %v595
        %v630 = vsel %vm598, %v595, %v597
        %663 = vmatprep.subr.mxu0 %v600
        %664 = vmatpush1.msra.mxu0 %v599
        %665 = vmatprep.subr.mxu0 %v602
        %666 = vmatpush1.msra.mxu0 %v601
        %667 = vmatprep.subr.mxu0 %v604
        %668 = vmatpush1.msra.mxu0 %v603
        %669 = vmatprep.subr.mxu0 %v606
        %670 = vmatpush1.msra.mxu0 %v605
        %671 = vmatprep.subr.mxu0 %v608
        %672 = vmatpush1.msra.mxu0 %v607
        %673 = vmatprep.subr.mxu0 %v610
        %674 = vmatpush1.msra.mxu0 %v609
        %675 = vmatprep.subr.mxu0 %v612
        %676 = vmatpush1.msra.mxu0 %v611
        %677 = vmatprep.subr.mxu0 %v614
        %678 = vmatpush1.msra.mxu0 %v613
        %679 = vmatprep.subr.mxu0 %v616
        %680 = vmatpush1.msra.mxu0 %v615
        %681 = vmatprep.subr.mxu0 %v618
        %682 = vmatpush1.msra.mxu0 %v617
        %683 = vmatprep.subr.mxu0 %v620
        %684 = vmatpush1.msra.mxu0 %v619
        %685 = vmatprep.subr.mxu0 %v622
        %686 = vmatpush1.msra.mxu0 %v621
        %687 = vmatprep.subr.mxu0 %v624
        %688 = vmatpush1.msra.mxu0 %v623
        %689 = vmatprep.subr.mxu0 %v626
        %690 = vmatpush1.msra.mxu0 %v625
        %691 = vmatprep.subr.mxu0 %v628
        %692 = vmatpush1.msra.mxu0 %v627
        %693 = vmatprep.subr.mxu0 %v630
        %694 = vmatpush1.msra.mxu0 %v629
        %695 = vmatprep.subr.mxu0 0.0
        %696 = vmatpush1.msra.mxu0 0.0
        %697 = vmatprep.subr.mxu0 0.0
        %698 = vmatpush1.msra.mxu0 0.0
        %699 = vmatprep.subr.mxu0 0.0
        %700 = vmatpush1.msra.mxu0 0.0
        %701 = vmatprep.subr.mxu0 0.0
        %702 = vmatpush1.msra.mxu0 0.0
        %703 = vmatprep.subr.mxu0 0.0
        %704 = vmatpush1.msra.mxu0 0.0
        %705 = vmatprep.subr.mxu0 0.0
        %706 = vmatpush1.msra.mxu0 0.0
        %707 = vmatprep.subr.mxu0 0.0
        %708 = vmatpush1.msra.mxu0 0.0
        %709 = vmatprep.subr.mxu0 0.0
        %710 = vmatpush1.msra.mxu0 0.0
        %711 = vmatprep.subr.mxu0 0.0
        %712 = vmatpush1.msra.mxu0 0.0
        %713 = vmatprep.subr.mxu0 0.0
        %714 = vmatpush1.msra.mxu0 0.0
        %715 = vmatprep.subr.mxu0 0.0
        %716 = vmatpush1.msra.mxu0 0.0
        %717 = vmatprep.subr.mxu0 0.0
        %718 = vmatpush1.msra.mxu0 0.0
        %719 = vmatprep.subr.mxu0 0.0
        %720 = vmatpush1.msra.mxu0 0.0
        %721 = vmatprep.subr.mxu0 0.0
        %722 = vmatpush1.msra.mxu0 0.0
        %723 = vmatprep.subr.mxu0 0.0
        %724 = vmatpush1.msra.mxu0 0.0
        %725 = vmatprep.subr.mxu0 0.0
        %726 = vmatpush1.msra.mxu0 0.0
        %727 = vmatprep.mubr.f32.mxu0 0.0
        %728 = vmatmul.mubr.f32.gmra.mrb[0].mxu0 %v398
        %v729 = vpop.f32.mrb[0].mxu0
        %v730 = vadd.f32 0.0, %v729
        %v731 = vpop.f32.mrb[0].mxu0
        %v732 = vadd.f32 0.0, %v731
        %733 = vmatprep.mubr.f32.mxu0 0.0
        %734 = vmatmul.mubr.f32.gmra.mrb[0].mxu0 %v399
        %v735 = vpop.f32.mrb[0].mxu0
        %v736 = vadd.f32 0.0, %v735
        %v737 = vpop.f32.mrb[0].mxu0
        %v738 = vadd.f32 0.0, %v737
        %739 = vmatprep.mubr.f32.mxu0 0.0
        %740 = vmatmul.mubr.f32.gmra.mrb[0].mxu0 %v400
        %v741 = vpop.f32.mrb[0].mxu0
        %v742 = vadd.f32 0.0, %v741
        %v743 = vpop.f32.mrb[0].mxu0
        %v744 = vadd.f32 0.0, %v743
        %745 = vmatprep.mubr.f32.mxu0 0.0
        %746 = vmatmul.mubr.f32.gmra.mrb[0].mxu0 %v401
        %v747 = vpop.f32.mrb[0].mxu0
        %v748 = vadd.f32 0.0, %v747
        %v749 = vpop.f32.mrb[0].mxu0
        %v750 = vadd.f32 0.0, %v749
        %751 = vmatprep.mubr.f32.mxu0 0.0
        %752 = vmatmul.mubr.f32.gmra.mrb[0].mxu0 %v402
        %v753 = vpop.f32.mrb[0].mxu0
        %v754 = vadd.f32 0.0, %v753
        %v755 = vpop.f32.mrb[0].mxu0
        %v756 = vadd.f32 0.0, %v755
        %757 = vmatprep.mubr.f32.mxu0 0.0
        %758 = vmatmul.mubr.f32.gmra.mrb[0].mxu0 %v403
        %v759 = vpop.f32.mrb[0].mxu0
        %v760 = vadd.f32 0.0, %v759
        %v761 = vpop.f32.mrb[0].mxu0
        %v762 = vadd.f32 0.0, %v761
        %763 = vmatprep.mubr.f32.mxu0 0.0
        %764 = vmatmul.mubr.f32.gmra.mrb[0].mxu0 %v404
        %v765 = vpop.f32.mrb[0].mxu0
        %v766 = vadd.f32 0.0, %v765
        %v767 = vpop.f32.mrb[0].mxu0
        %v768 = vadd.f32 0.0, %v767
        %769 = vmatprep.mubr.f32.mxu0 0.0
        %770 = vmatmul.mubr.f32.gmra.mrb[0].mxu0 %v405
        %v771 = vpop.f32.mrb[0].mxu0
        %v772 = vadd.f32 0.0, %v771
        %v773 = vpop.f32.mrb[0].mxu0
        %v774 = vadd.f32 0.0, %v773
        %775 = vdwg.mxu0
        %v776 = vadd.f32 %v381, %v730
        %v777 = vadd.f32 %v382, %v732
        %v778 = vadd.f32 %v383, %v736
        %v779 = vadd.f32 %v384, %v738
        %v780 = vadd.f32 %v385, %v742
        %v781 = vadd.f32 %v386, %v744
        %v782 = vadd.f32 %v387, %v748
        %v783 = vadd.f32 %v388, %v750
        %v784 = vadd.f32 %v389, %v754
        %v785 = vadd.f32 %v390, %v756
        %v786 = vadd.f32 %v391, %v760
        %v787 = vadd.f32 %v392, %v762
        %v788 = vadd.f32 %v393, %v766
        %v789 = vadd.f32 %v394, %v768
        %v790 = vadd.f32 %v395, %v772
        %v791 = vadd.f32 %v396, %v774
        %s792 = scalar_lea.vmem %s3, 128
        %v793 = vld [vmem:[%s792] sm:$0xff]
        %v794 = vld [vmem:[%s792 + $0x8] sm:$0xff]
        %v795 = vld [vmem:[%s792 + $0x10] sm:$0xff]
        %v796 = vld [vmem:[%s792 + $0x18] sm:$0xff]
        %v797 = vld [vmem:[%s792 + $0x20] sm:$0xff]
        %v798 = vld [vmem:[%s792 + $0x28] sm:$0xff]
        %v799 = vld [vmem:[%s792 + $0x30] sm:$0xff]
        %v800 = vld [vmem:[%s792 + $0x38] sm:$0xff]
        %801 = vrot.lane.b32.xlu0 %v406, 126
        %v802 = vpop.permute.xlu0 %801
        %803 = vrot.lane.b32.xlu0 %v407, 126
        %v804 = vpop.permute.xlu0 %803
        %805 = vrot.lane.b32.xlu0 %v408, 126
        %v806 = vpop.permute.xlu0 %805
        %807 = vrot.lane.b32.xlu0 %v409, 126
        %v808 = vpop.permute.xlu0 %807
        %809 = vrot.lane.b32.xlu0 %v410, 126
        %v810 = vpop.permute.xlu0 %809
        %811 = vrot.lane.b32.xlu0 %v411, 126
        %v812 = vpop.permute.xlu0 %811
        %813 = vrot.lane.b32.xlu0 %v412, 126
        %v814 = vpop.permute.xlu0 %813
        %815 = vrot.lane.b32.xlu0 %v413, 126
        %v816 = vpop.permute.xlu0 %815
        %817 = vrot.lane.b32.xlu0 %v414, 126
        %v818 = vpop.permute.xlu0 %817
        %819 = vrot.lane.b32.xlu0 %v415, 126
        %v820 = vpop.permute.xlu0 %819
        %821 = vrot.lane.b32.xlu0 %v416, 126
        %v822 = vpop.permute.xlu0 %821
        %823 = vrot.lane.b32.xlu0 %v417, 126
        %v824 = vpop.permute.xlu0 %823
        %825 = vrot.lane.b32.xlu0 %v418, 126
        %v826 = vpop.permute.xlu0 %825
        %827 = vrot.lane.b32.xlu0 %v419, 126
        %v828 = vpop.permute.xlu0 %827
        %829 = vrot.lane.b32.xlu0 %v420, 126
        %v830 = vpop.permute.xlu0 %829
        %831 = vrot.lane.b32.xlu0 %v421, 126
        %v832 = vpop.permute.xlu0 %831
        %833 = vrot.lane.b32.xlu0 %v422, 126
        %v834 = vpop.permute.xlu0 %833
        %835 = vrot.lane.b32.xlu0 %v423, 126
        %v836 = vpop.permute.xlu0 %835
        %837 = vrot.lane.b32.xlu0 %v424, 126
        %v838 = vpop.permute.xlu0 %837
        %839 = vrot.lane.b32.xlu0 %v425, 126
        %v840 = vpop.permute.xlu0 %839
        %841 = vrot.lane.b32.xlu0 %v426, 126
        %v842 = vpop.permute.xlu0 %841
        %843 = vrot.lane.b32.xlu0 %v427, 126
        %v844 = vpop.permute.xlu0 %843
        %845 = vrot.lane.b32.xlu0 %v428, 126
        %v846 = vpop.permute.xlu0 %845
        %847 = vrot.lane.b32.xlu0 %v429, 126
        %v848 = vpop.permute.xlu0 %847
        %849 = vrot.lane.b32.xlu0 %v430, 126
        %v850 = vpop.permute.xlu0 %849
        %851 = vrot.lane.b32.xlu0 %v431, 126
        %v852 = vpop.permute.xlu0 %851
        %853 = vrot.lane.b32.xlu0 %v432, 126
        %v854 = vpop.permute.xlu0 %853
        %855 = vrot.lane.b32.xlu0 %v433, 126
        %v856 = vpop.permute.xlu0 %855
        %857 = vrot.lane.b32.xlu0 %v434, 126
        %v858 = vpop.permute.xlu0 %857
        %859 = vrot.lane.b32.xlu0 %v435, 126
        %v860 = vpop.permute.xlu0 %859
        %861 = vrot.lane.b32.xlu0 %v436, 126
        %v862 = vpop.permute.xlu0 %861
        %863 = vrot.lane.b32.xlu0 %v437, 126
        %v864 = vpop.permute.xlu0 %863
        %865 = vrot.lane.b32.xlu0 %v438, 126
        %v866 = vpop.permute.xlu0 %865
        %867 = vrot.lane.b32.xlu0 %v439, 126
        %v868 = vpop.permute.xlu0 %867
        %869 = vrot.lane.b32.xlu0 %v440, 126
        %v870 = vpop.permute.xlu0 %869
        %871 = vrot.lane.b32.xlu0 %v441, 126
        %v872 = vpop.permute.xlu0 %871
        %873 = vrot.lane.b32.xlu0 %v442, 126
        %v874 = vpop.permute.xlu0 %873
        %875 = vrot.lane.b32.xlu0 %v443, 126
        %v876 = vpop.permute.xlu0 %875
        %877 = vrot.lane.b32.xlu0 %v444, 126
        %v878 = vpop.permute.xlu0 %877
        %879 = vrot.lane.b32.xlu0 %v445, 126
        %v880 = vpop.permute.xlu0 %879
        %881 = vrot.lane.b32.xlu0 %v446, 126
        %v882 = vpop.permute.xlu0 %881
        %883 = vrot.lane.b32.xlu0 %v447, 126
        %v884 = vpop.permute.xlu0 %883
        %885 = vrot.lane.b32.xlu0 %v448, 126
        %v886 = vpop.permute.xlu0 %885
        %887 = vrot.lane.b32.xlu0 %v449, 126
        %v888 = vpop.permute.xlu0 %887
        %889 = vrot.lane.b32.xlu0 %v450, 126
        %v890 = vpop.permute.xlu0 %889
        %891 = vrot.lane.b32.xlu0 %v451, 126
        %v892 = vpop.permute.xlu0 %891
        %893 = vrot.lane.b32.xlu0 %v452, 126
        %v894 = vpop.permute.xlu0 %893
        %895 = vrot.lane.b32.xlu0 %v453, 126
        %v896 = vpop.permute.xlu0 %895
        %vm897 = vcmask 1031168
        %v898 = vsel %vm897, %v802, %v804
        %v899 = vsel %vm897, %v804, %v806
        %v900 = vsel %vm897, %v808, %v810
        %v901 = vsel %vm897, %v810, %v812
        %v902 = vsel %vm897, %v814, %v816
        %v903 = vsel %vm897, %v816, %v818
        %v904 = vsel %vm897, %v820, %v822
        %v905 = vsel %vm897, %v822, %v824
        %v906 = vsel %vm897, %v826, %v828
        %v907 = vsel %vm897, %v828, %v830
        %v908 = vsel %vm897, %v832, %v834
        %v909 = vsel %vm897, %v834, %v836
        %v910 = vsel %vm897, %v838, %v840
        %v911 = vsel %vm897, %v840, %v842
        %v912 = vsel %vm897, %v844, %v846
        %v913 = vsel %vm897, %v846, %v848
        %v914 = vsel %vm897, %v850, %v852
        %v915 = vsel %vm897, %v852, %v854
        %v916 = vsel %vm897, %v856, %v858
        %v917 = vsel %vm897, %v858, %v860
        %v918 = vsel %vm897, %v862, %v864
        %v919 = vsel %vm897, %v864, %v866
        %v920 = vsel %vm897, %v868, %v870
        %v921 = vsel %vm897, %v870, %v872
        %v922 = vsel %vm897, %v874, %v876
        %v923 = vsel %vm897, %v876, %v878
        %v924 = vsel %vm897, %v880, %v882
        %v925 = vsel %vm897, %v882, %v884
        %v926 = vsel %vm897, %v886, %v888
        %v927 = vsel %vm897, %v888, %v890
        %v928 = vsel %vm897, %v892, %v894
        %v929 = vsel %vm897, %v894, %v896
        %962 = vmatprep.subr.mxu0 %v899
        %963 = vmatpush1.msra.mxu0 %v898
        %964 = vmatprep.subr.mxu0 %v901
        %965 = vmatpush1.msra.mxu0 %v900
        %966 = vmatprep.subr.mxu0 %v903
        %967 = vmatpush1.msra.mxu0 %v902
        %968 = vmatprep.subr.mxu0 %v905
        %969 = vmatpush1.msra.mxu0 %v904
        %970 = vmatprep.subr.mxu0 %v907
        %971 = vmatpush1.msra.mxu0 %v906
        %972 = vmatprep.subr.mxu0 %v909
        %973 = vmatpush1.msra.mxu0 %v908
        %974 = vmatprep.subr.mxu0 %v911
        %975 = vmatpush1.msra.mxu0 %v910
        %976 = vmatprep.subr.mxu0 %v913
        %977 = vmatpush1.msra.mxu0 %v912
        %978 = vmatprep.subr.mxu0 %v915
        %979 = vmatpush1.msra.mxu0 %v914
        %980 = vmatprep.subr.mxu0 %v917
        %981 = vmatpush1.msra.mxu0 %v916
        %982 = vmatprep.subr.mxu0 %v919
        %983 = vmatpush1.msra.mxu0 %v918
        %984 = vmatprep.subr.mxu0 %v921
        %985 = vmatpush1.msra.mxu0 %v920
        %986 = vmatprep.subr.mxu0 %v923
        %987 = vmatpush1.msra.mxu0 %v922
        %988 = vmatprep.subr.mxu0 %v925
        %989 = vmatpush1.msra.mxu0 %v924
        %990 = vmatprep.subr.mxu0 %v927
        %991 = vmatpush1.msra.mxu0 %v926
        %992 = vmatprep.subr.mxu0 %v929
        %993 = vmatpush1.msra.mxu0 %v928
        %994 = vmatprep.subr.mxu0 0.0
        %995 = vmatpush1.msra.mxu0 0.0
        %996 = vmatprep.subr.mxu0 0.0
        %997 = vmatpush1.msra.mxu0 0.0
        %998 = vmatprep.subr.mxu0 0.0
        %999 = vmatpush1.msra.mxu0 0.0
        %1000 = vmatprep.subr.mxu0 0.0
        %1001 = vmatpush1.msra.mxu0 0.0
        %1002 = vmatprep.subr.mxu0 0.0
        %1003 = vmatpush1.msra.mxu0 0.0
        %1004 = vmatprep.subr.mxu0 0.0
        %1005 = vmatpush1.msra.mxu0 0.0
        %1006 = vmatprep.subr.mxu0 0.0
        %1007 = vmatpush1.msra.mxu0 0.0
        %1008 = vmatprep.subr.mxu0 0.0
        %1009 = vmatpush1.msra.mxu0 0.0
        %1010 = vmatprep.subr.mxu0 0.0
        %1011 = vmatpush1.msra.mxu0 0.0
        %1012 = vmatprep.subr.mxu0 0.0
        %1013 = vmatpush1.msra.mxu0 0.0
        %1014 = vmatprep.subr.mxu0 0.0
        %1015 = vmatpush1.msra.mxu0 0.0
        %1016 = vmatprep.subr.mxu0 0.0
        %1017 = vmatpush1.msra.mxu0 0.0
        %1018 = vmatprep.subr.mxu0 0.0
        %1019 = vmatpush1.msra.mxu0 0.0
        %1020 = vmatprep.subr.mxu0 0.0
        %1021 = vmatpush1.msra.mxu0 0.0
        %1022 = vmatprep.subr.mxu0 0.0
        %1023 = vmatpush1.msra.mxu0 0.0
        %1024 = vmatprep.subr.mxu0 0.0
        %1025 = vmatpush1.msra.mxu0 0.0
        %1026 = vmatprep.mubr.f32.mxu0 0.0
        %1027 = vmatmul.mubr.f32.gmra.mrb[0].mxu0 %v793
        %v1028 = vpop.f32.mrb[0].mxu0
        %v1029 = vadd.f32 0.0, %v1028
        %v1030 = vpop.f32.mrb[0].mxu0
        %v1031 = vadd.f32 0.0, %v1030
        %1032 = vmatprep.mubr.f32.mxu0 0.0
        %1033 = vmatmul.mubr.f32.gmra.mrb[0].mxu0 %v794
        %v1034 = vpop.f32.mrb[0].mxu0
        %v1035 = vadd.f32 0.0, %v1034
        %v1036 = vpop.f32.mrb[0].mxu0
        %v1037 = vadd.f32 0.0, %v1036
        %1038 = vmatprep.mubr.f32.mxu0 0.0
        %1039 = vmatmul.mubr.f32.gmra.mrb[0].mxu0 %v795
        %v1040 = vpop.f32.mrb[0].mxu0
        %v1041 = vadd.f32 0.0, %v1040
        %v1042 = vpop.f32.mrb[0].mxu0
        %v1043 = vadd.f32 0.0, %v1042
        %1044 = vmatprep.mubr.f32.mxu0 0.0
        %1045 = vmatmul.mubr.f32.gmra.mrb[0].mxu0 %v796
        %v1046 = vpop.f32.mrb[0].mxu0
        %v1047 = vadd.f32 0.0, %v1046
        %v1048 = vpop.f32.mrb[0].mxu0
        %v1049 = vadd.f32 0.0, %v1048
        %1050 = vmatprep.mubr.f32.mxu0 0.0
        %1051 = vmatmul.mubr.f32.gmra.mrb[0].mxu0 %v797
        %v1052 = vpop.f32.mrb[0].mxu0
        %v1053 = vadd.f32 0.0, %v1052
        %v1054 = vpop.f32.mrb[0].mxu0
        %v1055 = vadd.f32 0.0, %v1054
        %1056 = vmatprep.mubr.f32.mxu0 0.0
        %1057 = vmatmul.mubr.f32.gmra.mrb[0].mxu0 %v798
        %v1058 = vpop.f32.mrb[0].mxu0
        %v1059 = vadd.f32 0.0, %v1058
        %v1060 = vpop.f32.mrb[0].mxu0
        %v1061 = vadd.f32 0.0, %v1060
        %1062 = vmatprep.mubr.f32.mxu0 0.0
        %1063 = vmatmul.mubr.f32.gmra.mrb[0].mxu0 %v799
        %v1064 = vpop.f32.mrb[0].mxu0
        %v1065 = vadd.f32 0.0, %v1064
        %v1066 = vpop.f32.mrb[0].mxu0
        %v1067 = vadd.f32 0.0, %v1066
        %1068 = vmatprep.mubr.f32.mxu0 0.0
        %1069 = vmatmul.mubr.f32.gmra.mrb[0].mxu0 %v800
        %v1070 = vpop.f32.mrb[0].mxu0
        %v1071 = vadd.f32 0.0, %v1070
        %v1072 = vpop.f32.mrb[0].mxu0
        %v1073 = vadd.f32 0.0, %v1072
        %1074 = vdwg.mxu0
        %v1075 = vadd.f32 %v776, %v1029
        %v1076 = vadd.f32 %v777, %v1031
        %v1077 = vadd.f32 %v778, %v1035
        %v1078 = vadd.f32 %v779, %v1037
        %v1079 = vadd.f32 %v780, %v1041
        %v1080 = vadd.f32 %v781, %v1043
        %v1081 = vadd.f32 %v782, %v1047
        %v1082 = vadd.f32 %v783, %v1049
        %v1083 = vadd.f32 %v784, %v1053
        %v1084 = vadd.f32 %v785, %v1055
        %v1085 = vadd.f32 %v786, %v1059
        %v1086 = vadd.f32 %v787, %v1061
        %v1087 = vadd.f32 %v788, %v1065
        %v1088 = vadd.f32 %v789, %v1067
        %v1089 = vadd.f32 %v790, %v1071
        %v1090 = vadd.f32 %v791, %v1073
        %s1091 = scalar_lea.vmem %s3, 192
        %v1092 = vld [vmem:[%s1091] sm:$0xff]
        %v1093 = vld [vmem:[%s1091 + $0x8] sm:$0xff]
        %v1094 = vld [vmem:[%s1091 + $0x10] sm:$0xff]
        %v1095 = vld [vmem:[%s1091 + $0x18] sm:$0xff]
        %v1096 = vld [vmem:[%s1091 + $0x20] sm:$0xff]
        %v1097 = vld [vmem:[%s1091 + $0x28] sm:$0xff]
        %v1098 = vld [vmem:[%s1091 + $0x30] sm:$0xff]
        %v1099 = vld [vmem:[%s1091 + $0x38] sm:$0xff]
        %1100 = vrot.lane.b32.xlu0 %v406, 125
        %v1101 = vpop.permute.xlu0 %1100
        %1102 = vrot.lane.b32.xlu0 %v407, 125
        %v1103 = vpop.permute.xlu0 %1102
        %1104 = vrot.lane.b32.xlu0 %v408, 125
        %v1105 = vpop.permute.xlu0 %1104
        %1106 = vrot.lane.b32.xlu0 %v409, 125
        %v1107 = vpop.permute.xlu0 %1106
        %1108 = vrot.lane.b32.xlu0 %v410, 125
        %v1109 = vpop.permute.xlu0 %1108
        %1110 = vrot.lane.b32.xlu0 %v411, 125
        %v1111 = vpop.permute.xlu0 %1110
        %1112 = vrot.lane.b32.xlu0 %v412, 125
        %v1113 = vpop.permute.xlu0 %1112
        %1114 = vrot.lane.b32.xlu0 %v413, 125
        %v1115 = vpop.permute.xlu0 %1114
        %1116 = vrot.lane.b32.xlu0 %v414, 125
        %v1117 = vpop.permute.xlu0 %1116
        %1118 = vrot.lane.b32.xlu0 %v415, 125
        %v1119 = vpop.permute.xlu0 %1118
        %1120 = vrot.lane.b32.xlu0 %v416, 125
        %v1121 = vpop.permute.xlu0 %1120
        %1122 = vrot.lane.b32.xlu0 %v417, 125
        %v1123 = vpop.permute.xlu0 %1122
        %1124 = vrot.lane.b32.xlu0 %v418, 125
        %v1125 = vpop.permute.xlu0 %1124
        %1126 = vrot.lane.b32.xlu0 %v419, 125
        %v1127 = vpop.permute.xlu0 %1126
        %1128 = vrot.lane.b32.xlu0 %v420, 125
        %v1129 = vpop.permute.xlu0 %1128
        %1130 = vrot.lane.b32.xlu0 %v421, 125
        %v1131 = vpop.permute.xlu0 %1130
        %1132 = vrot.lane.b32.xlu0 %v422, 125
        %v1133 = vpop.permute.xlu0 %1132
        %1134 = vrot.lane.b32.xlu0 %v423, 125
        %v1135 = vpop.permute.xlu0 %1134
        %1136 = vrot.lane.b32.xlu0 %v424, 125
        %v1137 = vpop.permute.xlu0 %1136
        %1138 = vrot.lane.b32.xlu0 %v425, 125
        %v1139 = vpop.permute.xlu0 %1138
        %1140 = vrot.lane.b32.xlu0 %v426, 125
        %v1141 = vpop.permute.xlu0 %1140
        %1142 = vrot.lane.b32.xlu0 %v427, 125
        %v1143 = vpop.permute.xlu0 %1142
        %1144 = vrot.lane.b32.xlu0 %v428, 125
        %v1145 = vpop.permute.xlu0 %1144
        %1146 = vrot.lane.b32.xlu0 %v429, 125
        %v1147 = vpop.permute.xlu0 %1146
        %1148 = vrot.lane.b32.xlu0 %v430, 125
        %v1149 = vpop.permute.xlu0 %1148
        %1150 = vrot.lane.b32.xlu0 %v431, 125
        %v1151 = vpop.permute.xlu0 %1150
        %1152 = vrot.lane.b32.xlu0 %v432, 125
        %v1153 = vpop.permute.xlu0 %1152
        %1154 = vrot.lane.b32.xlu0 %v433, 125
        %v1155 = vpop.permute.xlu0 %1154
        %1156 = vrot.lane.b32.xlu0 %v434, 125
        %v1157 = vpop.permute.xlu0 %1156
        %1158 = vrot.lane.b32.xlu0 %v435, 125
        %v1159 = vpop.permute.xlu0 %1158
        %1160 = vrot.lane.b32.xlu0 %v436, 125
        %v1161 = vpop.permute.xlu0 %1160
        %1162 = vrot.lane.b32.xlu0 %v437, 125
        %v1163 = vpop.permute.xlu0 %1162
        %1164 = vrot.lane.b32.xlu0 %v438, 125
        %v1165 = vpop.permute.xlu0 %1164
        %1166 = vrot.lane.b32.xlu0 %v439, 125
        %v1167 = vpop.permute.xlu0 %1166
        %1168 = vrot.lane.b32.xlu0 %v440, 125
        %v1169 = vpop.permute.xlu0 %1168
        %1170 = vrot.lane.b32.xlu0 %v441, 125
        %v1171 = vpop.permute.xlu0 %1170
        %1172 = vrot.lane.b32.xlu0 %v442, 125
        %v1173 = vpop.permute.xlu0 %1172
        %1174 = vrot.lane.b32.xlu0 %v443, 125
        %v1175 = vpop.permute.xlu0 %1174
        %1176 = vrot.lane.b32.xlu0 %v444, 125
        %v1177 = vpop.permute.xlu0 %1176
        %1178 = vrot.lane.b32.xlu0 %v445, 125
        %v1179 = vpop.permute.xlu0 %1178
        %1180 = vrot.lane.b32.xlu0 %v446, 125
        %v1181 = vpop.permute.xlu0 %1180
        %1182 = vrot.lane.b32.xlu0 %v447, 125
        %v1183 = vpop.permute.xlu0 %1182
        %1184 = vrot.lane.b32.xlu0 %v448, 125
        %v1185 = vpop.permute.xlu0 %1184
        %1186 = vrot.lane.b32.xlu0 %v449, 125
        %v1187 = vpop.permute.xlu0 %1186
        %1188 = vrot.lane.b32.xlu0 %v450, 125
        %v1189 = vpop.permute.xlu0 %1188
        %1190 = vrot.lane.b32.xlu0 %v451, 125
        %v1191 = vpop.permute.xlu0 %1190
        %1192 = vrot.lane.b32.xlu0 %v452, 125
        %v1193 = vpop.permute.xlu0 %1192
        %1194 = vrot.lane.b32.xlu0 %v453, 125
        %v1195 = vpop.permute.xlu0 %1194
        %vm1196 = vcmask 1022976
        %v1197 = vsel %vm1196, %v1101, %v1103
        %v1198 = vsel %vm1196, %v1103, %v1105
        %v1199 = vsel %vm1196, %v1107, %v1109
        %v1200 = vsel %vm1196, %v1109, %v1111
        %v1201 = vsel %vm1196, %v1113, %v1115
        %v1202 = vsel %vm1196, %v1115, %v1117
        %v1203 = vsel %vm1196, %v1119, %v1121
        %v1204 = vsel %vm1196, %v1121, %v1123
        %v1205 = vsel %vm1196, %v1125, %v1127
        %v1206 = vsel %vm1196, %v1127, %v1129
        %v1207 = vsel %vm1196, %v1131, %v1133
        %v1208 = vsel %vm1196, %v1133, %v1135
        %v1209 = vsel %vm1196, %v1137, %v1139
        %v1210 = vsel %vm1196, %v1139, %v1141
        %v1211 = vsel %vm1196, %v1143, %v1145
        %v1212 = vsel %vm1196, %v1145, %v1147
        %v1213 = vsel %vm1196, %v1149, %v1151
        %v1214 = vsel %vm1196, %v1151, %v1153
        %v1215 = vsel %vm1196, %v1155, %v1157
        %v1216 = vsel %vm1196, %v1157, %v1159
        %v1217 = vsel %vm1196, %v1161, %v1163
        %v1218 = vsel %vm1196, %v1163, %v1165
        %v1219 = vsel %vm1196, %v1167, %v1169
        %v1220 = vsel %vm1196, %v1169, %v1171
        %v1221 = vsel %vm1196, %v1173, %v1175
        %v1222 = vsel %vm1196, %v1175, %v1177
        %v1223 = vsel %vm1196, %v1179, %v1181
        %v1224 = vsel %vm1196, %v1181, %v1183
        %v1225 = vsel %vm1196, %v1185, %v1187
        %v1226 = vsel %vm1196, %v1187, %v1189
        %v1227 = vsel %vm1196, %v1191, %v1193
        %v1228 = vsel %vm1196, %v1193, %v1195
        %1261 = vmatprep.subr.mxu0 %v1198
        %1262 = vmatpush1.msra.mxu0 %v1197
        %1263 = vmatprep.subr.mxu0 %v1200
        %1264 = vmatpush1.msra.mxu0 %v1199
        %1265 = vmatprep.subr.mxu0 %v1202
        %1266 = vmatpush1.msra.mxu0 %v1201
        %1267 = vmatprep.subr.mxu0 %v1204
        %1268 = vmatpush1.msra.mxu0 %v1203
        %1269 = vmatprep.subr.mxu0 %v1206
        %1270 = vmatpush1.msra.mxu0 %v1205
        %1271 = vmatprep.subr.mxu0 %v1208
        %1272 = vmatpush1.msra.mxu0 %v1207
        %1273 = vmatprep.subr.mxu0 %v1210
        %1274 = vmatpush1.msra.mxu0 %v1209
        %1275 = vmatprep.subr.mxu0 %v1212
        %1276 = vmatpush1.msra.mxu0 %v1211
        %1277 = vmatprep.subr.mxu0 %v1214
        %1278 = vmatpush1.msra.mxu0 %v1213
        %1279 = vmatprep.subr.mxu0 %v1216
        %1280 = vmatpush1.msra.mxu0 %v1215
        %1281 = vmatprep.subr.mxu0 %v1218
        %1282 = vmatpush1.msra.mxu0 %v1217
        %1283 = vmatprep.subr.mxu0 %v1220
        %1284 = vmatpush1.msra.mxu0 %v1219
        %1285 = vmatprep.subr.mxu0 %v1222
        %1286 = vmatpush1.msra.mxu0 %v1221
        %1287 = vmatprep.subr.mxu0 %v1224
        %1288 = vmatpush1.msra.mxu0 %v1223
        %1289 = vmatprep.subr.mxu0 %v1226
        %1290 = vmatpush1.msra.mxu0 %v1225
        %1291 = vmatprep.subr.mxu0 %v1228
        %1292 = vmatpush1.msra.mxu0 %v1227
        %1293 = vmatprep.subr.mxu0 0.0
        %1294 = vmatpush1.msra.mxu0 0.0
        %1295 = vmatprep.subr.mxu0 0.0
        %1296 = vmatpush1.msra.mxu0 0.0
        %1297 = vmatprep.subr.mxu0 0.0
        %1298 = vmatpush1.msra.mxu0 0.0
        %1299 = vmatprep.subr.mxu0 0.0
        %1300 = vmatpush1.msra.mxu0 0.0
        %1301 = vmatprep.subr.mxu0 0.0
        %1302 = vmatpush1.msra.mxu0 0.0
        %1303 = vmatprep.subr.mxu0 0.0
        %1304 = vmatpush1.msra.mxu0 0.0
        %1305 = vmatprep.subr.mxu0 0.0
        %1306 = vmatpush1.msra.mxu0 0.0
        %1307 = vmatprep.subr.mxu0 0.0
        %1308 = vmatpush1.msra.mxu0 0.0
        %1309 = vmatprep.subr.mxu0 0.0
        %1310 = vmatpush1.msra.mxu0 0.0
        %1311 = vmatprep.subr.mxu0 0.0
        %1312 = vmatpush1.msra.mxu0 0.0
        %1313 = vmatprep.subr.mxu0 0.0
        %1314 = vmatpush1.msra.mxu0 0.0
        %1315 = vmatprep.subr.mxu0 0.0
        %1316 = vmatpush1.msra.mxu0 0.0
        %1317 = vmatprep.subr.mxu0 0.0
        %1318 = vmatpush1.msra.mxu0 0.0
        %1319 = vmatprep.subr.mxu0 0.0
        %1320 = vmatpush1.msra.mxu0 0.0
        %1321 = vmatprep.subr.mxu0 0.0
        %1322 = vmatpush1.msra.mxu0 0.0
        %1323 = vmatprep.subr.mxu0 0.0
        %1324 = vmatpush1.msra.mxu0 0.0
        %1325 = vmatprep.mubr.f32.mxu0 0.0
        %1326 = vmatmul.mubr.f32.gmra.mrb[0].mxu0 %v1092
        %v1327 = vpop.f32.mrb[0].mxu0
        %v1328 = vadd.f32 0.0, %v1327
        %v1329 = vpop.f32.mrb[0].mxu0
        %v1330 = vadd.f32 0.0, %v1329
        %1331 = vmatprep.mubr.f32.mxu0 0.0
        %1332 = vmatmul.mubr.f32.gmra.mrb[0].mxu0 %v1093
        %v1333 = vpop.f32.mrb[0].mxu0
        %v1334 = vadd.f32 0.0, %v1333
        %v1335 = vpop.f32.mrb[0].mxu0
        %v1336 = vadd.f32 0.0, %v1335
        %1337 = vmatprep.mubr.f32.mxu0 0.0
        %1338 = vmatmul.mubr.f32.gmra.mrb[0].mxu0 %v1094
        %v1339 = vpop.f32.mrb[0].mxu0
        %v1340 = vadd.f32 0.0, %v1339
        %v1341 = vpop.f32.mrb[0].mxu0
        %v1342 = vadd.f32 0.0, %v1341
        %1343 = vmatprep.mubr.f32.mxu0 0.0
        %1344 = vmatmul.mubr.f32.gmra.mrb[0].mxu0 %v1095
        %v1345 = vpop.f32.mrb[0].mxu0
        %v1346 = vadd.f32 0.0, %v1345
        %v1347 = vpop.f32.mrb[0].mxu0
        %v1348 = vadd.f32 0.0, %v1347
        %1349 = vmatprep.mubr.f32.mxu0 0.0
        %1350 = vmatmul.mubr.f32.gmra.mrb[0].mxu0 %v1096
        %v1351 = vpop.f32.mrb[0].mxu0
        %v1352 = vadd.f32 0.0, %v1351
        %v1353 = vpop.f32.mrb[0].mxu0
        %v1354 = vadd.f32 0.0, %v1353
        %1355 = vmatprep.mubr.f32.mxu0 0.0
        %1356 = vmatmul.mubr.f32.gmra.mrb[0].mxu0 %v1097
        %v1357 = vpop.f32.mrb[0].mxu0
        %v1358 = vadd.f32 0.0, %v1357
        %v1359 = vpop.f32.mrb[0].mxu0
        %v1360 = vadd.f32 0.0, %v1359
        %1361 = vmatprep.mubr.f32.mxu0 0.0
        %1362 = vmatmul.mubr.f32.gmra.mrb[0].mxu0 %v1098
        %v1363 = vpop.f32.mrb[0].mxu0
        %v1364 = vadd.f32 0.0, %v1363
        %v1365 = vpop.f32.mrb[0].mxu0
        %v1366 = vadd.f32 0.0, %v1365
        %1367 = vmatprep.mubr.f32.mxu0 0.0
        %1368 = vmatmul.mubr.f32.gmra.mrb[0].mxu0 %v1099
        %v1369 = vpop.f32.mrb[0].mxu0
        %v1370 = vadd.f32 0.0, %v1369
        %v1371 = vpop.f32.mrb[0].mxu0
        %v1372 = vadd.f32 0.0, %v1371
        %1373 = vdwg.mxu0
        %v1374 = vadd.f32 %v1075, %v1328
        %v1375 = vadd.f32 %v1076, %v1330
        %v1376 = vadd.f32 %v1077, %v1334
        %v1377 = vadd.f32 %v1078, %v1336
        %v1378 = vadd.f32 %v1079, %v1340
        %v1379 = vadd.f32 %v1080, %v1342
        %v1380 = vadd.f32 %v1081, %v1346
        %v1381 = vadd.f32 %v1082, %v1348
        %v1382 = vadd.f32 %v1083, %v1352
        %v1383 = vadd.f32 %v1084, %v1354
        %v1384 = vadd.f32 %v1085, %v1358
        %v1385 = vadd.f32 %v1086, %v1360
        %v1386 = vadd.f32 %v1087, %v1364
        %v1387 = vadd.f32 %v1088, %v1366
        %v1388 = vadd.f32 %v1089, %v1370
        %v1389 = vadd.f32 %v1090, %v1372
        %s1390 = scalar_lea.vmem %s3, 256
        %v1391 = vld [vmem:[%s1390] sm:$0xff]
        %v1392 = vld [vmem:[%s1390 + $0x8] sm:$0xff]
        %v1393 = vld [vmem:[%s1390 + $0x10] sm:$0xff]
        %v1394 = vld [vmem:[%s1390 + $0x18] sm:$0xff]
        %v1395 = vld [vmem:[%s1390 + $0x20] sm:$0xff]
        %v1396 = vld [vmem:[%s1390 + $0x28] sm:$0xff]
        %v1397 = vld [vmem:[%s1390 + $0x30] sm:$0xff]
        %v1398 = vld [vmem:[%s1390 + $0x38] sm:$0xff]
        %1399 = vrot.lane.b32.xlu0 %v406, 124
        %v1400 = vpop.permute.xlu0 %1399
        %1401 = vrot.lane.b32.xlu0 %v407, 124
        %v1402 = vpop.permute.xlu0 %1401
        %1403 = vrot.lane.b32.xlu0 %v408, 124
        %v1404 = vpop.permute.xlu0 %1403
        %1405 = vrot.lane.b32.xlu0 %v409, 124
        %v1406 = vpop.permute.xlu0 %1405
        %1407 = vrot.lane.b32.xlu0 %v410, 124
        %v1408 = vpop.permute.xlu0 %1407
        %1409 = vrot.lane.b32.xlu0 %v411, 124
        %v1410 = vpop.permute.xlu0 %1409
        %1411 = vrot.lane.b32.xlu0 %v412, 124
        %v1412 = vpop.permute.xlu0 %1411
        %1413 = vrot.lane.b32.xlu0 %v413, 124
        %v1414 = vpop.permute.xlu0 %1413
        %1415 = vrot.lane.b32.xlu0 %v414, 124
        %v1416 = vpop.permute.xlu0 %1415
        %1417 = vrot.lane.b32.xlu0 %v415, 124
        %v1418 = vpop.permute.xlu0 %1417
        %1419 = vrot.lane.b32.xlu0 %v416, 124
        %v1420 = vpop.permute.xlu0 %1419
        %1421 = vrot.lane.b32.xlu0 %v417, 124
        %v1422 = vpop.permute.xlu0 %1421
        %1423 = vrot.lane.b32.xlu0 %v418, 124
        %v1424 = vpop.permute.xlu0 %1423
        %1425 = vrot.lane.b32.xlu0 %v419, 124
        %v1426 = vpop.permute.xlu0 %1425
        %1427 = vrot.lane.b32.xlu0 %v420, 124
        %v1428 = vpop.permute.xlu0 %1427
        %1429 = vrot.lane.b32.xlu0 %v421, 124
        %v1430 = vpop.permute.xlu0 %1429
        %1431 = vrot.lane.b32.xlu0 %v422, 124
        %v1432 = vpop.permute.xlu0 %1431
        %1433 = vrot.lane.b32.xlu0 %v423, 124
        %v1434 = vpop.permute.xlu0 %1433
        %1435 = vrot.lane.b32.xlu0 %v424, 124
        %v1436 = vpop.permute.xlu0 %1435
        %1437 = vrot.lane.b32.xlu0 %v425, 124
        %v1438 = vpop.permute.xlu0 %1437
        %1439 = vrot.lane.b32.xlu0 %v426, 124
        %v1440 = vpop.permute.xlu0 %1439
        %1441 = vrot.lane.b32.xlu0 %v427, 124
        %v1442 = vpop.permute.xlu0 %1441
        %1443 = vrot.lane.b32.xlu0 %v428, 124
        %v1444 = vpop.permute.xlu0 %1443
        %1445 = vrot.lane.b32.xlu0 %v429, 124
        %v1446 = vpop.permute.xlu0 %1445
        %1447 = vrot.lane.b32.xlu0 %v430, 124
        %v1448 = vpop.permute.xlu0 %1447
        %1449 = vrot.lane.b32.xlu0 %v431, 124
        %v1450 = vpop.permute.xlu0 %1449
        %1451 = vrot.lane.b32.xlu0 %v432, 124
        %v1452 = vpop.permute.xlu0 %1451
        %1453 = vrot.lane.b32.xlu0 %v433, 124
        %v1454 = vpop.permute.xlu0 %1453
        %1455 = vrot.lane.b32.xlu0 %v434, 124
        %v1456 = vpop.permute.xlu0 %1455
        %1457 = vrot.lane.b32.xlu0 %v435, 124
        %v1458 = vpop.permute.xlu0 %1457
        %1459 = vrot.lane.b32.xlu0 %v436, 124
        %v1460 = vpop.permute.xlu0 %1459
        %1461 = vrot.lane.b32.xlu0 %v437, 124
        %v1462 = vpop.permute.xlu0 %1461
        %1463 = vrot.lane.b32.xlu0 %v438, 124
        %v1464 = vpop.permute.xlu0 %1463
        %1465 = vrot.lane.b32.xlu0 %v439, 124
        %v1466 = vpop.permute.xlu0 %1465
        %1467 = vrot.lane.b32.xlu0 %v440, 124
        %v1468 = vpop.permute.xlu0 %1467
        %1469 = vrot.lane.b32.xlu0 %v441, 124
        %v1470 = vpop.permute.xlu0 %1469
        %1471 = vrot.lane.b32.xlu0 %v442, 124
        %v1472 = vpop.permute.xlu0 %1471
        %1473 = vrot.lane.b32.xlu0 %v443, 124
        %v1474 = vpop.permute.xlu0 %1473
        %1475 = vrot.lane.b32.xlu0 %v444, 124
        %v1476 = vpop.permute.xlu0 %1475
        %1477 = vrot.lane.b32.xlu0 %v445, 124
        %v1478 = vpop.permute.xlu0 %1477
        %1479 = vrot.lane.b32.xlu0 %v446, 124
        %v1480 = vpop.permute.xlu0 %1479
        %1481 = vrot.lane.b32.xlu0 %v447, 124
        %v1482 = vpop.permute.xlu0 %1481
        %1483 = vrot.lane.b32.xlu0 %v448, 124
        %v1484 = vpop.permute.xlu0 %1483
        %1485 = vrot.lane.b32.xlu0 %v449, 124
        %v1486 = vpop.permute.xlu0 %1485
        %1487 = vrot.lane.b32.xlu0 %v450, 124
        %v1488 = vpop.permute.xlu0 %1487
        %1489 = vrot.lane.b32.xlu0 %v451, 124
        %v1490 = vpop.permute.xlu0 %1489
        %1491 = vrot.lane.b32.xlu0 %v452, 124
        %v1492 = vpop.permute.xlu0 %1491
        %1493 = vrot.lane.b32.xlu0 %v453, 124
        %v1494 = vpop.permute.xlu0 %1493
        %vm1495 = vcmask 1014784
        %v1496 = vsel %vm1495, %v1400, %v1402
        %v1497 = vsel %vm1495, %v1402, %v1404
        %v1498 = vsel %vm1495, %v1406, %v1408
        %v1499 = vsel %vm1495, %v1408, %v1410
        %v1500 = vsel %vm1495, %v1412, %v1414
        %v1501 = vsel %vm1495, %v1414, %v1416
        %v1502 = vsel %vm1495, %v1418, %v1420
        %v1503 = vsel %vm1495, %v1420, %v1422
        %v1504 = vsel %vm1495, %v1424, %v1426
        %v1505 = vsel %vm1495, %v1426, %v1428
        %v1506 = vsel %vm1495, %v1430, %v1432
        %v1507 = vsel %vm1495, %v1432, %v1434
        %v1508 = vsel %vm1495, %v1436, %v1438
        %v1509 = vsel %vm1495, %v1438, %v1440
        %v1510 = vsel %vm1495, %v1442, %v1444
        %v1511 = vsel %vm1495, %v1444, %v1446
        %v1512 = vsel %vm1495, %v1448, %v1450
        %v1513 = vsel %vm1495, %v1450, %v1452
        %v1514 = vsel %vm1495, %v1454, %v1456
        %v1515 = vsel %vm1495, %v1456, %v1458
        %v1516 = vsel %vm1495, %v1460, %v1462
        %v1517 = vsel %vm1495, %v1462, %v1464
        %v1518 = vsel %vm1495, %v1466, %v1468
        %v1519 = vsel %vm1495, %v1468, %v1470
        %v1520 = vsel %vm1495, %v1472, %v1474
        %v1521 = vsel %vm1495, %v1474, %v1476
        %v1522 = vsel %vm1495, %v1478, %v1480
        %v1523 = vsel %vm1495, %v1480, %v1482
        %v1524 = vsel %vm1495, %v1484, %v1486
        %v1525 = vsel %vm1495, %v1486, %v1488
        %v1526 = vsel %vm1495, %v1490, %v1492
        %v1527 = vsel %vm1495, %v1492, %v1494
        %1560 = vmatprep.subr.mxu0 %v1497
        %1561 = vmatpush1.msra.mxu0 %v1496
        %1562 = vmatprep.subr.mxu0 %v1499
        %1563 = vmatpush1.msra.mxu0 %v1498
        %1564 = vmatprep.subr.mxu0 %v1501
        %1565 = vmatpush1.msra.mxu0 %v1500
        %1566 = vmatprep.subr.mxu0 %v1503
        %1567 = vmatpush1.msra.mxu0 %v1502
        %1568 = vmatprep.subr.mxu0 %v1505
        %1569 = vmatpush1.msra.mxu0 %v1504
        %1570 = vmatprep.subr.mxu0 %v1507
        %1571 = vmatpush1.msra.mxu0 %v1506
        %1572 = vmatprep.subr.mxu0 %v1509
        %1573 = vmatpush1.msra.mxu0 %v1508
        %1574 = vmatprep.subr.mxu0 %v1511
        %1575 = vmatpush1.msra.mxu0 %v1510
        %1576 = vmatprep.subr.mxu0 %v1513
        %1577 = vmatpush1.msra.mxu0 %v1512
        %1578 = vmatprep.subr.mxu0 %v1515
        %1579 = vmatpush1.msra.mxu0 %v1514
        %1580 = vmatprep.subr.mxu0 %v1517
        %1581 = vmatpush1.msra.mxu0 %v1516
        %1582 = vmatprep.subr.mxu0 %v1519
        %1583 = vmatpush1.msra.mxu0 %v1518
        %1584 = vmatprep.subr.mxu0 %v1521
        %1585 = vmatpush1.msra.mxu0 %v1520
        %1586 = vmatprep.subr.mxu0 %v1523
        %1587 = vmatpush1.msra.mxu0 %v1522
        %1588 = vmatprep.subr.mxu0 %v1525
        %1589 = vmatpush1.msra.mxu0 %v1524
        %1590 = vmatprep.subr.mxu0 %v1527
        %1591 = vmatpush1.msra.mxu0 %v1526
        %1592 = vmatprep.subr.mxu0 0.0
        %1593 = vmatpush1.msra.mxu0 0.0
        %1594 = vmatprep.subr.mxu0 0.0
        %1595 = vmatpush1.msra.mxu0 0.0
        %1596 = vmatprep.subr.mxu0 0.0
        %1597 = vmatpush1.msra.mxu0 0.0
        %1598 = vmatprep.subr.mxu0 0.0
        %1599 = vmatpush1.msra.mxu0 0.0
        %1600 = vmatprep.subr.mxu0 0.0
        %1601 = vmatpush1.msra.mxu0 0.0
        %1602 = vmatprep.subr.mxu0 0.0
        %1603 = vmatpush1.msra.mxu0 0.0
        %1604 = vmatprep.subr.mxu0 0.0
        %1605 = vmatpush1.msra.mxu0 0.0
        %1606 = vmatprep.subr.mxu0 0.0
        %1607 = vmatpush1.msra.mxu0 0.0
        %1608 = vmatprep.subr.mxu0 0.0
        %1609 = vmatpush1.msra.mxu0 0.0
        %1610 = vmatprep.subr.mxu0 0.0
        %1611 = vmatpush1.msra.mxu0 0.0
        %1612 = vmatprep.subr.mxu0 0.0
        %1613 = vmatpush1.msra.mxu0 0.0
        %1614 = vmatprep.subr.mxu0 0.0
        %1615 = vmatpush1.msra.mxu0 0.0
        %1616 = vmatprep.subr.mxu0 0.0
        %1617 = vmatpush1.msra.mxu0 0.0
        %1618 = vmatprep.subr.mxu0 0.0
        %1619 = vmatpush1.msra.mxu0 0.0
        %1620 = vmatprep.subr.mxu0 0.0
        %1621 = vmatpush1.msra.mxu0 0.0
        %1622 = vmatprep.subr.mxu0 0.0
        %1623 = vmatpush1.msra.mxu0 0.0
        %1624 = vmatprep.mubr.f32.mxu0 0.0
        %1625 = vmatmul.mubr.f32.gmra.mrb[0].mxu0 %v1391
        %v1626 = vpop.f32.mrb[0].mxu0
        %v1627 = vadd.f32 0.0, %v1626
        %v1628 = vpop.f32.mrb[0].mxu0
        %v1629 = vadd.f32 0.0, %v1628
        %1630 = vmatprep.mubr.f32.mxu0 0.0
        %1631 = vmatmul.mubr.f32.gmra.mrb[0].mxu0 %v1392
        %v1632 = vpop.f32.mrb[0].mxu0
        %v1633 = vadd.f32 0.0, %v1632
        %v1634 = vpop.f32.mrb[0].mxu0
        %v1635 = vadd.f32 0.0, %v1634
        %1636 = vmatprep.mubr.f32.mxu0 0.0
        %1637 = vmatmul.mubr.f32.gmra.mrb[0].mxu0 %v1393
        %v1638 = vpop.f32.mrb[0].mxu0
        %v1639 = vadd.f32 0.0, %v1638
        %v1640 = vpop.f32.mrb[0].mxu0
        %v1641 = vadd.f32 0.0, %v1640
        %1642 = vmatprep.mubr.f32.mxu0 0.0
        %1643 = vmatmul.mubr.f32.gmra.mrb[0].mxu0 %v1394
        %v1644 = vpop.f32.mrb[0].mxu0
        %v1645 = vadd.f32 0.0, %v1644
        %v1646 = vpop.f32.mrb[0].mxu0
        %v1647 = vadd.f32 0.0, %v1646
        %1648 = vmatprep.mubr.f32.mxu0 0.0
        %1649 = vmatmul.mubr.f32.gmra.mrb[0].mxu0 %v1395
        %v1650 = vpop.f32.mrb[0].mxu0
        %v1651 = vadd.f32 0.0, %v1650
        %v1652 = vpop.f32.mrb[0].mxu0
        %v1653 = vadd.f32 0.0, %v1652
        %1654 = vmatprep.mubr.f32.mxu0 0.0
        %1655 = vmatmul.mubr.f32.gmra.mrb[0].mxu0 %v1396
        %v1656 = vpop.f32.mrb[0].mxu0
        %v1657 = vadd.f32 0.0, %v1656
        %v1658 = vpop.f32.mrb[0].mxu0
        %v1659 = vadd.f32 0.0, %v1658
        %1660 = vmatprep.mubr.f32.mxu0 0.0
        %1661 = vmatmul.mubr.f32.gmra.mrb[0].mxu0 %v1397
        %v1662 = vpop.f32.mrb[0].mxu0
        %v1663 = vadd.f32 0.0, %v1662
        %v1664 = vpop.f32.mrb[0].mxu0
        %v1665 = vadd.f32 0.0, %v1664
        %1666 = vmatprep.mubr.f32.mxu0 0.0
        %1667 = vmatmul.mubr.f32.gmra.mrb[0].mxu0 %v1398
        %v1668 = vpop.f32.mrb[0].mxu0
        %v1669 = vadd.f32 0.0, %v1668
        %v1670 = vpop.f32.mrb[0].mxu0
        %v1671 = vadd.f32 0.0, %v1670
        %1672 = vdwg.mxu0
        %v1673 = vadd.f32 %v1374, %v1627
        %v1674 = vadd.f32 %v1375, %v1629
        %v1675 = vadd.f32 %v1376, %v1633
        %v1676 = vadd.f32 %v1377, %v1635
        %v1677 = vadd.f32 %v1378, %v1639
        %v1678 = vadd.f32 %v1379, %v1641
        %v1679 = vadd.f32 %v1380, %v1645
        %v1680 = vadd.f32 %v1381, %v1647
        %v1681 = vadd.f32 %v1382, %v1651
        %v1682 = vadd.f32 %v1383, %v1653
        %v1683 = vadd.f32 %v1384, %v1657
        %v1684 = vadd.f32 %v1385, %v1659
        %v1685 = vadd.f32 %v1386, %v1663
        %v1686 = vadd.f32 %v1387, %v1665
        %v1687 = vadd.f32 %v1388, %v1669
        %v1688 = vadd.f32 %v1389, %v1671
        %s1689 = scalar_lea.vmem %s3, 320
        %v1690 = vld [vmem:[%s1689] sm:$0xff]
        %v1691 = vld [vmem:[%s1689 + $0x8] sm:$0xff]
        %v1692 = vld [vmem:[%s1689 + $0x10] sm:$0xff]
        %v1693 = vld [vmem:[%s1689 + $0x18] sm:$0xff]
        %v1694 = vld [vmem:[%s1689 + $0x20] sm:$0xff]
        %v1695 = vld [vmem:[%s1689 + $0x28] sm:$0xff]
        %v1696 = vld [vmem:[%s1689 + $0x30] sm:$0xff]
        %v1697 = vld [vmem:[%s1689 + $0x38] sm:$0xff]
        %1698 = vrot.lane.b32.xlu0 %v406, 123
        %v1699 = vpop.permute.xlu0 %1698
        %1700 = vrot.lane.b32.xlu0 %v407, 123
        %v1701 = vpop.permute.xlu0 %1700
        %1702 = vrot.lane.b32.xlu0 %v408, 123
        %v1703 = vpop.permute.xlu0 %1702
        %1704 = vrot.lane.b32.xlu0 %v409, 123
        %v1705 = vpop.permute.xlu0 %1704
        %1706 = vrot.lane.b32.xlu0 %v410, 123
        %v1707 = vpop.permute.xlu0 %1706
        %1708 = vrot.lane.b32.xlu0 %v411, 123
        %v1709 = vpop.permute.xlu0 %1708
        %1710 = vrot.lane.b32.xlu0 %v412, 123
        %v1711 = vpop.permute.xlu0 %1710
        %1712 = vrot.lane.b32.xlu0 %v413, 123
        %v1713 = vpop.permute.xlu0 %1712
        %1714 = vrot.lane.b32.xlu0 %v414, 123
        %v1715 = vpop.permute.xlu0 %1714
        %1716 = vrot.lane.b32.xlu0 %v415, 123
        %v1717 = vpop.permute.xlu0 %1716
        %1718 = vrot.lane.b32.xlu0 %v416, 123
        %v1719 = vpop.permute.xlu0 %1718
        %1720 = vrot.lane.b32.xlu0 %v417, 123
        %v1721 = vpop.permute.xlu0 %1720
        %1722 = vrot.lane.b32.xlu0 %v418, 123
        %v1723 = vpop.permute.xlu0 %1722
        %1724 = vrot.lane.b32.xlu0 %v419, 123
        %v1725 = vpop.permute.xlu0 %1724
        %1726 = vrot.lane.b32.xlu0 %v420, 123
        %v1727 = vpop.permute.xlu0 %1726
        %1728 = vrot.lane.b32.xlu0 %v421, 123
        %v1729 = vpop.permute.xlu0 %1728
        %1730 = vrot.lane.b32.xlu0 %v422, 123
        %v1731 = vpop.permute.xlu0 %1730
        %1732 = vrot.lane.b32.xlu0 %v423, 123
        %v1733 = vpop.permute.xlu0 %1732
        %1734 = vrot.lane.b32.xlu0 %v424, 123
        %v1735 = vpop.permute.xlu0 %1734
        %1736 = vrot.lane.b32.xlu0 %v425, 123
        %v1737 = vpop.permute.xlu0 %1736
        %1738 = vrot.lane.b32.xlu0 %v426, 123
        %v1739 = vpop.permute.xlu0 %1738
        %1740 = vrot.lane.b32.xlu0 %v427, 123
        %v1741 = vpop.permute.xlu0 %1740
        %1742 = vrot.lane.b32.xlu0 %v428, 123
        %v1743 = vpop.permute.xlu0 %1742
        %1744 = vrot.lane.b32.xlu0 %v429, 123
        %v1745 = vpop.permute.xlu0 %1744
        %1746 = vrot.lane.b32.xlu0 %v430, 123
        %v1747 = vpop.permute.xlu0 %1746
        %1748 = vrot.lane.b32.xlu0 %v431, 123
        %v1749 = vpop.permute.xlu0 %1748
        %1750 = vrot.lane.b32.xlu0 %v432, 123
        %v1751 = vpop.permute.xlu0 %1750
        %1752 = vrot.lane.b32.xlu0 %v433, 123
        %v1753 = vpop.permute.xlu0 %1752
        %1754 = vrot.lane.b32.xlu0 %v434, 123
        %v1755 = vpop.permute.xlu0 %1754
        %1756 = vrot.lane.b32.xlu0 %v435, 123
        %v1757 = vpop.permute.xlu0 %1756
        %1758 = vrot.lane.b32.xlu0 %v436, 123
        %v1759 = vpop.permute.xlu0 %1758
        %1760 = vrot.lane.b32.xlu0 %v437, 123
        %v1761 = vpop.permute.xlu0 %1760
        %1762 = vrot.lane.b32.xlu0 %v438, 123
        %v1763 = vpop.permute.xlu0 %1762
        %1764 = vrot.lane.b32.xlu0 %v439, 123
        %v1765 = vpop.permute.xlu0 %1764
        %1766 = vrot.lane.b32.xlu0 %v440, 123
        %v1767 = vpop.permute.xlu0 %1766
        %1768 = vrot.lane.b32.xlu0 %v441, 123
        %v1769 = vpop.permute.xlu0 %1768
        %1770 = vrot.lane.b32.xlu0 %v442, 123
        %v1771 = vpop.permute.xlu0 %1770
        %1772 = vrot.lane.b32.xlu0 %v443, 123
        %v1773 = vpop.permute.xlu0 %1772
        %1774 = vrot.lane.b32.xlu0 %v444, 123
        %v1775 = vpop.permute.xlu0 %1774
        %1776 = vrot.lane.b32.xlu0 %v445, 123
        %v1777 = vpop.permute.xlu0 %1776
        %1778 = vrot.lane.b32.xlu0 %v446, 123
        %v1779 = vpop.permute.xlu0 %1778
        %1780 = vrot.lane.b32.xlu0 %v447, 123
        %v1781 = vpop.permute.xlu0 %1780
        %1782 = vrot.lane.b32.xlu0 %v448, 123
        %v1783 = vpop.permute.xlu0 %1782
        %1784 = vrot.lane.b32.xlu0 %v449, 123
        %v1785 = vpop.permute.xlu0 %1784
        %1786 = vrot.lane.b32.xlu0 %v450, 123
        %v1787 = vpop.permute.xlu0 %1786
        %1788 = vrot.lane.b32.xlu0 %v451, 123
        %v1789 = vpop.permute.xlu0 %1788
        %1790 = vrot.lane.b32.xlu0 %v452, 123
        %v1791 = vpop.permute.xlu0 %1790
        %1792 = vrot.lane.b32.xlu0 %v453, 123
        %v1793 = vpop.permute.xlu0 %1792
        %vm1794 = vcmask 1006592
        %v1795 = vsel %vm1794, %v1699, %v1701
        %v1796 = vsel %vm1794, %v1701, %v1703
        %v1797 = vsel %vm1794, %v1705, %v1707
        %v1798 = vsel %vm1794, %v1707, %v1709
        %v1799 = vsel %vm1794, %v1711, %v1713
        %v1800 = vsel %vm1794, %v1713, %v1715
        %v1801 = vsel %vm1794, %v1717, %v1719
        %v1802 = vsel %vm1794, %v1719, %v1721
        %v1803 = vsel %vm1794, %v1723, %v1725
        %v1804 = vsel %vm1794, %v1725, %v1727
        %v1805 = vsel %vm1794, %v1729, %v1731
        %v1806 = vsel %vm1794, %v1731, %v1733
        %v1807 = vsel %vm1794, %v1735, %v1737
        %v1808 = vsel %vm1794, %v1737, %v1739
        %v1809 = vsel %vm1794, %v1741, %v1743
        %v1810 = vsel %vm1794, %v1743, %v1745
        %v1811 = vsel %vm1794, %v1747, %v1749
        %v1812 = vsel %vm1794, %v1749, %v1751
        %v1813 = vsel %vm1794, %v1753, %v1755
        %v1814 = vsel %vm1794, %v1755, %v1757
        %v1815 = vsel %vm1794, %v1759, %v1761
        %v1816 = vsel %vm1794, %v1761, %v1763
        %v1817 = vsel %vm1794, %v1765, %v1767
        %v1818 = vsel %vm1794, %v1767, %v1769
        %v1819 = vsel %vm1794, %v1771, %v1773
        %v1820 = vsel %vm1794, %v1773, %v1775
        %v1821 = vsel %vm1794, %v1777, %v1779
        %v1822 = vsel %vm1794, %v1779, %v1781
        %v1823 = vsel %vm1794, %v1783, %v1785
        %v1824 = vsel %vm1794, %v1785, %v1787
        %v1825 = vsel %vm1794, %v1789, %v1791
        %v1826 = vsel %vm1794, %v1791, %v1793
        %1859 = vmatprep.subr.mxu0 %v1796
        %1860 = vmatpush1.msra.mxu0 %v1795
        %1861 = vmatprep.subr.mxu0 %v1798
        %1862 = vmatpush1.msra.mxu0 %v1797
        %1863 = vmatprep.subr.mxu0 %v1800
        %1864 = vmatpush1.msra.mxu0 %v1799
        %1865 = vmatprep.subr.mxu0 %v1802
        %1866 = vmatpush1.msra.mxu0 %v1801
        %1867 = vmatprep.subr.mxu0 %v1804
        %1868 = vmatpush1.msra.mxu0 %v1803
        %1869 = vmatprep.subr.mxu0 %v1806
        %1870 = vmatpush1.msra.mxu0 %v1805
        %1871 = vmatprep.subr.mxu0 %v1808
        %1872 = vmatpush1.msra.mxu0 %v1807
        %1873 = vmatprep.subr.mxu0 %v1810
        %1874 = vmatpush1.msra.mxu0 %v1809
        %1875 = vmatprep.subr.mxu0 %v1812
        %1876 = vmatpush1.msra.mxu0 %v1811
        %1877 = vmatprep.subr.mxu0 %v1814
        %1878 = vmatpush1.msra.mxu0 %v1813
        %1879 = vmatprep.subr.mxu0 %v1816
        %1880 = vmatpush1.msra.mxu0 %v1815
        %1881 = vmatprep.subr.mxu0 %v1818
        %1882 = vmatpush1.msra.mxu0 %v1817
        %1883 = vmatprep.subr.mxu0 %v1820
        %1884 = vmatpush1.msra.mxu0 %v1819
        %1885 = vmatprep.subr.mxu0 %v1822
        %1886 = vmatpush1.msra.mxu0 %v1821
        %1887 = vmatprep.subr.mxu0 %v1824
        %1888 = vmatpush1.msra.mxu0 %v1823
        %1889 = vmatprep.subr.mxu0 %v1826
        %1890 = vmatpush1.msra.mxu0 %v1825
        %1891 = vmatprep.subr.mxu0 0.0
        %1892 = vmatpush1.msra.mxu0 0.0
        %1893 = vmatprep.subr.mxu0 0.0
        %1894 = vmatpush1.msra.mxu0 0.0
        %1895 = vmatprep.subr.mxu0 0.0
        %1896 = vmatpush1.msra.mxu0 0.0
        %1897 = vmatprep.subr.mxu0 0.0
        %1898 = vmatpush1.msra.mxu0 0.0
        %1899 = vmatprep.subr.mxu0 0.0
        %1900 = vmatpush1.msra.mxu0 0.0
        %1901 = vmatprep.subr.mxu0 0.0
        %1902 = vmatpush1.msra.mxu0 0.0
        %1903 = vmatprep.subr.mxu0 0.0
        %1904 = vmatpush1.msra.mxu0 0.0
        %1905 = vmatprep.subr.mxu0 0.0
        %1906 = vmatpush1.msra.mxu0 0.0
        %1907 = vmatprep.subr.mxu0 0.0
        %1908 = vmatpush1.msra.mxu0 0.0
        %1909 = vmatprep.subr.mxu0 0.0
        %1910 = vmatpush1.msra.mxu0 0.0
        %1911 = vmatprep.subr.mxu0 0.0
        %1912 = vmatpush1.msra.mxu0 0.0
        %1913 = vmatprep.subr.mxu0 0.0
        %1914 = vmatpush1.msra.mxu0 0.0
        %1915 = vmatprep.subr.mxu0 0.0
        %1916 = vmatpush1.msra.mxu0 0.0
        %1917 = vmatprep.subr.mxu0 0.0
        %1918 = vmatpush1.msra.mxu0 0.0
        %1919 = vmatprep.subr.mxu0 0.0
        %1920 = vmatpush1.msra.mxu0 0.0
        %1921 = vmatprep.subr.mxu0 0.0
        %1922 = vmatpush1.msra.mxu0 0.0
        %1923 = vmatprep.mubr.f32.mxu0 0.0
        %1924 = vmatmul.mubr.f32.gmra.mrb[0].mxu0 %v1690
        %v1925 = vpop.f32.mrb[0].mxu0
        %v1926 = vadd.f32 0.0, %v1925
        %v1927 = vpop.f32.mrb[0].mxu0
        %v1928 = vadd.f32 0.0, %v1927
        %1929 = vmatprep.mubr.f32.mxu0 0.0
        %1930 = vmatmul.mubr.f32.gmra.mrb[0].mxu0 %v1691
        %v1931 = vpop.f32.mrb[0].mxu0
        %v1932 = vadd.f32 0.0, %v1931
        %v1933 = vpop.f32.mrb[0].mxu0
        %v1934 = vadd.f32 0.0, %v1933
        %1935 = vmatprep.mubr.f32.mxu0 0.0
        %1936 = vmatmul.mubr.f32.gmra.mrb[0].mxu0 %v1692
        %v1937 = vpop.f32.mrb[0].mxu0
        %v1938 = vadd.f32 0.0, %v1937
        %v1939 = vpop.f32.mrb[0].mxu0
        %v1940 = vadd.f32 0.0, %v1939
        %1941 = vmatprep.mubr.f32.mxu0 0.0
        %1942 = vmatmul.mubr.f32.gmra.mrb[0].mxu0 %v1693
        %v1943 = vpop.f32.mrb[0].mxu0
        %v1944 = vadd.f32 0.0, %v1943
        %v1945 = vpop.f32.mrb[0].mxu0
        %v1946 = vadd.f32 0.0, %v1945
        %1947 = vmatprep.mubr.f32.mxu0 0.0
        %1948 = vmatmul.mubr.f32.gmra.mrb[0].mxu0 %v1694
        %v1949 = vpop.f32.mrb[0].mxu0
        %v1950 = vadd.f32 0.0, %v1949
        %v1951 = vpop.f32.mrb[0].mxu0
        %v1952 = vadd.f32 0.0, %v1951
        %1953 = vmatprep.mubr.f32.mxu0 0.0
        %1954 = vmatmul.mubr.f32.gmra.mrb[0].mxu0 %v1695
        %v1955 = vpop.f32.mrb[0].mxu0
        %v1956 = vadd.f32 0.0, %v1955
        %v1957 = vpop.f32.mrb[0].mxu0
        %v1958 = vadd.f32 0.0, %v1957
        %1959 = vmatprep.mubr.f32.mxu0 0.0
        %1960 = vmatmul.mubr.f32.gmra.mrb[0].mxu0 %v1696
        %v1961 = vpop.f32.mrb[0].mxu0
        %v1962 = vadd.f32 0.0, %v1961
        %v1963 = vpop.f32.mrb[0].mxu0
        %v1964 = vadd.f32 0.0, %v1963
        %1965 = vmatprep.mubr.f32.mxu0 0.0
        %1966 = vmatmul.mubr.f32.gmra.mrb[0].mxu0 %v1697
        %v1967 = vpop.f32.mrb[0].mxu0
        %v1968 = vadd.f32 0.0, %v1967
        %v1969 = vpop.f32.mrb[0].mxu0
        %v1970 = vadd.f32 0.0, %v1969
        %1971 = vdwg.mxu0
        %v1972 = vadd.f32 %v1673, %v1926
        %v1973 = vadd.f32 %v1674, %v1928
        %v1974 = vadd.f32 %v1675, %v1932
        %v1975 = vadd.f32 %v1676, %v1934
        %v1976 = vadd.f32 %v1677, %v1938
        %v1977 = vadd.f32 %v1678, %v1940
        %v1978 = vadd.f32 %v1679, %v1944
        %v1979 = vadd.f32 %v1680, %v1946
        %v1980 = vadd.f32 %v1681, %v1950
        %v1981 = vadd.f32 %v1682, %v1952
        %v1982 = vadd.f32 %v1683, %v1956
        %v1983 = vadd.f32 %v1684, %v1958
        %v1984 = vadd.f32 %v1685, %v1962
        %v1985 = vadd.f32 %v1686, %v1964
        %v1986 = vadd.f32 %v1687, %v1968
        %v1987 = vadd.f32 %v1688, %v1970
        %s1988 = scalar_lea.vmem %s3, 384
        %v1989 = vld [vmem:[%s1988] sm:$0xff]
        %v1990 = vld [vmem:[%s1988 + $0x8] sm:$0xff]
        %v1991 = vld [vmem:[%s1988 + $0x10] sm:$0xff]
        %v1992 = vld [vmem:[%s1988 + $0x18] sm:$0xff]
        %v1993 = vld [vmem:[%s1988 + $0x20] sm:$0xff]
        %v1994 = vld [vmem:[%s1988 + $0x28] sm:$0xff]
        %v1995 = vld [vmem:[%s1988 + $0x30] sm:$0xff]
        %v1996 = vld [vmem:[%s1988 + $0x38] sm:$0xff]
        %1997 = vrot.lane.b32.xlu0 %v406, 122
        %v1998 = vpop.permute.xlu0 %1997
        %1999 = vrot.lane.b32.xlu0 %v407, 122
        %v2000 = vpop.permute.xlu0 %1999
        %2001 = vrot.lane.b32.xlu0 %v408, 122
        %v2002 = vpop.permute.xlu0 %2001
        %2003 = vrot.lane.b32.xlu0 %v409, 122
        %v2004 = vpop.permute.xlu0 %2003
        %2005 = vrot.lane.b32.xlu0 %v410, 122
        %v2006 = vpop.permute.xlu0 %2005
        %2007 = vrot.lane.b32.xlu0 %v411, 122
        %v2008 = vpop.permute.xlu0 %2007
        %2009 = vrot.lane.b32.xlu0 %v412, 122
        %v2010 = vpop.permute.xlu0 %2009
        %2011 = vrot.lane.b32.xlu0 %v413, 122
        %v2012 = vpop.permute.xlu0 %2011
        %2013 = vrot.lane.b32.xlu0 %v414, 122
        %v2014 = vpop.permute.xlu0 %2013
        %2015 = vrot.lane.b32.xlu0 %v415, 122
        %v2016 = vpop.permute.xlu0 %2015
        %2017 = vrot.lane.b32.xlu0 %v416, 122
        %v2018 = vpop.permute.xlu0 %2017
        %2019 = vrot.lane.b32.xlu0 %v417, 122
        %v2020 = vpop.permute.xlu0 %2019
        %2021 = vrot.lane.b32.xlu0 %v418, 122
        %v2022 = vpop.permute.xlu0 %2021
        %2023 = vrot.lane.b32.xlu0 %v419, 122
        %v2024 = vpop.permute.xlu0 %2023
        %2025 = vrot.lane.b32.xlu0 %v420, 122
        %v2026 = vpop.permute.xlu0 %2025
        %2027 = vrot.lane.b32.xlu0 %v421, 122
        %v2028 = vpop.permute.xlu0 %2027
        %2029 = vrot.lane.b32.xlu0 %v422, 122
        %v2030 = vpop.permute.xlu0 %2029
        %2031 = vrot.lane.b32.xlu0 %v423, 122
        %v2032 = vpop.permute.xlu0 %2031
        %2033 = vrot.lane.b32.xlu0 %v424, 122
        %v2034 = vpop.permute.xlu0 %2033
        %2035 = vrot.lane.b32.xlu0 %v425, 122
        %v2036 = vpop.permute.xlu0 %2035
        %2037 = vrot.lane.b32.xlu0 %v426, 122
        %v2038 = vpop.permute.xlu0 %2037
        %2039 = vrot.lane.b32.xlu0 %v427, 122
        %v2040 = vpop.permute.xlu0 %2039
        %2041 = vrot.lane.b32.xlu0 %v428, 122
        %v2042 = vpop.permute.xlu0 %2041
        %2043 = vrot.lane.b32.xlu0 %v429, 122
        %v2044 = vpop.permute.xlu0 %2043
        %2045 = vrot.lane.b32.xlu0 %v430, 122
        %v2046 = vpop.permute.xlu0 %2045
        %2047 = vrot.lane.b32.xlu0 %v431, 122
        %v2048 = vpop.permute.xlu0 %2047
        %2049 = vrot.lane.b32.xlu0 %v432, 122
        %v2050 = vpop.permute.xlu0 %2049
        %2051 = vrot.lane.b32.xlu0 %v433, 122
        %v2052 = vpop.permute.xlu0 %2051
        %2053 = vrot.lane.b32.xlu0 %v434, 122
        %v2054 = vpop.permute.xlu0 %2053
        %2055 = vrot.lane.b32.xlu0 %v435, 122
        %v2056 = vpop.permute.xlu0 %2055
        %2057 = vrot.lane.b32.xlu0 %v436, 122
        %v2058 = vpop.permute.xlu0 %2057
        %2059 = vrot.lane.b32.xlu0 %v437, 122
        %v2060 = vpop.permute.xlu0 %2059
        %2061 = vrot.lane.b32.xlu0 %v438, 122
        %v2062 = vpop.permute.xlu0 %2061
        %2063 = vrot.lane.b32.xlu0 %v439, 122
        %v2064 = vpop.permute.xlu0 %2063
        %2065 = vrot.lane.b32.xlu0 %v440, 122
        %v2066 = vpop.permute.xlu0 %2065
        %2067 = vrot.lane.b32.xlu0 %v441, 122
        %v2068 = vpop.permute.xlu0 %2067
        %2069 = vrot.lane.b32.xlu0 %v442, 122
        %v2070 = vpop.permute.xlu0 %2069
        %2071 = vrot.lane.b32.xlu0 %v443, 122
        %v2072 = vpop.permute.xlu0 %2071
        %2073 = vrot.lane.b32.xlu0 %v444, 122
        %v2074 = vpop.permute.xlu0 %2073
        %2075 = vrot.lane.b32.xlu0 %v445, 122
        %v2076 = vpop.permute.xlu0 %2075
        %2077 = vrot.lane.b32.xlu0 %v446, 122
        %v2078 = vpop.permute.xlu0 %2077
        %2079 = vrot.lane.b32.xlu0 %v447, 122
        %v2080 = vpop.permute.xlu0 %2079
        %2081 = vrot.lane.b32.xlu0 %v448, 122
        %v2082 = vpop.permute.xlu0 %2081
        %2083 = vrot.lane.b32.xlu0 %v449, 122
        %v2084 = vpop.permute.xlu0 %2083
        %2085 = vrot.lane.b32.xlu0 %v450, 122
        %v2086 = vpop.permute.xlu0 %2085
        %2087 = vrot.lane.b32.xlu0 %v451, 122
        %v2088 = vpop.permute.xlu0 %2087
        %2089 = vrot.lane.b32.xlu0 %v452, 122
        %v2090 = vpop.permute.xlu0 %2089
        %2091 = vrot.lane.b32.xlu0 %v453, 122
        %v2092 = vpop.permute.xlu0 %2091
        %vm2093 = vcmask 998400
        %v2094 = vsel %vm2093, %v1998, %v2000
        %v2095 = vsel %vm2093, %v2000, %v2002
        %v2096 = vsel %vm2093, %v2004, %v2006
        %v2097 = vsel %vm2093, %v2006, %v2008
        %v2098 = vsel %vm2093, %v2010, %v2012
        %v2099 = vsel %vm2093, %v2012, %v2014
        %v2100 = vsel %vm2093, %v2016, %v2018
        %v2101 = vsel %vm2093, %v2018, %v2020
        %v2102 = vsel %vm2093, %v2022, %v2024
        %v2103 = vsel %vm2093, %v2024, %v2026
        %v2104 = vsel %vm2093, %v2028, %v2030
        %v2105 = vsel %vm2093, %v2030, %v2032
        %v2106 = vsel %vm2093, %v2034, %v2036
        %v2107 = vsel %vm2093, %v2036, %v2038
        %v2108 = vsel %vm2093, %v2040, %v2042
        %v2109 = vsel %vm2093, %v2042, %v2044
        %v2110 = vsel %vm2093, %v2046, %v2048
        %v2111 = vsel %vm2093, %v2048, %v2050
        %v2112 = vsel %vm2093, %v2052, %v2054
        %v2113 = vsel %vm2093, %v2054, %v2056
        %v2114 = vsel %vm2093, %v2058, %v2060
        %v2115 = vsel %vm2093, %v2060, %v2062
        %v2116 = vsel %vm2093, %v2064, %v2066
        %v2117 = vsel %vm2093, %v2066, %v2068
        %v2118 = vsel %vm2093, %v2070, %v2072
        %v2119 = vsel %vm2093, %v2072, %v2074
        %v2120 = vsel %vm2093, %v2076, %v2078
        %v2121 = vsel %vm2093, %v2078, %v2080
        %v2122 = vsel %vm2093, %v2082, %v2084
        %v2123 = vsel %vm2093, %v2084, %v2086
        %v2124 = vsel %vm2093, %v2088, %v2090
        %v2125 = vsel %vm2093, %v2090, %v2092
        %2158 = vmatprep.subr.mxu0 %v2095
        %2159 = vmatpush1.msra.mxu0 %v2094
        %2160 = vmatprep.subr.mxu0 %v2097
        %2161 = vmatpush1.msra.mxu0 %v2096
        %2162 = vmatprep.subr.mxu0 %v2099
        %2163 = vmatpush1.msra.mxu0 %v2098
        %2164 = vmatprep.subr.mxu0 %v2101
        %2165 = vmatpush1.msra.mxu0 %v2100
        %2166 = vmatprep.subr.mxu0 %v2103
        %2167 = vmatpush1.msra.mxu0 %v2102
        %2168 = vmatprep.subr.mxu0 %v2105
        %2169 = vmatpush1.msra.mxu0 %v2104
        %2170 = vmatprep.subr.mxu0 %v2107
        %2171 = vmatpush1.msra.mxu0 %v2106
        %2172 = vmatprep.subr.mxu0 %v2109
        %2173 = vmatpush1.msra.mxu0 %v2108
        %2174 = vmatprep.subr.mxu0 %v2111
        %2175 = vmatpush1.msra.mxu0 %v2110
        %2176 = vmatprep.subr.mxu0 %v2113
        %2177 = vmatpush1.msra.mxu0 %v2112
        %2178 = vmatprep.subr.mxu0 %v2115
        %2179 = vmatpush1.msra.mxu0 %v2114
        %2180 = vmatprep.subr.mxu0 %v2117
        %2181 = vmatpush1.msra.mxu0 %v2116
        %2182 = vmatprep.subr.mxu0 %v2119
        %2183 = vmatpush1.msra.mxu0 %v2118
        %2184 = vmatprep.subr.mxu0 %v2121
        %2185 = vmatpush1.msra.mxu0 %v2120
        %2186 = vmatprep.subr.mxu0 %v2123
        %2187 = vmatpush1.msra.mxu0 %v2122
        %2188 = vmatprep.subr.mxu0 %v2125
        %2189 = vmatpush1.msra.mxu0 %v2124
        %2190 = vmatprep.subr.mxu0 0.0
        %2191 = vmatpush1.msra.mxu0 0.0
        %2192 = vmatprep.subr.mxu0 0.0
        %2193 = vmatpush1.msra.mxu0 0.0
        %2194 = vmatprep.subr.mxu0 0.0
        %2195 = vmatpush1.msra.mxu0 0.0
        %2196 = vmatprep.subr.mxu0 0.0
        %2197 = vmatpush1.msra.mxu0 0.0
        %2198 = vmatprep.subr.mxu0 0.0
        %2199 = vmatpush1.msra.mxu0 0.0
        %2200 = vmatprep.subr.mxu0 0.0
        %2201 = vmatpush1.msra.mxu0 0.0
        %2202 = vmatprep.subr.mxu0 0.0
        %2203 = vmatpush1.msra.mxu0 0.0
        %2204 = vmatprep.subr.mxu0 0.0
        %2205 = vmatpush1.msra.mxu0 0.0
        %2206 = vmatprep.subr.mxu0 0.0
        %2207 = vmatpush1.msra.mxu0 0.0
        %2208 = vmatprep.subr.mxu0 0.0
        %2209 = vmatpush1.msra.mxu0 0.0
        %2210 = vmatprep.subr.mxu0 0.0
        %2211 = vmatpush1.msra.mxu0 0.0
        %2212 = vmatprep.subr.mxu0 0.0
        %2213 = vmatpush1.msra.mxu0 0.0
        %2214 = vmatprep.subr.mxu0 0.0
        %2215 = vmatpush1.msra.mxu0 0.0
        %2216 = vmatprep.subr.mxu0 0.0
        %2217 = vmatpush1.msra.mxu0 0.0
        %2218 = vmatprep.subr.mxu0 0.0
        %2219 = vmatpush1.msra.mxu0 0.0
        %2220 = vmatprep.subr.mxu0 0.0
        %2221 = vmatpush1.msra.mxu0 0.0
        %2222 = vmatprep.mubr.f32.mxu0 0.0
        %2223 = vmatmul.mubr.f32.gmra.mrb[0].mxu0 %v1989
        %v2224 = vpop.f32.mrb[0].mxu0
        %v2225 = vadd.f32 0.0, %v2224
        %v2226 = vpop.f32.mrb[0].mxu0
        %v2227 = vadd.f32 0.0, %v2226
        %2228 = vmatprep.mubr.f32.mxu0 0.0
        %2229 = vmatmul.mubr.f32.gmra.mrb[0].mxu0 %v1990
        %v2230 = vpop.f32.mrb[0].mxu0
        %v2231 = vadd.f32 0.0, %v2230
        %v2232 = vpop.f32.mrb[0].mxu0
        %v2233 = vadd.f32 0.0, %v2232
        %2234 = vmatprep.mubr.f32.mxu0 0.0
        %2235 = vmatmul.mubr.f32.gmra.mrb[0].mxu0 %v1991
        %v2236 = vpop.f32.mrb[0].mxu0
        %v2237 = vadd.f32 0.0, %v2236
        %v2238 = vpop.f32.mrb[0].mxu0
        %v2239 = vadd.f32 0.0, %v2238
        %2240 = vmatprep.mubr.f32.mxu0 0.0
        %2241 = vmatmul.mubr.f32.gmra.mrb[0].mxu0 %v1992
        %v2242 = vpop.f32.mrb[0].mxu0
        %v2243 = vadd.f32 0.0, %v2242
        %v2244 = vpop.f32.mrb[0].mxu0
        %v2245 = vadd.f32 0.0, %v2244
        %2246 = vmatprep.mubr.f32.mxu0 0.0
        %2247 = vmatmul.mubr.f32.gmra.mrb[0].mxu0 %v1993
        %v2248 = vpop.f32.mrb[0].mxu0
        %v2249 = vadd.f32 0.0, %v2248
        %v2250 = vpop.f32.mrb[0].mxu0
        %v2251 = vadd.f32 0.0, %v2250
        %2252 = vmatprep.mubr.f32.mxu0 0.0
        %2253 = vmatmul.mubr.f32.gmra.mrb[0].mxu0 %v1994
        %v2254 = vpop.f32.mrb[0].mxu0
        %v2255 = vadd.f32 0.0, %v2254
        %v2256 = vpop.f32.mrb[0].mxu0
        %v2257 = vadd.f32 0.0, %v2256
        %2258 = vmatprep.mubr.f32.mxu0 0.0
        %2259 = vmatmul.mubr.f32.gmra.mrb[0].mxu0 %v1995
        %v2260 = vpop.f32.mrb[0].mxu0
        %v2261 = vadd.f32 0.0, %v2260
        %v2262 = vpop.f32.mrb[0].mxu0
        %v2263 = vadd.f32 0.0, %v2262
        %2264 = vmatprep.mubr.f32.mxu0 0.0
        %2265 = vmatmul.mubr.f32.gmra.mrb[0].mxu0 %v1996
        %v2266 = vpop.f32.mrb[0].mxu0
        %v2267 = vadd.f32 0.0, %v2266
        %v2268 = vpop.f32.mrb[0].mxu0
        %v2269 = vadd.f32 0.0, %v2268
        %2270 = vdwg.mxu0
        %v2271 = vadd.f32 %v1972, %v2225
        %v2272 = vadd.f32 %v1973, %v2227
        %v2273 = vadd.f32 %v1974, %v2231
        %v2274 = vadd.f32 %v1975, %v2233
        %v2275 = vadd.f32 %v1976, %v2237
        %v2276 = vadd.f32 %v1977, %v2239
        %v2277 = vadd.f32 %v1978, %v2243
        %v2278 = vadd.f32 %v1979, %v2245
        %v2279 = vadd.f32 %v1980, %v2249
        %v2280 = vadd.f32 %v1981, %v2251
        %v2281 = vadd.f32 %v1982, %v2255
        %v2282 = vadd.f32 %v1983, %v2257
        %v2283 = vadd.f32 %v1984, %v2261
        %v2284 = vadd.f32 %v1985, %v2263
        %v2285 = vadd.f32 %v1986, %v2267
        %v2286 = vadd.f32 %v1987, %v2269
        %s2287 = scalar_lea.vmem %s3, 448
        %v2288 = vld [vmem:[%s2287] sm:$0xff]
        %v2289 = vld [vmem:[%s2287 + $0x8] sm:$0xff]
        %v2290 = vld [vmem:[%s2287 + $0x10] sm:$0xff]
        %v2291 = vld [vmem:[%s2287 + $0x18] sm:$0xff]
        %v2292 = vld [vmem:[%s2287 + $0x20] sm:$0xff]
        %v2293 = vld [vmem:[%s2287 + $0x28] sm:$0xff]
        %v2294 = vld [vmem:[%s2287 + $0x30] sm:$0xff]
        %v2295 = vld [vmem:[%s2287 + $0x38] sm:$0xff]
        %2296 = vrot.lane.b32.xlu0 %v406, 121
        %v2297 = vpop.permute.xlu0 %2296
        %2298 = vrot.lane.b32.xlu0 %v407, 121
        %v2299 = vpop.permute.xlu0 %2298
        %2300 = vrot.lane.b32.xlu0 %v408, 121
        %v2301 = vpop.permute.xlu0 %2300
        %2302 = vrot.lane.b32.xlu0 %v409, 121
        %v2303 = vpop.permute.xlu0 %2302
        %2304 = vrot.lane.b32.xlu0 %v410, 121
        %v2305 = vpop.permute.xlu0 %2304
        %2306 = vrot.lane.b32.xlu0 %v411, 121
        %v2307 = vpop.permute.xlu0 %2306
        %2308 = vrot.lane.b32.xlu0 %v412, 121
        %v2309 = vpop.permute.xlu0 %2308
        %2310 = vrot.lane.b32.xlu0 %v413, 121
        %v2311 = vpop.permute.xlu0 %2310
        %2312 = vrot.lane.b32.xlu0 %v414, 121
        %v2313 = vpop.permute.xlu0 %2312
        %2314 = vrot.lane.b32.xlu0 %v415, 121
        %v2315 = vpop.permute.xlu0 %2314
        %2316 = vrot.lane.b32.xlu0 %v416, 121
        %v2317 = vpop.permute.xlu0 %2316
        %2318 = vrot.lane.b32.xlu0 %v417, 121
        %v2319 = vpop.permute.xlu0 %2318
        %2320 = vrot.lane.b32.xlu0 %v418, 121
        %v2321 = vpop.permute.xlu0 %2320
        %2322 = vrot.lane.b32.xlu0 %v419, 121
        %v2323 = vpop.permute.xlu0 %2322
        %2324 = vrot.lane.b32.xlu0 %v420, 121
        %v2325 = vpop.permute.xlu0 %2324
        %2326 = vrot.lane.b32.xlu0 %v421, 121
        %v2327 = vpop.permute.xlu0 %2326
        %2328 = vrot.lane.b32.xlu0 %v422, 121
        %v2329 = vpop.permute.xlu0 %2328
        %2330 = vrot.lane.b32.xlu0 %v423, 121
        %v2331 = vpop.permute.xlu0 %2330
        %2332 = vrot.lane.b32.xlu0 %v424, 121
        %v2333 = vpop.permute.xlu0 %2332
        %2334 = vrot.lane.b32.xlu0 %v425, 121
        %v2335 = vpop.permute.xlu0 %2334
        %2336 = vrot.lane.b32.xlu0 %v426, 121
        %v2337 = vpop.permute.xlu0 %2336
        %2338 = vrot.lane.b32.xlu0 %v427, 121
        %v2339 = vpop.permute.xlu0 %2338
        %2340 = vrot.lane.b32.xlu0 %v428, 121
        %v2341 = vpop.permute.xlu0 %2340
        %2342 = vrot.lane.b32.xlu0 %v429, 121
        %v2343 = vpop.permute.xlu0 %2342
        %2344 = vrot.lane.b32.xlu0 %v430, 121
        %v2345 = vpop.permute.xlu0 %2344
        %2346 = vrot.lane.b32.xlu0 %v431, 121
        %v2347 = vpop.permute.xlu0 %2346
        %2348 = vrot.lane.b32.xlu0 %v432, 121
        %v2349 = vpop.permute.xlu0 %2348
        %2350 = vrot.lane.b32.xlu0 %v433, 121
        %v2351 = vpop.permute.xlu0 %2350
        %2352 = vrot.lane.b32.xlu0 %v434, 121
        %v2353 = vpop.permute.xlu0 %2352
        %2354 = vrot.lane.b32.xlu0 %v435, 121
        %v2355 = vpop.permute.xlu0 %2354
        %2356 = vrot.lane.b32.xlu0 %v436, 121
        %v2357 = vpop.permute.xlu0 %2356
        %2358 = vrot.lane.b32.xlu0 %v437, 121
        %v2359 = vpop.permute.xlu0 %2358
        %2360 = vrot.lane.b32.xlu0 %v438, 121
        %v2361 = vpop.permute.xlu0 %2360
        %2362 = vrot.lane.b32.xlu0 %v439, 121
        %v2363 = vpop.permute.xlu0 %2362
        %2364 = vrot.lane.b32.xlu0 %v440, 121
        %v2365 = vpop.permute.xlu0 %2364
        %2366 = vrot.lane.b32.xlu0 %v441, 121
        %v2367 = vpop.permute.xlu0 %2366
        %2368 = vrot.lane.b32.xlu0 %v442, 121
        %v2369 = vpop.permute.xlu0 %2368
        %2370 = vrot.lane.b32.xlu0 %v443, 121
        %v2371 = vpop.permute.xlu0 %2370
        %2372 = vrot.lane.b32.xlu0 %v444, 121
        %v2373 = vpop.permute.xlu0 %2372
        %2374 = vrot.lane.b32.xlu0 %v445, 121
        %v2375 = vpop.permute.xlu0 %2374
        %2376 = vrot.lane.b32.xlu0 %v446, 121
        %v2377 = vpop.permute.xlu0 %2376
        %2378 = vrot.lane.b32.xlu0 %v447, 121
        %v2379 = vpop.permute.xlu0 %2378
        %2380 = vrot.lane.b32.xlu0 %v448, 121
        %v2381 = vpop.permute.xlu0 %2380
        %2382 = vrot.lane.b32.xlu0 %v449, 121
        %v2383 = vpop.permute.xlu0 %2382
        %2384 = vrot.lane.b32.xlu0 %v450, 121
        %v2385 = vpop.permute.xlu0 %2384
        %2386 = vrot.lane.b32.xlu0 %v451, 121
        %v2387 = vpop.permute.xlu0 %2386
        %2388 = vrot.lane.b32.xlu0 %v452, 121
        %v2389 = vpop.permute.xlu0 %2388
        %2390 = vrot.lane.b32.xlu0 %v453, 121
        %v2391 = vpop.permute.xlu0 %2390
        %vm2392 = vcmask 990208
        %v2393 = vsel %vm2392, %v2297, %v2299
        %v2394 = vsel %vm2392, %v2299, %v2301
        %v2395 = vsel %vm2392, %v2303, %v2305
        %v2396 = vsel %vm2392, %v2305, %v2307
        %v2397 = vsel %vm2392, %v2309, %v2311
        %v2398 = vsel %vm2392, %v2311, %v2313
        %v2399 = vsel %vm2392, %v2315, %v2317
        %v2400 = vsel %vm2392, %v2317, %v2319
        %v2401 = vsel %vm2392, %v2321, %v2323
        %v2402 = vsel %vm2392, %v2323, %v2325
        %v2403 = vsel %vm2392, %v2327, %v2329
        %v2404 = vsel %vm2392, %v2329, %v2331
        %v2405 = vsel %vm2392, %v2333, %v2335
        %v2406 = vsel %vm2392, %v2335, %v2337
        %v2407 = vsel %vm2392, %v2339, %v2341
        %v2408 = vsel %vm2392, %v2341, %v2343
        %v2409 = vsel %vm2392, %v2345, %v2347
        %v2410 = vsel %vm2392, %v2347, %v2349
        %v2411 = vsel %vm2392, %v2351, %v2353
        %v2412 = vsel %vm2392, %v2353, %v2355
        %v2413 = vsel %vm2392, %v2357, %v2359
        %v2414 = vsel %vm2392, %v2359, %v2361
        %v2415 = vsel %vm2392, %v2363, %v2365
        %v2416 = vsel %vm2392, %v2365, %v2367
        %v2417 = vsel %vm2392, %v2369, %v2371
        %v2418 = vsel %vm2392, %v2371, %v2373
        %v2419 = vsel %vm2392, %v2375, %v2377
        %v2420 = vsel %vm2392, %v2377, %v2379
        %v2421 = vsel %vm2392, %v2381, %v2383
        %v2422 = vsel %vm2392, %v2383, %v2385
        %v2423 = vsel %vm2392, %v2387, %v2389
        %v2424 = vsel %vm2392, %v2389, %v2391
        %2457 = vmatprep.subr.mxu0 %v2394
        %2458 = vmatpush1.msra.mxu0 %v2393
        %2459 = vmatprep.subr.mxu0 %v2396
        %2460 = vmatpush1.msra.mxu0 %v2395
        %2461 = vmatprep.subr.mxu0 %v2398
        %2462 = vmatpush1.msra.mxu0 %v2397
        %2463 = vmatprep.subr.mxu0 %v2400
        %2464 = vmatpush1.msra.mxu0 %v2399
        %2465 = vmatprep.subr.mxu0 %v2402
        %2466 = vmatpush1.msra.mxu0 %v2401
        %2467 = vmatprep.subr.mxu0 %v2404
        %2468 = vmatpush1.msra.mxu0 %v2403
        %2469 = vmatprep.subr.mxu0 %v2406
        %2470 = vmatpush1.msra.mxu0 %v2405
        %2471 = vmatprep.subr.mxu0 %v2408
        %2472 = vmatpush1.msra.mxu0 %v2407
        %2473 = vmatprep.subr.mxu0 %v2410
        %2474 = vmatpush1.msra.mxu0 %v2409
        %2475 = vmatprep.subr.mxu0 %v2412
        %2476 = vmatpush1.msra.mxu0 %v2411
        %2477 = vmatprep.subr.mxu0 %v2414
        %2478 = vmatpush1.msra.mxu0 %v2413
        %2479 = vmatprep.subr.mxu0 %v2416
        %2480 = vmatpush1.msra.mxu0 %v2415
        %2481 = vmatprep.subr.mxu0 %v2418
        %2482 = vmatpush1.msra.mxu0 %v2417
        %2483 = vmatprep.subr.mxu0 %v2420
        %2484 = vmatpush1.msra.mxu0 %v2419
        %2485 = vmatprep.subr.mxu0 %v2422
        %2486 = vmatpush1.msra.mxu0 %v2421
        %2487 = vmatprep.subr.mxu0 %v2424
        %2488 = vmatpush1.msra.mxu0 %v2423
        %2489 = vmatprep.subr.mxu0 0.0
        %2490 = vmatpush1.msra.mxu0 0.0
        %2491 = vmatprep.subr.mxu0 0.0
        %2492 = vmatpush1.msra.mxu0 0.0
        %2493 = vmatprep.subr.mxu0 0.0
        %2494 = vmatpush1.msra.mxu0 0.0
        %2495 = vmatprep.subr.mxu0 0.0
        %2496 = vmatpush1.msra.mxu0 0.0
        %2497 = vmatprep.subr.mxu0 0.0
        %2498 = vmatpush1.msra.mxu0 0.0
        %2499 = vmatprep.subr.mxu0 0.0
        %2500 = vmatpush1.msra.mxu0 0.0
        %2501 = vmatprep.subr.mxu0 0.0
        %2502 = vmatpush1.msra.mxu0 0.0
        %2503 = vmatprep.subr.mxu0 0.0
        %2504 = vmatpush1.msra.mxu0 0.0
        %2505 = vmatprep.subr.mxu0 0.0
        %2506 = vmatpush1.msra.mxu0 0.0
        %2507 = vmatprep.subr.mxu0 0.0
        %2508 = vmatpush1.msra.mxu0 0.0
        %2509 = vmatprep.subr.mxu0 0.0
        %2510 = vmatpush1.msra.mxu0 0.0
        %2511 = vmatprep.subr.mxu0 0.0
        %2512 = vmatpush1.msra.mxu0 0.0
        %2513 = vmatprep.subr.mxu0 0.0
        %2514 = vmatpush1.msra.mxu0 0.0
        %2515 = vmatprep.subr.mxu0 0.0
        %2516 = vmatpush1.msra.mxu0 0.0
        %2517 = vmatprep.subr.mxu0 0.0
        %2518 = vmatpush1.msra.mxu0 0.0
        %2519 = vmatprep.subr.mxu0 0.0
        %2520 = vmatpush1.msra.mxu0 0.0
        %2521 = vmatprep.mubr.f32.mxu0 0.0
        %2522 = vmatmul.mubr.f32.gmra.mrb[0].mxu0 %v2288
        %v2523 = vpop.f32.mrb[0].mxu0
        %v2524 = vadd.f32 0.0, %v2523
        %v2525 = vpop.f32.mrb[0].mxu0
        %v2526 = vadd.f32 0.0, %v2525
        %2527 = vmatprep.mubr.f32.mxu0 0.0
        %2528 = vmatmul.mubr.f32.gmra.mrb[0].mxu0 %v2289
        %v2529 = vpop.f32.mrb[0].mxu0
        %v2530 = vadd.f32 0.0, %v2529
        %v2531 = vpop.f32.mrb[0].mxu0
        %v2532 = vadd.f32 0.0, %v2531
        %2533 = vmatprep.mubr.f32.mxu0 0.0
        %2534 = vmatmul.mubr.f32.gmra.mrb[0].mxu0 %v2290
        %v2535 = vpop.f32.mrb[0].mxu0
        %v2536 = vadd.f32 0.0, %v2535
        %v2537 = vpop.f32.mrb[0].mxu0
        %v2538 = vadd.f32 0.0, %v2537
        %2539 = vmatprep.mubr.f32.mxu0 0.0
        %2540 = vmatmul.mubr.f32.gmra.mrb[0].mxu0 %v2291
        %v2541 = vpop.f32.mrb[0].mxu0
        %v2542 = vadd.f32 0.0, %v2541
        %v2543 = vpop.f32.mrb[0].mxu0
        %v2544 = vadd.f32 0.0, %v2543
        %2545 = vmatprep.mubr.f32.mxu0 0.0
        %2546 = vmatmul.mubr.f32.gmra.mrb[0].mxu0 %v2292
        %v2547 = vpop.f32.mrb[0].mxu0
        %v2548 = vadd.f32 0.0, %v2547
        %v2549 = vpop.f32.mrb[0].mxu0
        %v2550 = vadd.f32 0.0, %v2549
        %2551 = vmatprep.mubr.f32.mxu0 0.0
        %2552 = vmatmul.mubr.f32.gmra.mrb[0].mxu0 %v2293
        %v2553 = vpop.f32.mrb[0].mxu0
        %v2554 = vadd.f32 0.0, %v2553
        %v2555 = vpop.f32.mrb[0].mxu0
        %v2556 = vadd.f32 0.0, %v2555
        %2557 = vmatprep.mubr.f32.mxu0 0.0
        %2558 = vmatmul.mubr.f32.gmra.mrb[0].mxu0 %v2294
        %v2559 = vpop.f32.mrb[0].mxu0
        %v2560 = vadd.f32 0.0, %v2559
        %v2561 = vpop.f32.mrb[0].mxu0
        %v2562 = vadd.f32 0.0, %v2561
        %2563 = vmatprep.mubr.f32.mxu0 0.0
        %2564 = vmatmul.mubr.f32.gmra.mrb[0].mxu0 %v2295
        %v2565 = vpop.f32.mrb[0].mxu0
        %v2566 = vadd.f32 0.0, %v2565
        %v2567 = vpop.f32.mrb[0].mxu0
        %v2568 = vadd.f32 0.0, %v2567
        %2569 = vdwg.mxu0
        %v2570 = vadd.f32 %v2271, %v2524
        %v2571 = vadd.f32 %v2272, %v2526
        %v2572 = vadd.f32 %v2273, %v2530
        %v2573 = vadd.f32 %v2274, %v2532
        %v2574 = vadd.f32 %v2275, %v2536
        %v2575 = vadd.f32 %v2276, %v2538
        %v2576 = vadd.f32 %v2277, %v2542
        %v2577 = vadd.f32 %v2278, %v2544
        %v2578 = vadd.f32 %v2279, %v2548
        %v2579 = vadd.f32 %v2280, %v2550
        %v2580 = vadd.f32 %v2281, %v2554
        %v2581 = vadd.f32 %v2282, %v2556
        %v2582 = vadd.f32 %v2283, %v2560
        %v2583 = vadd.f32 %v2284, %v2562
        %v2584 = vadd.f32 %v2285, %v2566
        %v2585 = vadd.f32 %v2286, %v2568
        %s2586 = scalar_lea.vmem %s3, 512
        %v2587 = vld [vmem:[%s2586] sm:$0xff]
        %v2588 = vld [vmem:[%s2586 + $0x8] sm:$0xff]
        %v2589 = vld [vmem:[%s2586 + $0x10] sm:$0xff]
        %v2590 = vld [vmem:[%s2586 + $0x18] sm:$0xff]
        %v2591 = vld [vmem:[%s2586 + $0x20] sm:$0xff]
        %v2592 = vld [vmem:[%s2586 + $0x28] sm:$0xff]
        %v2593 = vld [vmem:[%s2586 + $0x30] sm:$0xff]
        %v2594 = vld [vmem:[%s2586 + $0x38] sm:$0xff]
        %2595 = vrot.lane.b32.xlu0 %v406, 120
        %v2596 = vpop.permute.xlu0 %2595
        %2597 = vrot.lane.b32.xlu0 %v407, 120
        %v2598 = vpop.permute.xlu0 %2597
        %2599 = vrot.lane.b32.xlu0 %v408, 120
        %v2600 = vpop.permute.xlu0 %2599
        %2601 = vrot.lane.b32.xlu0 %v409, 120
        %v2602 = vpop.permute.xlu0 %2601
        %2603 = vrot.lane.b32.xlu0 %v410, 120
        %v2604 = vpop.permute.xlu0 %2603
        %2605 = vrot.lane.b32.xlu0 %v411, 120
        %v2606 = vpop.permute.xlu0 %2605
        %2607 = vrot.lane.b32.xlu0 %v412, 120
        %v2608 = vpop.permute.xlu0 %2607
        %2609 = vrot.lane.b32.xlu0 %v413, 120
        %v2610 = vpop.permute.xlu0 %2609
        %2611 = vrot.lane.b32.xlu0 %v414, 120
        %v2612 = vpop.permute.xlu0 %2611
        %2613 = vrot.lane.b32.xlu0 %v415, 120
        %v2614 = vpop.permute.xlu0 %2613
        %2615 = vrot.lane.b32.xlu0 %v416, 120
        %v2616 = vpop.permute.xlu0 %2615
        %2617 = vrot.lane.b32.xlu0 %v417, 120
        %v2618 = vpop.permute.xlu0 %2617
        %2619 = vrot.lane.b32.xlu0 %v418, 120
        %v2620 = vpop.permute.xlu0 %2619
        %2621 = vrot.lane.b32.xlu0 %v419, 120
        %v2622 = vpop.permute.xlu0 %2621
        %2623 = vrot.lane.b32.xlu0 %v420, 120
        %v2624 = vpop.permute.xlu0 %2623
        %2625 = vrot.lane.b32.xlu0 %v421, 120
        %v2626 = vpop.permute.xlu0 %2625
        %2627 = vrot.lane.b32.xlu0 %v422, 120
        %v2628 = vpop.permute.xlu0 %2627
        %2629 = vrot.lane.b32.xlu0 %v423, 120
        %v2630 = vpop.permute.xlu0 %2629
        %2631 = vrot.lane.b32.xlu0 %v424, 120
        %v2632 = vpop.permute.xlu0 %2631
        %2633 = vrot.lane.b32.xlu0 %v425, 120
        %v2634 = vpop.permute.xlu0 %2633
        %2635 = vrot.lane.b32.xlu0 %v426, 120
        %v2636 = vpop.permute.xlu0 %2635
        %2637 = vrot.lane.b32.xlu0 %v427, 120
        %v2638 = vpop.permute.xlu0 %2637
        %2639 = vrot.lane.b32.xlu0 %v428, 120
        %v2640 = vpop.permute.xlu0 %2639
        %2641 = vrot.lane.b32.xlu0 %v429, 120
        %v2642 = vpop.permute.xlu0 %2641
        %2643 = vrot.lane.b32.xlu0 %v430, 120
        %v2644 = vpop.permute.xlu0 %2643
        %2645 = vrot.lane.b32.xlu0 %v431, 120
        %v2646 = vpop.permute.xlu0 %2645
        %2647 = vrot.lane.b32.xlu0 %v432, 120
        %v2648 = vpop.permute.xlu0 %2647
        %2649 = vrot.lane.b32.xlu0 %v433, 120
        %v2650 = vpop.permute.xlu0 %2649
        %2651 = vrot.lane.b32.xlu0 %v434, 120
        %v2652 = vpop.permute.xlu0 %2651
        %2653 = vrot.lane.b32.xlu0 %v435, 120
        %v2654 = vpop.permute.xlu0 %2653
        %2655 = vrot.lane.b32.xlu0 %v436, 120
        %v2656 = vpop.permute.xlu0 %2655
        %2657 = vrot.lane.b32.xlu0 %v437, 120
        %v2658 = vpop.permute.xlu0 %2657
        %2659 = vrot.lane.b32.xlu0 %v438, 120
        %v2660 = vpop.permute.xlu0 %2659
        %2661 = vrot.lane.b32.xlu0 %v439, 120
        %v2662 = vpop.permute.xlu0 %2661
        %2663 = vrot.lane.b32.xlu0 %v440, 120
        %v2664 = vpop.permute.xlu0 %2663
        %2665 = vrot.lane.b32.xlu0 %v441, 120
        %v2666 = vpop.permute.xlu0 %2665
        %2667 = vrot.lane.b32.xlu0 %v442, 120
        %v2668 = vpop.permute.xlu0 %2667
        %2669 = vrot.lane.b32.xlu0 %v443, 120
        %v2670 = vpop.permute.xlu0 %2669
        %2671 = vrot.lane.b32.xlu0 %v444, 120
        %v2672 = vpop.permute.xlu0 %2671
        %2673 = vrot.lane.b32.xlu0 %v445, 120
        %v2674 = vpop.permute.xlu0 %2673
        %2675 = vrot.lane.b32.xlu0 %v446, 120
        %v2676 = vpop.permute.xlu0 %2675
        %2677 = vrot.lane.b32.xlu0 %v447, 120
        %v2678 = vpop.permute.xlu0 %2677
        %2679 = vrot.lane.b32.xlu0 %v448, 120
        %v2680 = vpop.permute.xlu0 %2679
        %2681 = vrot.lane.b32.xlu0 %v449, 120
        %v2682 = vpop.permute.xlu0 %2681
        %2683 = vrot.lane.b32.xlu0 %v450, 120
        %v2684 = vpop.permute.xlu0 %2683
        %2685 = vrot.lane.b32.xlu0 %v451, 120
        %v2686 = vpop.permute.xlu0 %2685
        %2687 = vrot.lane.b32.xlu0 %v452, 120
        %v2688 = vpop.permute.xlu0 %2687
        %2689 = vrot.lane.b32.xlu0 %v453, 120
        %v2690 = vpop.permute.xlu0 %2689
        %vm2691 = vcmask 982016
        %v2692 = vsel %vm2691, %v2596, %v2598
        %v2693 = vsel %vm2691, %v2598, %v2600
        %v2694 = vsel %vm2691, %v2602, %v2604
        %v2695 = vsel %vm2691, %v2604, %v2606
        %v2696 = vsel %vm2691, %v2608, %v2610
        %v2697 = vsel %vm2691, %v2610, %v2612
        %v2698 = vsel %vm2691, %v2614, %v2616
        %v2699 = vsel %vm2691, %v2616, %v2618
        %v2700 = vsel %vm2691, %v2620, %v2622
        %v2701 = vsel %vm2691, %v2622, %v2624
        %v2702 = vsel %vm2691, %v2626, %v2628
        %v2703 = vsel %vm2691, %v2628, %v2630
        %v2704 = vsel %vm2691, %v2632, %v2634
        %v2705 = vsel %vm2691, %v2634, %v2636
        %v2706 = vsel %vm2691, %v2638, %v2640
        %v2707 = vsel %vm2691, %v2640, %v2642
        %v2708 = vsel %vm2691, %v2644, %v2646
        %v2709 = vsel %vm2691, %v2646, %v2648
        %v2710 = vsel %vm2691, %v2650, %v2652
        %v2711 = vsel %vm2691, %v2652, %v2654
        %v2712 = vsel %vm2691, %v2656, %v2658
        %v2713 = vsel %vm2691, %v2658, %v2660
        %v2714 = vsel %vm2691, %v2662, %v2664
        %v2715 = vsel %vm2691, %v2664, %v2666
        %v2716 = vsel %vm2691, %v2668, %v2670
        %v2717 = vsel %vm2691, %v2670, %v2672
        %v2718 = vsel %vm2691, %v2674, %v2676
        %v2719 = vsel %vm2691, %v2676, %v2678
        %v2720 = vsel %vm2691, %v2680, %v2682
        %v2721 = vsel %vm2691, %v2682, %v2684
        %v2722 = vsel %vm2691, %v2686, %v2688
        %v2723 = vsel %vm2691, %v2688, %v2690
        %2756 = vmatprep.subr.mxu0 %v2693
        %2757 = vmatpush1.msra.mxu0 %v2692
        %2758 = vmatprep.subr.mxu0 %v2695
        %2759 = vmatpush1.msra.mxu0 %v2694
        %2760 = vmatprep.subr.mxu0 %v2697
        %2761 = vmatpush1.msra.mxu0 %v2696
        %2762 = vmatprep.subr.mxu0 %v2699
        %2763 = vmatpush1.msra.mxu0 %v2698
        %2764 = vmatprep.subr.mxu0 %v2701
        %2765 = vmatpush1.msra.mxu0 %v2700
        %2766 = vmatprep.subr.mxu0 %v2703
        %2767 = vmatpush1.msra.mxu0 %v2702
        %2768 = vmatprep.subr.mxu0 %v2705
        %2769 = vmatpush1.msra.mxu0 %v2704
        %2770 = vmatprep.subr.mxu0 %v2707
        %2771 = vmatpush1.msra.mxu0 %v2706
        %2772 = vmatprep.subr.mxu0 %v2709
        %2773 = vmatpush1.msra.mxu0 %v2708
        %2774 = vmatprep.subr.mxu0 %v2711
        %2775 = vmatpush1.msra.mxu0 %v2710
        %2776 = vmatprep.subr.mxu0 %v2713
        %2777 = vmatpush1.msra.mxu0 %v2712
        %2778 = vmatprep.subr.mxu0 %v2715
        %2779 = vmatpush1.msra.mxu0 %v2714
        %2780 = vmatprep.subr.mxu0 %v2717
        %2781 = vmatpush1.msra.mxu0 %v2716
        %2782 = vmatprep.subr.mxu0 %v2719
        %2783 = vmatpush1.msra.mxu0 %v2718
        %2784 = vmatprep.subr.mxu0 %v2721
        %2785 = vmatpush1.msra.mxu0 %v2720
        %2786 = vmatprep.subr.mxu0 %v2723
        %2787 = vmatpush1.msra.mxu0 %v2722
        %2788 = vmatprep.subr.mxu0 0.0
        %2789 = vmatpush1.msra.mxu0 0.0
        %2790 = vmatprep.subr.mxu0 0.0
        %2791 = vmatpush1.msra.mxu0 0.0
        %2792 = vmatprep.subr.mxu0 0.0
        %2793 = vmatpush1.msra.mxu0 0.0
        %2794 = vmatprep.subr.mxu0 0.0
        %2795 = vmatpush1.msra.mxu0 0.0
        %2796 = vmatprep.subr.mxu0 0.0
        %2797 = vmatpush1.msra.mxu0 0.0
        %2798 = vmatprep.subr.mxu0 0.0
        %2799 = vmatpush1.msra.mxu0 0.0
        %2800 = vmatprep.subr.mxu0 0.0
        %2801 = vmatpush1.msra.mxu0 0.0
        %2802 = vmatprep.subr.mxu0 0.0
        %2803 = vmatpush1.msra.mxu0 0.0
        %2804 = vmatprep.subr.mxu0 0.0
        %2805 = vmatpush1.msra.mxu0 0.0
        %2806 = vmatprep.subr.mxu0 0.0
        %2807 = vmatpush1.msra.mxu0 0.0
        %2808 = vmatprep.subr.mxu0 0.0
        %2809 = vmatpush1.msra.mxu0 0.0
        %2810 = vmatprep.subr.mxu0 0.0
        %2811 = vmatpush1.msra.mxu0 0.0
        %2812 = vmatprep.subr.mxu0 0.0
        %2813 = vmatpush1.msra.mxu0 0.0
        %2814 = vmatprep.subr.mxu0 0.0
        %2815 = vmatpush1.msra.mxu0 0.0
        %2816 = vmatprep.subr.mxu0 0.0
        %2817 = vmatpush1.msra.mxu0 0.0
        %2818 = vmatprep.subr.mxu0 0.0
        %2819 = vmatpush1.msra.mxu0 0.0
        %2820 = vmatprep.mubr.f32.mxu0 0.0
        %2821 = vmatmul.mubr.f32.gmra.mrb[0].mxu0 %v2587
        %v2822 = vpop.f32.mrb[0].mxu0
        %v2823 = vadd.f32 0.0, %v2822
        %v2824 = vpop.f32.mrb[0].mxu0
        %v2825 = vadd.f32 0.0, %v2824
        %2826 = vmatprep.mubr.f32.mxu0 0.0
        %2827 = vmatmul.mubr.f32.gmra.mrb[0].mxu0 %v2588
        %v2828 = vpop.f32.mrb[0].mxu0
        %v2829 = vadd.f32 0.0, %v2828
        %v2830 = vpop.f32.mrb[0].mxu0
        %v2831 = vadd.f32 0.0, %v2830
        %2832 = vmatprep.mubr.f32.mxu0 0.0
        %2833 = vmatmul.mubr.f32.gmra.mrb[0].mxu0 %v2589
        %v2834 = vpop.f32.mrb[0].mxu0
        %v2835 = vadd.f32 0.0, %v2834
        %v2836 = vpop.f32.mrb[0].mxu0
        %v2837 = vadd.f32 0.0, %v2836
        %2838 = vmatprep.mubr.f32.mxu0 0.0
        %2839 = vmatmul.mubr.f32.gmra.mrb[0].mxu0 %v2590
        %v2840 = vpop.f32.mrb[0].mxu0
        %v2841 = vadd.f32 0.0, %v2840
        %v2842 = vpop.f32.mrb[0].mxu0
        %v2843 = vadd.f32 0.0, %v2842
        %2844 = vmatprep.mubr.f32.mxu0 0.0
        %2845 = vmatmul.mubr.f32.gmra.mrb[0].mxu0 %v2591
        %v2846 = vpop.f32.mrb[0].mxu0
        %v2847 = vadd.f32 0.0, %v2846
        %v2848 = vpop.f32.mrb[0].mxu0
        %v2849 = vadd.f32 0.0, %v2848
        %2850 = vmatprep.mubr.f32.mxu0 0.0
        %2851 = vmatmul.mubr.f32.gmra.mrb[0].mxu0 %v2592
        %v2852 = vpop.f32.mrb[0].mxu0
        %v2853 = vadd.f32 0.0, %v2852
        %v2854 = vpop.f32.mrb[0].mxu0
        %v2855 = vadd.f32 0.0, %v2854
        %2856 = vmatprep.mubr.f32.mxu0 0.0
        %2857 = vmatmul.mubr.f32.gmra.mrb[0].mxu0 %v2593
        %v2858 = vpop.f32.mrb[0].mxu0
        %v2859 = vadd.f32 0.0, %v2858
        %v2860 = vpop.f32.mrb[0].mxu0
        %v2861 = vadd.f32 0.0, %v2860
        %2862 = vmatprep.mubr.f32.mxu0 0.0
        %2863 = vmatmul.mubr.f32.gmra.mrb[0].mxu0 %v2594
        %v2864 = vpop.f32.mrb[0].mxu0
        %v2865 = vadd.f32 0.0, %v2864
        %v2866 = vpop.f32.mrb[0].mxu0
        %v2867 = vadd.f32 0.0, %v2866
        %2868 = vdwg.mxu0
        %v2869 = vadd.f32 %v2570, %v2823
        %v2870 = vadd.f32 %v2571, %v2825
        %v2871 = vadd.f32 %v2572, %v2829
        %v2872 = vadd.f32 %v2573, %v2831
        %v2873 = vadd.f32 %v2574, %v2835
        %v2874 = vadd.f32 %v2575, %v2837
        %v2875 = vadd.f32 %v2576, %v2841
        %v2876 = vadd.f32 %v2577, %v2843
        %v2877 = vadd.f32 %v2578, %v2847
        %v2878 = vadd.f32 %v2579, %v2849
        %v2879 = vadd.f32 %v2580, %v2853
        %v2880 = vadd.f32 %v2581, %v2855
        %v2881 = vadd.f32 %v2582, %v2859
        %v2882 = vadd.f32 %v2583, %v2861
        %v2883 = vadd.f32 %v2584, %v2865
        %v2884 = vadd.f32 %v2585, %v2867
        %s2885 = scalar_lea.vmem %s3, 576
        %v2886 = vld [vmem:[%s2885] sm:$0xff]
        %v2887 = vld [vmem:[%s2885 + $0x8] sm:$0xff]
        %v2888 = vld [vmem:[%s2885 + $0x10] sm:$0xff]
        %v2889 = vld [vmem:[%s2885 + $0x18] sm:$0xff]
        %v2890 = vld [vmem:[%s2885 + $0x20] sm:$0xff]
        %v2891 = vld [vmem:[%s2885 + $0x28] sm:$0xff]
        %v2892 = vld [vmem:[%s2885 + $0x30] sm:$0xff]
        %v2893 = vld [vmem:[%s2885 + $0x38] sm:$0xff]
        %2894 = vrot.lane.b32.xlu0 %v406, 119
        %v2895 = vpop.permute.xlu0 %2894
        %2896 = vrot.lane.b32.xlu0 %v407, 119
        %v2897 = vpop.permute.xlu0 %2896
        %2898 = vrot.lane.b32.xlu0 %v408, 119
        %v2899 = vpop.permute.xlu0 %2898
        %2900 = vrot.lane.b32.xlu0 %v409, 119
        %v2901 = vpop.permute.xlu0 %2900
        %2902 = vrot.lane.b32.xlu0 %v410, 119
        %v2903 = vpop.permute.xlu0 %2902
        %2904 = vrot.lane.b32.xlu0 %v411, 119
        %v2905 = vpop.permute.xlu0 %2904
        %2906 = vrot.lane.b32.xlu0 %v412, 119
        %v2907 = vpop.permute.xlu0 %2906
        %2908 = vrot.lane.b32.xlu0 %v413, 119
        %v2909 = vpop.permute.xlu0 %2908
        %2910 = vrot.lane.b32.xlu0 %v414, 119
        %v2911 = vpop.permute.xlu0 %2910
        %2912 = vrot.lane.b32.xlu0 %v415, 119
        %v2913 = vpop.permute.xlu0 %2912
        %2914 = vrot.lane.b32.xlu0 %v416, 119
        %v2915 = vpop.permute.xlu0 %2914
        %2916 = vrot.lane.b32.xlu0 %v417, 119
        %v2917 = vpop.permute.xlu0 %2916
        %2918 = vrot.lane.b32.xlu0 %v418, 119
        %v2919 = vpop.permute.xlu0 %2918
        %2920 = vrot.lane.b32.xlu0 %v419, 119
        %v2921 = vpop.permute.xlu0 %2920
        %2922 = vrot.lane.b32.xlu0 %v420, 119
        %v2923 = vpop.permute.xlu0 %2922
        %2924 = vrot.lane.b32.xlu0 %v421, 119
        %v2925 = vpop.permute.xlu0 %2924
        %2926 = vrot.lane.b32.xlu0 %v422, 119
        %v2927 = vpop.permute.xlu0 %2926
        %2928 = vrot.lane.b32.xlu0 %v423, 119
        %v2929 = vpop.permute.xlu0 %2928
        %2930 = vrot.lane.b32.xlu0 %v424, 119
        %v2931 = vpop.permute.xlu0 %2930
        %2932 = vrot.lane.b32.xlu0 %v425, 119
        %v2933 = vpop.permute.xlu0 %2932
        %2934 = vrot.lane.b32.xlu0 %v426, 119
        %v2935 = vpop.permute.xlu0 %2934
        %2936 = vrot.lane.b32.xlu0 %v427, 119
        %v2937 = vpop.permute.xlu0 %2936
        %2938 = vrot.lane.b32.xlu0 %v428, 119
        %v2939 = vpop.permute.xlu0 %2938
        %2940 = vrot.lane.b32.xlu0 %v429, 119
        %v2941 = vpop.permute.xlu0 %2940
        %2942 = vrot.lane.b32.xlu0 %v430, 119
        %v2943 = vpop.permute.xlu0 %2942
        %2944 = vrot.lane.b32.xlu0 %v431, 119
        %v2945 = vpop.permute.xlu0 %2944
        %2946 = vrot.lane.b32.xlu0 %v432, 119
        %v2947 = vpop.permute.xlu0 %2946
        %2948 = vrot.lane.b32.xlu0 %v433, 119
        %v2949 = vpop.permute.xlu0 %2948
        %2950 = vrot.lane.b32.xlu0 %v434, 119
        %v2951 = vpop.permute.xlu0 %2950
        %2952 = vrot.lane.b32.xlu0 %v435, 119
        %v2953 = vpop.permute.xlu0 %2952
        %2954 = vrot.lane.b32.xlu0 %v436, 119
        %v2955 = vpop.permute.xlu0 %2954
        %2956 = vrot.lane.b32.xlu0 %v437, 119
        %v2957 = vpop.permute.xlu0 %2956
        %2958 = vrot.lane.b32.xlu0 %v438, 119
        %v2959 = vpop.permute.xlu0 %2958
        %2960 = vrot.lane.b32.xlu0 %v439, 119
        %v2961 = vpop.permute.xlu0 %2960
        %2962 = vrot.lane.b32.xlu0 %v440, 119
        %v2963 = vpop.permute.xlu0 %2962
        %2964 = vrot.lane.b32.xlu0 %v441, 119
        %v2965 = vpop.permute.xlu0 %2964
        %2966 = vrot.lane.b32.xlu0 %v442, 119
        %v2967 = vpop.permute.xlu0 %2966
        %2968 = vrot.lane.b32.xlu0 %v443, 119
        %v2969 = vpop.permute.xlu0 %2968
        %2970 = vrot.lane.b32.xlu0 %v444, 119
        %v2971 = vpop.permute.xlu0 %2970
        %2972 = vrot.lane.b32.xlu0 %v445, 119
        %v2973 = vpop.permute.xlu0 %2972
        %2974 = vrot.lane.b32.xlu0 %v446, 119
        %v2975 = vpop.permute.xlu0 %2974
        %2976 = vrot.lane.b32.xlu0 %v447, 119
        %v2977 = vpop.permute.xlu0 %2976
        %2978 = vrot.lane.b32.xlu0 %v448, 119
        %v2979 = vpop.permute.xlu0 %2978
        %2980 = vrot.lane.b32.xlu0 %v449, 119
        %v2981 = vpop.permute.xlu0 %2980
        %2982 = vrot.lane.b32.xlu0 %v450, 119
        %v2983 = vpop.permute.xlu0 %2982
        %2984 = vrot.lane.b32.xlu0 %v451, 119
        %v2985 = vpop.permute.xlu0 %2984
        %2986 = vrot.lane.b32.xlu0 %v452, 119
        %v2987 = vpop.permute.xlu0 %2986
        %2988 = vrot.lane.b32.xlu0 %v453, 119
        %v2989 = vpop.permute.xlu0 %2988
        %vm2990 = vcmask 973824
        %v2991 = vsel %vm2990, %v2895, %v2897
        %v2992 = vsel %vm2990, %v2897, %v2899
        %v2993 = vsel %vm2990, %v2901, %v2903
        %v2994 = vsel %vm2990, %v2903, %v2905
        %v2995 = vsel %vm2990, %v2907, %v2909
        %v2996 = vsel %vm2990, %v2909, %v2911
        %v2997 = vsel %vm2990, %v2913, %v2915
        %v2998 = vsel %vm2990, %v2915, %v2917
        %v2999 = vsel %vm2990, %v2919, %v2921
        %v3000 = vsel %vm2990, %v2921, %v2923
        %v3001 = vsel %vm2990, %v2925, %v2927
        %v3002 = vsel %vm2990, %v2927, %v2929
        %v3003 = vsel %vm2990, %v2931, %v2933
        %v3004 = vsel %vm2990, %v2933, %v2935
        %v3005 = vsel %vm2990, %v2937, %v2939
        %v3006 = vsel %vm2990, %v2939, %v2941
        %v3007 = vsel %vm2990, %v2943, %v2945
        %v3008 = vsel %vm2990, %v2945, %v2947
        %v3009 = vsel %vm2990, %v2949, %v2951
        %v3010 = vsel %vm2990, %v2951, %v2953
        %v3011 = vsel %vm2990, %v2955, %v2957
        %v3012 = vsel %vm2990, %v2957, %v2959
        %v3013 = vsel %vm2990, %v2961, %v2963
        %v3014 = vsel %vm2990, %v2963, %v2965
        %v3015 = vsel %vm2990, %v2967, %v2969
        %v3016 = vsel %vm2990, %v2969, %v2971
        %v3017 = vsel %vm2990, %v2973, %v2975
        %v3018 = vsel %vm2990, %v2975, %v2977
        %v3019 = vsel %vm2990, %v2979, %v2981
        %v3020 = vsel %vm2990, %v2981, %v2983
        %v3021 = vsel %vm2990, %v2985, %v2987
        %v3022 = vsel %vm2990, %v2987, %v2989
        %3055 = vmatprep.subr.mxu0 %v2992
        %3056 = vmatpush1.msra.mxu0 %v2991
        %3057 = vmatprep.subr.mxu0 %v2994
        %3058 = vmatpush1.msra.mxu0 %v2993
        %3059 = vmatprep.subr.mxu0 %v2996
        %3060 = vmatpush1.msra.mxu0 %v2995
        %3061 = vmatprep.subr.mxu0 %v2998
        %3062 = vmatpush1.msra.mxu0 %v2997
        %3063 = vmatprep.subr.mxu0 %v3000
        %3064 = vmatpush1.msra.mxu0 %v2999
        %3065 = vmatprep.subr.mxu0 %v3002
        %3066 = vmatpush1.msra.mxu0 %v3001
        %3067 = vmatprep.subr.mxu0 %v3004
        %3068 = vmatpush1.msra.mxu0 %v3003
        %3069 = vmatprep.subr.mxu0 %v3006
        %3070 = vmatpush1.msra.mxu0 %v3005
        %3071 = vmatprep.subr.mxu0 %v3008
        %3072 = vmatpush1.msra.mxu0 %v3007
        %3073 = vmatprep.subr.mxu0 %v3010
        %3074 = vmatpush1.msra.mxu0 %v3009
        %3075 = vmatprep.subr.mxu0 %v3012
        %3076 = vmatpush1.msra.mxu0 %v3011
        %3077 = vmatprep.subr.mxu0 %v3014
        %3078 = vmatpush1.msra.mxu0 %v3013
        %3079 = vmatprep.subr.mxu0 %v3016
        %3080 = vmatpush1.msra.mxu0 %v3015
        %3081 = vmatprep.subr.mxu0 %v3018
        %3082 = vmatpush1.msra.mxu0 %v3017
        %3083 = vmatprep.subr.mxu0 %v3020
        %3084 = vmatpush1.msra.mxu0 %v3019
        %3085 = vmatprep.subr.mxu0 %v3022
        %3086 = vmatpush1.msra.mxu0 %v3021
        %3087 = vmatprep.subr.mxu0 0.0
        %3088 = vmatpush1.msra.mxu0 0.0
        %3089 = vmatprep.subr.mxu0 0.0
        %3090 = vmatpush1.msra.mxu0 0.0
        %3091 = vmatprep.subr.mxu0 0.0
        %3092 = vmatpush1.msra.mxu0 0.0
        %3093 = vmatprep.subr.mxu0 0.0
        %3094 = vmatpush1.msra.mxu0 0.0
        %3095 = vmatprep.subr.mxu0 0.0
        %3096 = vmatpush1.msra.mxu0 0.0
        %3097 = vmatprep.subr.mxu0 0.0
        %3098 = vmatpush1.msra.mxu0 0.0
        %3099 = vmatprep.subr.mxu0 0.0
        %3100 = vmatpush1.msra.mxu0 0.0
        %3101 = vmatprep.subr.mxu0 0.0
        %3102 = vmatpush1.msra.mxu0 0.0
        %3103 = vmatprep.subr.mxu0 0.0
        %3104 = vmatpush1.msra.mxu0 0.0
        %3105 = vmatprep.subr.mxu0 0.0
        %3106 = vmatpush1.msra.mxu0 0.0
        %3107 = vmatprep.subr.mxu0 0.0
        %3108 = vmatpush1.msra.mxu0 0.0
        %3109 = vmatprep.subr.mxu0 0.0
        %3110 = vmatpush1.msra.mxu0 0.0
        %3111 = vmatprep.subr.mxu0 0.0
        %3112 = vmatpush1.msra.mxu0 0.0
        %3113 = vmatprep.subr.mxu0 0.0
        %3114 = vmatpush1.msra.mxu0 0.0
        %3115 = vmatprep.subr.mxu0 0.0
        %3116 = vmatpush1.msra.mxu0 0.0
        %3117 = vmatprep.subr.mxu0 0.0
        %3118 = vmatpush1.msra.mxu0 0.0
        %3119 = vmatprep.mubr.f32.mxu0 0.0
        %3120 = vmatmul.mubr.f32.gmra.mrb[0].mxu0 %v2886
        %v3121 = vpop.f32.mrb[0].mxu0
        %v3122 = vadd.f32 0.0, %v3121
        %v3123 = vpop.f32.mrb[0].mxu0
        %v3124 = vadd.f32 0.0, %v3123
        %3125 = vmatprep.mubr.f32.mxu0 0.0
        %3126 = vmatmul.mubr.f32.gmra.mrb[0].mxu0 %v2887
        %v3127 = vpop.f32.mrb[0].mxu0
        %v3128 = vadd.f32 0.0, %v3127
        %v3129 = vpop.f32.mrb[0].mxu0
        %v3130 = vadd.f32 0.0, %v3129
        %3131 = vmatprep.mubr.f32.mxu0 0.0
        %3132 = vmatmul.mubr.f32.gmra.mrb[0].mxu0 %v2888
        %v3133 = vpop.f32.mrb[0].mxu0
        %v3134 = vadd.f32 0.0, %v3133
        %v3135 = vpop.f32.mrb[0].mxu0
        %v3136 = vadd.f32 0.0, %v3135
        %3137 = vmatprep.mubr.f32.mxu0 0.0
        %3138 = vmatmul.mubr.f32.gmra.mrb[0].mxu0 %v2889
        %v3139 = vpop.f32.mrb[0].mxu0
        %v3140 = vadd.f32 0.0, %v3139
        %v3141 = vpop.f32.mrb[0].mxu0
        %v3142 = vadd.f32 0.0, %v3141
        %3143 = vmatprep.mubr.f32.mxu0 0.0
        %3144 = vmatmul.mubr.f32.gmra.mrb[0].mxu0 %v2890
        %v3145 = vpop.f32.mrb[0].mxu0
        %v3146 = vadd.f32 0.0, %v3145
        %v3147 = vpop.f32.mrb[0].mxu0
        %v3148 = vadd.f32 0.0, %v3147
        %3149 = vmatprep.mubr.f32.mxu0 0.0
        %3150 = vmatmul.mubr.f32.gmra.mrb[0].mxu0 %v2891
        %v3151 = vpop.f32.mrb[0].mxu0
        %v3152 = vadd.f32 0.0, %v3151
        %v3153 = vpop.f32.mrb[0].mxu0
        %v3154 = vadd.f32 0.0, %v3153
        %3155 = vmatprep.mubr.f32.mxu0 0.0
        %3156 = vmatmul.mubr.f32.gmra.mrb[0].mxu0 %v2892
        %v3157 = vpop.f32.mrb[0].mxu0
        %v3158 = vadd.f32 0.0, %v3157
        %v3159 = vpop.f32.mrb[0].mxu0
        %v3160 = vadd.f32 0.0, %v3159
        %3161 = vmatprep.mubr.f32.mxu0 0.0
        %3162 = vmatmul.mubr.f32.gmra.mrb[0].mxu0 %v2893
        %v3163 = vpop.f32.mrb[0].mxu0
        %v3164 = vadd.f32 0.0, %v3163
        %v3165 = vpop.f32.mrb[0].mxu0
        %v3166 = vadd.f32 0.0, %v3165
        %3167 = vdwg.mxu0
        %v3168 = vadd.f32 %v2869, %v3122
        %v3169 = vadd.f32 %v2870, %v3124
        %v3170 = vadd.f32 %v2871, %v3128
        %v3171 = vadd.f32 %v2872, %v3130
        %v3172 = vadd.f32 %v2873, %v3134
        %v3173 = vadd.f32 %v2874, %v3136
        %v3174 = vadd.f32 %v2875, %v3140
        %v3175 = vadd.f32 %v2876, %v3142
        %v3176 = vadd.f32 %v2877, %v3146
        %v3177 = vadd.f32 %v2878, %v3148
        %v3178 = vadd.f32 %v2879, %v3152
        %v3179 = vadd.f32 %v2880, %v3154
        %v3180 = vadd.f32 %v2881, %v3158
        %v3181 = vadd.f32 %v2882, %v3160
        %v3182 = vadd.f32 %v2883, %v3164
        %v3183 = vadd.f32 %v2884, %v3166
        %s3184 = scalar_lea.vmem %s3, 640
        %v3185 = vld [vmem:[%s3184] sm:$0xff]
        %v3186 = vld [vmem:[%s3184 + $0x8] sm:$0xff]
        %v3187 = vld [vmem:[%s3184 + $0x10] sm:$0xff]
        %v3188 = vld [vmem:[%s3184 + $0x18] sm:$0xff]
        %v3189 = vld [vmem:[%s3184 + $0x20] sm:$0xff]
        %v3190 = vld [vmem:[%s3184 + $0x28] sm:$0xff]
        %v3191 = vld [vmem:[%s3184 + $0x30] sm:$0xff]
        %v3192 = vld [vmem:[%s3184 + $0x38] sm:$0xff]
        %3193 = vrot.lane.b32.xlu0 %v406, 118
        %v3194 = vpop.permute.xlu0 %3193
        %3195 = vrot.lane.b32.xlu0 %v407, 118
        %v3196 = vpop.permute.xlu0 %3195
        %3197 = vrot.lane.b32.xlu0 %v408, 118
        %v3198 = vpop.permute.xlu0 %3197
        %3199 = vrot.lane.b32.xlu0 %v409, 118
        %v3200 = vpop.permute.xlu0 %3199
        %3201 = vrot.lane.b32.xlu0 %v410, 118
        %v3202 = vpop.permute.xlu0 %3201
        %3203 = vrot.lane.b32.xlu0 %v411, 118
        %v3204 = vpop.permute.xlu0 %3203
        %3205 = vrot.lane.b32.xlu0 %v412, 118
        %v3206 = vpop.permute.xlu0 %3205
        %3207 = vrot.lane.b32.xlu0 %v413, 118
        %v3208 = vpop.permute.xlu0 %3207
        %3209 = vrot.lane.b32.xlu0 %v414, 118
        %v3210 = vpop.permute.xlu0 %3209
        %3211 = vrot.lane.b32.xlu0 %v415, 118
        %v3212 = vpop.permute.xlu0 %3211
        %3213 = vrot.lane.b32.xlu0 %v416, 118
        %v3214 = vpop.permute.xlu0 %3213
        %3215 = vrot.lane.b32.xlu0 %v417, 118
        %v3216 = vpop.permute.xlu0 %3215
        %3217 = vrot.lane.b32.xlu0 %v418, 118
        %v3218 = vpop.permute.xlu0 %3217
        %3219 = vrot.lane.b32.xlu0 %v419, 118
        %v3220 = vpop.permute.xlu0 %3219
        %3221 = vrot.lane.b32.xlu0 %v420, 118
        %v3222 = vpop.permute.xlu0 %3221
        %3223 = vrot.lane.b32.xlu0 %v421, 118
        %v3224 = vpop.permute.xlu0 %3223
        %3225 = vrot.lane.b32.xlu0 %v422, 118
        %v3226 = vpop.permute.xlu0 %3225
        %3227 = vrot.lane.b32.xlu0 %v423, 118
        %v3228 = vpop.permute.xlu0 %3227
        %3229 = vrot.lane.b32.xlu0 %v424, 118
        %v3230 = vpop.permute.xlu0 %3229
        %3231 = vrot.lane.b32.xlu0 %v425, 118
        %v3232 = vpop.permute.xlu0 %3231
        %3233 = vrot.lane.b32.xlu0 %v426, 118
        %v3234 = vpop.permute.xlu0 %3233
        %3235 = vrot.lane.b32.xlu0 %v427, 118
        %v3236 = vpop.permute.xlu0 %3235
        %3237 = vrot.lane.b32.xlu0 %v428, 118
        %v3238 = vpop.permute.xlu0 %3237
        %3239 = vrot.lane.b32.xlu0 %v429, 118
        %v3240 = vpop.permute.xlu0 %3239
        %3241 = vrot.lane.b32.xlu0 %v430, 118
        %v3242 = vpop.permute.xlu0 %3241
        %3243 = vrot.lane.b32.xlu0 %v431, 118
        %v3244 = vpop.permute.xlu0 %3243
        %3245 = vrot.lane.b32.xlu0 %v432, 118
        %v3246 = vpop.permute.xlu0 %3245
        %3247 = vrot.lane.b32.xlu0 %v433, 118
        %v3248 = vpop.permute.xlu0 %3247
        %3249 = vrot.lane.b32.xlu0 %v434, 118
        %v3250 = vpop.permute.xlu0 %3249
        %3251 = vrot.lane.b32.xlu0 %v435, 118
        %v3252 = vpop.permute.xlu0 %3251
        %3253 = vrot.lane.b32.xlu0 %v436, 118
        %v3254 = vpop.permute.xlu0 %3253
        %3255 = vrot.lane.b32.xlu0 %v437, 118
        %v3256 = vpop.permute.xlu0 %3255
        %3257 = vrot.lane.b32.xlu0 %v438, 118
        %v3258 = vpop.permute.xlu0 %3257
        %3259 = vrot.lane.b32.xlu0 %v439, 118
        %v3260 = vpop.permute.xlu0 %3259
        %3261 = vrot.lane.b32.xlu0 %v440, 118
        %v3262 = vpop.permute.xlu0 %3261
        %3263 = vrot.lane.b32.xlu0 %v441, 118
        %v3264 = vpop.permute.xlu0 %3263
        %3265 = vrot.lane.b32.xlu0 %v442, 118
        %v3266 = vpop.permute.xlu0 %3265
        %3267 = vrot.lane.b32.xlu0 %v443, 118
        %v3268 = vpop.permute.xlu0 %3267
        %3269 = vrot.lane.b32.xlu0 %v444, 118
        %v3270 = vpop.permute.xlu0 %3269
        %3271 = vrot.lane.b32.xlu0 %v445, 118
        %v3272 = vpop.permute.xlu0 %3271
        %3273 = vrot.lane.b32.xlu0 %v446, 118
        %v3274 = vpop.permute.xlu0 %3273
        %3275 = vrot.lane.b32.xlu0 %v447, 118
        %v3276 = vpop.permute.xlu0 %3275
        %3277 = vrot.lane.b32.xlu0 %v448, 118
        %v3278 = vpop.permute.xlu0 %3277
        %3279 = vrot.lane.b32.xlu0 %v449, 118
        %v3280 = vpop.permute.xlu0 %3279
        %3281 = vrot.lane.b32.xlu0 %v450, 118
        %v3282 = vpop.permute.xlu0 %3281
        %3283 = vrot.lane.b32.xlu0 %v451, 118
        %v3284 = vpop.permute.xlu0 %3283
        %3285 = vrot.lane.b32.xlu0 %v452, 118
        %v3286 = vpop.permute.xlu0 %3285
        %3287 = vrot.lane.b32.xlu0 %v453, 118
        %v3288 = vpop.permute.xlu0 %3287
        %vm3289 = vcmask 965632
        %v3290 = vsel %vm3289, %v3194, %v3196
        %v3291 = vsel %vm3289, %v3196, %v3198
        %v3292 = vsel %vm3289, %v3200, %v3202
        %v3293 = vsel %vm3289, %v3202, %v3204
        %v3294 = vsel %vm3289, %v3206, %v3208
        %v3295 = vsel %vm3289, %v3208, %v3210
        %v3296 = vsel %vm3289, %v3212, %v3214
        %v3297 = vsel %vm3289, %v3214, %v3216
        %v3298 = vsel %vm3289, %v3218, %v3220
        %v3299 = vsel %vm3289, %v3220, %v3222
        %v3300 = vsel %vm3289, %v3224, %v3226
        %v3301 = vsel %vm3289, %v3226, %v3228
        %v3302 = vsel %vm3289, %v3230, %v3232
        %v3303 = vsel %vm3289, %v3232, %v3234
        %v3304 = vsel %vm3289, %v3236, %v3238
        %v3305 = vsel %vm3289, %v3238, %v3240
        %v3306 = vsel %vm3289, %v3242, %v3244
        %v3307 = vsel %vm3289, %v3244, %v3246
        %v3308 = vsel %vm3289, %v3248, %v3250
        %v3309 = vsel %vm3289, %v3250, %v3252
        %v3310 = vsel %vm3289, %v3254, %v3256
        %v3311 = vsel %vm3289, %v3256, %v3258
        %v3312 = vsel %vm3289, %v3260, %v3262
        %v3313 = vsel %vm3289, %v3262, %v3264
        %v3314 = vsel %vm3289, %v3266, %v3268
        %v3315 = vsel %vm3289, %v3268, %v3270
        %v3316 = vsel %vm3289, %v3272, %v3274
        %v3317 = vsel %vm3289, %v3274, %v3276
        %v3318 = vsel %vm3289, %v3278, %v3280
        %v3319 = vsel %vm3289, %v3280, %v3282
        %v3320 = vsel %vm3289, %v3284, %v3286
        %v3321 = vsel %vm3289, %v3286, %v3288
        %3354 = vmatprep.subr.mxu0 %v3291
        %3355 = vmatpush1.msra.mxu0 %v3290
        %3356 = vmatprep.subr.mxu0 %v3293
        %3357 = vmatpush1.msra.mxu0 %v3292
        %3358 = vmatprep.subr.mxu0 %v3295
        %3359 = vmatpush1.msra.mxu0 %v3294
        %3360 = vmatprep.subr.mxu0 %v3297
        %3361 = vmatpush1.msra.mxu0 %v3296
        %3362 = vmatprep.subr.mxu0 %v3299
        %3363 = vmatpush1.msra.mxu0 %v3298
        %3364 = vmatprep.subr.mxu0 %v3301
        %3365 = vmatpush1.msra.mxu0 %v3300
        %3366 = vmatprep.subr.mxu0 %v3303
        %3367 = vmatpush1.msra.mxu0 %v3302
        %3368 = vmatprep.subr.mxu0 %v3305
        %3369 = vmatpush1.msra.mxu0 %v3304
        %3370 = vmatprep.subr.mxu0 %v3307
        %3371 = vmatpush1.msra.mxu0 %v3306
        %3372 = vmatprep.subr.mxu0 %v3309
        %3373 = vmatpush1.msra.mxu0 %v3308
        %3374 = vmatprep.subr.mxu0 %v3311
        %3375 = vmatpush1.msra.mxu0 %v3310
        %3376 = vmatprep.subr.mxu0 %v3313
        %3377 = vmatpush1.msra.mxu0 %v3312
        %3378 = vmatprep.subr.mxu0 %v3315
        %3379 = vmatpush1.msra.mxu0 %v3314
        %3380 = vmatprep.subr.mxu0 %v3317
        %3381 = vmatpush1.msra.mxu0 %v3316
        %3382 = vmatprep.subr.mxu0 %v3319
        %3383 = vmatpush1.msra.mxu0 %v3318
        %3384 = vmatprep.subr.mxu0 %v3321
        %3385 = vmatpush1.msra.mxu0 %v3320
        %3386 = vmatprep.subr.mxu0 0.0
        %3387 = vmatpush1.msra.mxu0 0.0
        %3388 = vmatprep.subr.mxu0 0.0
        %3389 = vmatpush1.msra.mxu0 0.0
        %3390 = vmatprep.subr.mxu0 0.0
        %3391 = vmatpush1.msra.mxu0 0.0
        %3392 = vmatprep.subr.mxu0 0.0
        %3393 = vmatpush1.msra.mxu0 0.0
        %3394 = vmatprep.subr.mxu0 0.0
        %3395 = vmatpush1.msra.mxu0 0.0
        %3396 = vmatprep.subr.mxu0 0.0
        %3397 = vmatpush1.msra.mxu0 0.0
        %3398 = vmatprep.subr.mxu0 0.0
        %3399 = vmatpush1.msra.mxu0 0.0
        %3400 = vmatprep.subr.mxu0 0.0
        %3401 = vmatpush1.msra.mxu0 0.0
        %3402 = vmatprep.subr.mxu0 0.0
        %3403 = vmatpush1.msra.mxu0 0.0
        %3404 = vmatprep.subr.mxu0 0.0
        %3405 = vmatpush1.msra.mxu0 0.0
        %3406 = vmatprep.subr.mxu0 0.0
        %3407 = vmatpush1.msra.mxu0 0.0
        %3408 = vmatprep.subr.mxu0 0.0
        %3409 = vmatpush1.msra.mxu0 0.0
        %3410 = vmatprep.subr.mxu0 0.0
        %3411 = vmatpush1.msra.mxu0 0.0
        %3412 = vmatprep.subr.mxu0 0.0
        %3413 = vmatpush1.msra.mxu0 0.0
        %3414 = vmatprep.subr.mxu0 0.0
        %3415 = vmatpush1.msra.mxu0 0.0
        %3416 = vmatprep.subr.mxu0 0.0
        %3417 = vmatpush1.msra.mxu0 0.0
        %3418 = vmatprep.mubr.f32.mxu0 0.0
        %3419 = vmatmul.mubr.f32.gmra.mrb[0].mxu0 %v3185
        %v3420 = vpop.f32.mrb[0].mxu0
        %v3421 = vadd.f32 0.0, %v3420
        %v3422 = vpop.f32.mrb[0].mxu0
        %v3423 = vadd.f32 0.0, %v3422
        %3424 = vmatprep.mubr.f32.mxu0 0.0
        %3425 = vmatmul.mubr.f32.gmra.mrb[0].mxu0 %v3186
        %v3426 = vpop.f32.mrb[0].mxu0
        %v3427 = vadd.f32 0.0, %v3426
        %v3428 = vpop.f32.mrb[0].mxu0
        %v3429 = vadd.f32 0.0, %v3428
        %3430 = vmatprep.mubr.f32.mxu0 0.0
        %3431 = vmatmul.mubr.f32.gmra.mrb[0].mxu0 %v3187
        %v3432 = vpop.f32.mrb[0].mxu0
        %v3433 = vadd.f32 0.0, %v3432
        %v3434 = vpop.f32.mrb[0].mxu0
        %v3435 = vadd.f32 0.0, %v3434
        %3436 = vmatprep.mubr.f32.mxu0 0.0
        %3437 = vmatmul.mubr.f32.gmra.mrb[0].mxu0 %v3188
        %v3438 = vpop.f32.mrb[0].mxu0
        %v3439 = vadd.f32 0.0, %v3438
        %v3440 = vpop.f32.mrb[0].mxu0
        %v3441 = vadd.f32 0.0, %v3440
        %3442 = vmatprep.mubr.f32.mxu0 0.0
        %3443 = vmatmul.mubr.f32.gmra.mrb[0].mxu0 %v3189
        %v3444 = vpop.f32.mrb[0].mxu0
        %v3445 = vadd.f32 0.0, %v3444
        %v3446 = vpop.f32.mrb[0].mxu0
        %v3447 = vadd.f32 0.0, %v3446
        %3448 = vmatprep.mubr.f32.mxu0 0.0
        %3449 = vmatmul.mubr.f32.gmra.mrb[0].mxu0 %v3190
        %v3450 = vpop.f32.mrb[0].mxu0
        %v3451 = vadd.f32 0.0, %v3450
        %v3452 = vpop.f32.mrb[0].mxu0
        %v3453 = vadd.f32 0.0, %v3452
        %3454 = vmatprep.mubr.f32.mxu0 0.0
        %3455 = vmatmul.mubr.f32.gmra.mrb[0].mxu0 %v3191
        %v3456 = vpop.f32.mrb[0].mxu0
        %v3457 = vadd.f32 0.0, %v3456
        %v3458 = vpop.f32.mrb[0].mxu0
        %v3459 = vadd.f32 0.0, %v3458
        %3460 = vmatprep.mubr.f32.mxu0 0.0
        %3461 = vmatmul.mubr.f32.gmra.mrb[0].mxu0 %v3192
        %v3462 = vpop.f32.mrb[0].mxu0
        %v3463 = vadd.f32 0.0, %v3462
        %v3464 = vpop.f32.mrb[0].mxu0
        %v3465 = vadd.f32 0.0, %v3464
        %3466 = vdwg.mxu0
        %v3467 = vadd.f32 %v3168, %v3421
        %v3468 = vadd.f32 %v3169, %v3423
        %v3469 = vadd.f32 %v3170, %v3427
        %v3470 = vadd.f32 %v3171, %v3429
        %v3471 = vadd.f32 %v3172, %v3433
        %v3472 = vadd.f32 %v3173, %v3435
        %v3473 = vadd.f32 %v3174, %v3439
        %v3474 = vadd.f32 %v3175, %v3441
        %v3475 = vadd.f32 %v3176, %v3445
        %v3476 = vadd.f32 %v3177, %v3447
        %v3477 = vadd.f32 %v3178, %v3451
        %v3478 = vadd.f32 %v3179, %v3453
        %v3479 = vadd.f32 %v3180, %v3457
        %v3480 = vadd.f32 %v3181, %v3459
        %v3481 = vadd.f32 %v3182, %v3463
        %v3482 = vadd.f32 %v3183, %v3465
        %s3483 = scalar_lea.vmem %s3, 704
        %v3484 = vld [vmem:[%s3483] sm:$0xff]
        %v3485 = vld [vmem:[%s3483 + $0x8] sm:$0xff]
        %v3486 = vld [vmem:[%s3483 + $0x10] sm:$0xff]
        %v3487 = vld [vmem:[%s3483 + $0x18] sm:$0xff]
        %v3488 = vld [vmem:[%s3483 + $0x20] sm:$0xff]
        %v3489 = vld [vmem:[%s3483 + $0x28] sm:$0xff]
        %v3490 = vld [vmem:[%s3483 + $0x30] sm:$0xff]
        %v3491 = vld [vmem:[%s3483 + $0x38] sm:$0xff]
        %3492 = vrot.lane.b32.xlu0 %v406, 117
        %v3493 = vpop.permute.xlu0 %3492
        %3494 = vrot.lane.b32.xlu0 %v407, 117
        %v3495 = vpop.permute.xlu0 %3494
        %3496 = vrot.lane.b32.xlu0 %v408, 117
        %v3497 = vpop.permute.xlu0 %3496
        %3498 = vrot.lane.b32.xlu0 %v409, 117
        %v3499 = vpop.permute.xlu0 %3498
        %3500 = vrot.lane.b32.xlu0 %v410, 117
        %v3501 = vpop.permute.xlu0 %3500
        %3502 = vrot.lane.b32.xlu0 %v411, 117
        %v3503 = vpop.permute.xlu0 %3502
        %3504 = vrot.lane.b32.xlu0 %v412, 117
        %v3505 = vpop.permute.xlu0 %3504
        %3506 = vrot.lane.b32.xlu0 %v413, 117
        %v3507 = vpop.permute.xlu0 %3506
        %3508 = vrot.lane.b32.xlu0 %v414, 117
        %v3509 = vpop.permute.xlu0 %3508
        %3510 = vrot.lane.b32.xlu0 %v415, 117
        %v3511 = vpop.permute.xlu0 %3510
        %3512 = vrot.lane.b32.xlu0 %v416, 117
        %v3513 = vpop.permute.xlu0 %3512
        %3514 = vrot.lane.b32.xlu0 %v417, 117
        %v3515 = vpop.permute.xlu0 %3514
        %3516 = vrot.lane.b32.xlu0 %v418, 117
        %v3517 = vpop.permute.xlu0 %3516
        %3518 = vrot.lane.b32.xlu0 %v419, 117
        %v3519 = vpop.permute.xlu0 %3518
        %3520 = vrot.lane.b32.xlu0 %v420, 117
        %v3521 = vpop.permute.xlu0 %3520
        %3522 = vrot.lane.b32.xlu0 %v421, 117
        %v3523 = vpop.permute.xlu0 %3522
        %3524 = vrot.lane.b32.xlu0 %v422, 117
        %v3525 = vpop.permute.xlu0 %3524
        %3526 = vrot.lane.b32.xlu0 %v423, 117
        %v3527 = vpop.permute.xlu0 %3526
        %3528 = vrot.lane.b32.xlu0 %v424, 117
        %v3529 = vpop.permute.xlu0 %3528
        %3530 = vrot.lane.b32.xlu0 %v425, 117
        %v3531 = vpop.permute.xlu0 %3530
        %3532 = vrot.lane.b32.xlu0 %v426, 117
        %v3533 = vpop.permute.xlu0 %3532
        %3534 = vrot.lane.b32.xlu0 %v427, 117
        %v3535 = vpop.permute.xlu0 %3534
        %3536 = vrot.lane.b32.xlu0 %v428, 117
        %v3537 = vpop.permute.xlu0 %3536
        %3538 = vrot.lane.b32.xlu0 %v429, 117
        %v3539 = vpop.permute.xlu0 %3538
        %3540 = vrot.lane.b32.xlu0 %v430, 117
        %v3541 = vpop.permute.xlu0 %3540
        %3542 = vrot.lane.b32.xlu0 %v431, 117
        %v3543 = vpop.permute.xlu0 %3542
        %3544 = vrot.lane.b32.xlu0 %v432, 117
        %v3545 = vpop.permute.xlu0 %3544
        %3546 = vrot.lane.b32.xlu0 %v433, 117
        %v3547 = vpop.permute.xlu0 %3546
        %3548 = vrot.lane.b32.xlu0 %v434, 117
        %v3549 = vpop.permute.xlu0 %3548
        %3550 = vrot.lane.b32.xlu0 %v435, 117
        %v3551 = vpop.permute.xlu0 %3550
        %3552 = vrot.lane.b32.xlu0 %v436, 117
        %v3553 = vpop.permute.xlu0 %3552
        %3554 = vrot.lane.b32.xlu0 %v437, 117
        %v3555 = vpop.permute.xlu0 %3554
        %3556 = vrot.lane.b32.xlu0 %v438, 117
        %v3557 = vpop.permute.xlu0 %3556
        %3558 = vrot.lane.b32.xlu0 %v439, 117
        %v3559 = vpop.permute.xlu0 %3558
        %3560 = vrot.lane.b32.xlu0 %v440, 117
        %v3561 = vpop.permute.xlu0 %3560
        %3562 = vrot.lane.b32.xlu0 %v441, 117
        %v3563 = vpop.permute.xlu0 %3562
        %3564 = vrot.lane.b32.xlu0 %v442, 117
        %v3565 = vpop.permute.xlu0 %3564
        %3566 = vrot.lane.b32.xlu0 %v443, 117
        %v3567 = vpop.permute.xlu0 %3566
        %3568 = vrot.lane.b32.xlu0 %v444, 117
        %v3569 = vpop.permute.xlu0 %3568
        %3570 = vrot.lane.b32.xlu0 %v445, 117
        %v3571 = vpop.permute.xlu0 %3570
        %3572 = vrot.lane.b32.xlu0 %v446, 117
        %v3573 = vpop.permute.xlu0 %3572
        %3574 = vrot.lane.b32.xlu0 %v447, 117
        %v3575 = vpop.permute.xlu0 %3574
        %3576 = vrot.lane.b32.xlu0 %v448, 117
        %v3577 = vpop.permute.xlu0 %3576
        %3578 = vrot.lane.b32.xlu0 %v449, 117
        %v3579 = vpop.permute.xlu0 %3578
        %3580 = vrot.lane.b32.xlu0 %v450, 117
        %v3581 = vpop.permute.xlu0 %3580
        %3582 = vrot.lane.b32.xlu0 %v451, 117
        %v3583 = vpop.permute.xlu0 %3582
        %3584 = vrot.lane.b32.xlu0 %v452, 117
        %v3585 = vpop.permute.xlu0 %3584
        %3586 = vrot.lane.b32.xlu0 %v453, 117
        %v3587 = vpop.permute.xlu0 %3586
        %vm3588 = vcmask 957440
        %v3589 = vsel %vm3588, %v3493, %v3495
        %v3590 = vsel %vm3588, %v3495, %v3497
        %v3591 = vsel %vm3588, %v3499, %v3501
        %v3592 = vsel %vm3588, %v3501, %v3503
        %v3593 = vsel %vm3588, %v3505, %v3507
        %v3594 = vsel %vm3588, %v3507, %v3509
        %v3595 = vsel %vm3588, %v3511, %v3513
        %v3596 = vsel %vm3588, %v3513, %v3515
        %v3597 = vsel %vm3588, %v3517, %v3519
        %v3598 = vsel %vm3588, %v3519, %v3521
        %v3599 = vsel %vm3588, %v3523, %v3525
        %v3600 = vsel %vm3588, %v3525, %v3527
        %v3601 = vsel %vm3588, %v3529, %v3531
        %v3602 = vsel %vm3588, %v3531, %v3533
        %v3603 = vsel %vm3588, %v3535, %v3537
        %v3604 = vsel %vm3588, %v3537, %v3539
        %v3605 = vsel %vm3588, %v3541, %v3543
        %v3606 = vsel %vm3588, %v3543, %v3545
        %v3607 = vsel %vm3588, %v3547, %v3549
        %v3608 = vsel %vm3588, %v3549, %v3551
        %v3609 = vsel %vm3588, %v3553, %v3555
        %v3610 = vsel %vm3588, %v3555, %v3557
        %v3611 = vsel %vm3588, %v3559, %v3561
        %v3612 = vsel %vm3588, %v3561, %v3563
        %v3613 = vsel %vm3588, %v3565, %v3567
        %v3614 = vsel %vm3588, %v3567, %v3569
        %v3615 = vsel %vm3588, %v3571, %v3573
        %v3616 = vsel %vm3588, %v3573, %v3575
        %v3617 = vsel %vm3588, %v3577, %v3579
        %v3618 = vsel %vm3588, %v3579, %v3581
        %v3619 = vsel %vm3588, %v3583, %v3585
        %v3620 = vsel %vm3588, %v3585, %v3587
        %3653 = vmatprep.subr.mxu0 %v3590
        %3654 = vmatpush1.msra.mxu0 %v3589
        %3655 = vmatprep.subr.mxu0 %v3592
        %3656 = vmatpush1.msra.mxu0 %v3591
        %3657 = vmatprep.subr.mxu0 %v3594
        %3658 = vmatpush1.msra.mxu0 %v3593
        %3659 = vmatprep.subr.mxu0 %v3596
        %3660 = vmatpush1.msra.mxu0 %v3595
        %3661 = vmatprep.subr.mxu0 %v3598
        %3662 = vmatpush1.msra.mxu0 %v3597
        %3663 = vmatprep.subr.mxu0 %v3600
        %3664 = vmatpush1.msra.mxu0 %v3599
        %3665 = vmatprep.subr.mxu0 %v3602
        %3666 = vmatpush1.msra.mxu0 %v3601
        %3667 = vmatprep.subr.mxu0 %v3604
        %3668 = vmatpush1.msra.mxu0 %v3603
        %3669 = vmatprep.subr.mxu0 %v3606
        %3670 = vmatpush1.msra.mxu0 %v3605
        %3671 = vmatprep.subr.mxu0 %v3608
        %3672 = vmatpush1.msra.mxu0 %v3607
        %3673 = vmatprep.subr.mxu0 %v3610
        %3674 = vmatpush1.msra.mxu0 %v3609
        %3675 = vmatprep.subr.mxu0 %v3612
        %3676 = vmatpush1.msra.mxu0 %v3611
        %3677 = vmatprep.subr.mxu0 %v3614
        %3678 = vmatpush1.msra.mxu0 %v3613
        %3679 = vmatprep.subr.mxu0 %v3616
        %3680 = vmatpush1.msra.mxu0 %v3615
        %3681 = vmatprep.subr.mxu0 %v3618
        %3682 = vmatpush1.msra.mxu0 %v3617
        %3683 = vmatprep.subr.mxu0 %v3620
        %3684 = vmatpush1.msra.mxu0 %v3619
        %3685 = vmatprep.subr.mxu0 0.0
        %3686 = vmatpush1.msra.mxu0 0.0
        %3687 = vmatprep.subr.mxu0 0.0
        %3688 = vmatpush1.msra.mxu0 0.0
        %3689 = vmatprep.subr.mxu0 0.0
        %3690 = vmatpush1.msra.mxu0 0.0
        %3691 = vmatprep.subr.mxu0 0.0
        %3692 = vmatpush1.msra.mxu0 0.0
        %3693 = vmatprep.subr.mxu0 0.0
        %3694 = vmatpush1.msra.mxu0 0.0
        %3695 = vmatprep.subr.mxu0 0.0
        %3696 = vmatpush1.msra.mxu0 0.0
        %3697 = vmatprep.subr.mxu0 0.0
        %3698 = vmatpush1.msra.mxu0 0.0
        %3699 = vmatprep.subr.mxu0 0.0
        %3700 = vmatpush1.msra.mxu0 0.0
        %3701 = vmatprep.subr.mxu0 0.0
        %3702 = vmatpush1.msra.mxu0 0.0
        %3703 = vmatprep.subr.mxu0 0.0
        %3704 = vmatpush1.msra.mxu0 0.0
        %3705 = vmatprep.subr.mxu0 0.0
        %3706 = vmatpush1.msra.mxu0 0.0
        %3707 = vmatprep.subr.mxu0 0.0
        %3708 = vmatpush1.msra.mxu0 0.0
        %3709 = vmatprep.subr.mxu0 0.0
        %3710 = vmatpush1.msra.mxu0 0.0
        %3711 = vmatprep.subr.mxu0 0.0
        %3712 = vmatpush1.msra.mxu0 0.0
        %3713 = vmatprep.subr.mxu0 0.0
        %3714 = vmatpush1.msra.mxu0 0.0
        %3715 = vmatprep.subr.mxu0 0.0
        %3716 = vmatpush1.msra.mxu0 0.0
        %3717 = vmatprep.mubr.f32.mxu0 0.0
        %3718 = vmatmul.mubr.f32.gmra.mrb[0].mxu0 %v3484
        %v3719 = vpop.f32.mrb[0].mxu0
        %v3720 = vadd.f32 0.0, %v3719
        %v3721 = vpop.f32.mrb[0].mxu0
        %v3722 = vadd.f32 0.0, %v3721
        %3723 = vmatprep.mubr.f32.mxu0 0.0
        %3724 = vmatmul.mubr.f32.gmra.mrb[0].mxu0 %v3485
        %v3725 = vpop.f32.mrb[0].mxu0
        %v3726 = vadd.f32 0.0, %v3725
        %v3727 = vpop.f32.mrb[0].mxu0
        %v3728 = vadd.f32 0.0, %v3727
        %3729 = vmatprep.mubr.f32.mxu0 0.0
        %3730 = vmatmul.mubr.f32.gmra.mrb[0].mxu0 %v3486
        %v3731 = vpop.f32.mrb[0].mxu0
        %v3732 = vadd.f32 0.0, %v3731
        %v3733 = vpop.f32.mrb[0].mxu0
        %v3734 = vadd.f32 0.0, %v3733
        %3735 = vmatprep.mubr.f32.mxu0 0.0
        %3736 = vmatmul.mubr.f32.gmra.mrb[0].mxu0 %v3487
        %v3737 = vpop.f32.mrb[0].mxu0
        %v3738 = vadd.f32 0.0, %v3737
        %v3739 = vpop.f32.mrb[0].mxu0
        %v3740 = vadd.f32 0.0, %v3739
        %3741 = vmatprep.mubr.f32.mxu0 0.0
        %3742 = vmatmul.mubr.f32.gmra.mrb[0].mxu0 %v3488
        %v3743 = vpop.f32.mrb[0].mxu0
        %v3744 = vadd.f32 0.0, %v3743
        %v3745 = vpop.f32.mrb[0].mxu0
        %v3746 = vadd.f32 0.0, %v3745
        %3747 = vmatprep.mubr.f32.mxu0 0.0
        %3748 = vmatmul.mubr.f32.gmra.mrb[0].mxu0 %v3489
        %v3749 = vpop.f32.mrb[0].mxu0
        %v3750 = vadd.f32 0.0, %v3749
        %v3751 = vpop.f32.mrb[0].mxu0
        %v3752 = vadd.f32 0.0, %v3751
        %3753 = vmatprep.mubr.f32.mxu0 0.0
        %3754 = vmatmul.mubr.f32.gmra.mrb[0].mxu0 %v3490
        %v3755 = vpop.f32.mrb[0].mxu0
        %v3756 = vadd.f32 0.0, %v3755
        %v3757 = vpop.f32.mrb[0].mxu0
        %v3758 = vadd.f32 0.0, %v3757
        %3759 = vmatprep.mubr.f32.mxu0 0.0
        %3760 = vmatmul.mubr.f32.gmra.mrb[0].mxu0 %v3491
        %v3761 = vpop.f32.mrb[0].mxu0
        %v3762 = vadd.f32 0.0, %v3761
        %v3763 = vpop.f32.mrb[0].mxu0
        %v3764 = vadd.f32 0.0, %v3763
        %3765 = vdwg.mxu0
        %v3766 = vadd.f32 %v3467, %v3720
        %v3767 = vadd.f32 %v3468, %v3722
        %v3768 = vadd.f32 %v3469, %v3726
        %v3769 = vadd.f32 %v3470, %v3728
        %v3770 = vadd.f32 %v3471, %v3732
        %v3771 = vadd.f32 %v3472, %v3734
        %v3772 = vadd.f32 %v3473, %v3738
        %v3773 = vadd.f32 %v3474, %v3740
        %v3774 = vadd.f32 %v3475, %v3744
        %v3775 = vadd.f32 %v3476, %v3746
        %v3776 = vadd.f32 %v3477, %v3750
        %v3777 = vadd.f32 %v3478, %v3752
        %v3778 = vadd.f32 %v3479, %v3756
        %v3779 = vadd.f32 %v3480, %v3758
        %v3780 = vadd.f32 %v3481, %v3762
        %v3781 = vadd.f32 %v3482, %v3764
        %s3782 = scalar_lea.vmem %s3, 768
        %v3783 = vld [vmem:[%s3782] sm:$0xff]
        %v3784 = vld [vmem:[%s3782 + $0x8] sm:$0xff]
        %v3785 = vld [vmem:[%s3782 + $0x10] sm:$0xff]
        %v3786 = vld [vmem:[%s3782 + $0x18] sm:$0xff]
        %v3787 = vld [vmem:[%s3782 + $0x20] sm:$0xff]
        %v3788 = vld [vmem:[%s3782 + $0x28] sm:$0xff]
        %v3789 = vld [vmem:[%s3782 + $0x30] sm:$0xff]
        %v3790 = vld [vmem:[%s3782 + $0x38] sm:$0xff]
        %3791 = vrot.lane.b32.xlu0 %v406, 116
        %v3792 = vpop.permute.xlu0 %3791
        %3793 = vrot.lane.b32.xlu0 %v407, 116
        %v3794 = vpop.permute.xlu0 %3793
        %3795 = vrot.lane.b32.xlu0 %v408, 116
        %v3796 = vpop.permute.xlu0 %3795
        %3797 = vrot.lane.b32.xlu0 %v409, 116
        %v3798 = vpop.permute.xlu0 %3797
        %3799 = vrot.lane.b32.xlu0 %v410, 116
        %v3800 = vpop.permute.xlu0 %3799
        %3801 = vrot.lane.b32.xlu0 %v411, 116
        %v3802 = vpop.permute.xlu0 %3801
        %3803 = vrot.lane.b32.xlu0 %v412, 116
        %v3804 = vpop.permute.xlu0 %3803
        %3805 = vrot.lane.b32.xlu0 %v413, 116
        %v3806 = vpop.permute.xlu0 %3805
        %3807 = vrot.lane.b32.xlu0 %v414, 116
        %v3808 = vpop.permute.xlu0 %3807
        %3809 = vrot.lane.b32.xlu0 %v415, 116
        %v3810 = vpop.permute.xlu0 %3809
        %3811 = vrot.lane.b32.xlu0 %v416, 116
        %v3812 = vpop.permute.xlu0 %3811
        %3813 = vrot.lane.b32.xlu0 %v417, 116
        %v3814 = vpop.permute.xlu0 %3813
        %3815 = vrot.lane.b32.xlu0 %v418, 116
        %v3816 = vpop.permute.xlu0 %3815
        %3817 = vrot.lane.b32.xlu0 %v419, 116
        %v3818 = vpop.permute.xlu0 %3817
        %3819 = vrot.lane.b32.xlu0 %v420, 116
        %v3820 = vpop.permute.xlu0 %3819
        %3821 = vrot.lane.b32.xlu0 %v421, 116
        %v3822 = vpop.permute.xlu0 %3821
        %3823 = vrot.lane.b32.xlu0 %v422, 116
        %v3824 = vpop.permute.xlu0 %3823
        %3825 = vrot.lane.b32.xlu0 %v423, 116
        %v3826 = vpop.permute.xlu0 %3825
        %3827 = vrot.lane.b32.xlu0 %v424, 116
        %v3828 = vpop.permute.xlu0 %3827
        %3829 = vrot.lane.b32.xlu0 %v425, 116
        %v3830 = vpop.permute.xlu0 %3829
        %3831 = vrot.lane.b32.xlu0 %v426, 116
        %v3832 = vpop.permute.xlu0 %3831
        %3833 = vrot.lane.b32.xlu0 %v427, 116
        %v3834 = vpop.permute.xlu0 %3833
        %3835 = vrot.lane.b32.xlu0 %v428, 116
        %v3836 = vpop.permute.xlu0 %3835
        %3837 = vrot.lane.b32.xlu0 %v429, 116
        %v3838 = vpop.permute.xlu0 %3837
        %3839 = vrot.lane.b32.xlu0 %v430, 116
        %v3840 = vpop.permute.xlu0 %3839
        %3841 = vrot.lane.b32.xlu0 %v431, 116
        %v3842 = vpop.permute.xlu0 %3841
        %3843 = vrot.lane.b32.xlu0 %v432, 116
        %v3844 = vpop.permute.xlu0 %3843
        %3845 = vrot.lane.b32.xlu0 %v433, 116
        %v3846 = vpop.permute.xlu0 %3845
        %3847 = vrot.lane.b32.xlu0 %v434, 116
        %v3848 = vpop.permute.xlu0 %3847
        %3849 = vrot.lane.b32.xlu0 %v435, 116
        %v3850 = vpop.permute.xlu0 %3849
        %3851 = vrot.lane.b32.xlu0 %v436, 116
        %v3852 = vpop.permute.xlu0 %3851
        %3853 = vrot.lane.b32.xlu0 %v437, 116
        %v3854 = vpop.permute.xlu0 %3853
        %3855 = vrot.lane.b32.xlu0 %v438, 116
        %v3856 = vpop.permute.xlu0 %3855
        %3857 = vrot.lane.b32.xlu0 %v439, 116
        %v3858 = vpop.permute.xlu0 %3857
        %3859 = vrot.lane.b32.xlu0 %v440, 116
        %v3860 = vpop.permute.xlu0 %3859
        %3861 = vrot.lane.b32.xlu0 %v441, 116
        %v3862 = vpop.permute.xlu0 %3861
        %3863 = vrot.lane.b32.xlu0 %v442, 116
        %v3864 = vpop.permute.xlu0 %3863
        %3865 = vrot.lane.b32.xlu0 %v443, 116
        %v3866 = vpop.permute.xlu0 %3865
        %3867 = vrot.lane.b32.xlu0 %v444, 116
        %v3868 = vpop.permute.xlu0 %3867
        %3869 = vrot.lane.b32.xlu0 %v445, 116
        %v3870 = vpop.permute.xlu0 %3869
        %3871 = vrot.lane.b32.xlu0 %v446, 116
        %v3872 = vpop.permute.xlu0 %3871
        %3873 = vrot.lane.b32.xlu0 %v447, 116
        %v3874 = vpop.permute.xlu0 %3873
        %3875 = vrot.lane.b32.xlu0 %v448, 116
        %v3876 = vpop.permute.xlu0 %3875
        %3877 = vrot.lane.b32.xlu0 %v449, 116
        %v3878 = vpop.permute.xlu0 %3877
        %3879 = vrot.lane.b32.xlu0 %v450, 116
        %v3880 = vpop.permute.xlu0 %3879
        %3881 = vrot.lane.b32.xlu0 %v451, 116
        %v3882 = vpop.permute.xlu0 %3881
        %3883 = vrot.lane.b32.xlu0 %v452, 116
        %v3884 = vpop.permute.xlu0 %3883
        %3885 = vrot.lane.b32.xlu0 %v453, 116
        %v3886 = vpop.permute.xlu0 %3885
        %vm3887 = vcmask 949248
        %v3888 = vsel %vm3887, %v3792, %v3794
        %v3889 = vsel %vm3887, %v3794, %v3796
        %v3890 = vsel %vm3887, %v3798, %v3800
        %v3891 = vsel %vm3887, %v3800, %v3802
        %v3892 = vsel %vm3887, %v3804, %v3806
        %v3893 = vsel %vm3887, %v3806, %v3808
        %v3894 = vsel %vm3887, %v3810, %v3812
        %v3895 = vsel %vm3887, %v3812, %v3814
        %v3896 = vsel %vm3887, %v3816, %v3818
        %v3897 = vsel %vm3887, %v3818, %v3820
        %v3898 = vsel %vm3887, %v3822, %v3824
        %v3899 = vsel %vm3887, %v3824, %v3826
        %v3900 = vsel %vm3887, %v3828, %v3830
        %v3901 = vsel %vm3887, %v3830, %v3832
        %v3902 = vsel %vm3887, %v3834, %v3836
        %v3903 = vsel %vm3887, %v3836, %v3838
        %v3904 = vsel %vm3887, %v3840, %v3842
        %v3905 = vsel %vm3887, %v3842, %v3844
        %v3906 = vsel %vm3887, %v3846, %v3848
        %v3907 = vsel %vm3887, %v3848, %v3850
        %v3908 = vsel %vm3887, %v3852, %v3854
        %v3909 = vsel %vm3887, %v3854, %v3856
        %v3910 = vsel %vm3887, %v3858, %v3860
        %v3911 = vsel %vm3887, %v3860, %v3862
        %v3912 = vsel %vm3887, %v3864, %v3866
        %v3913 = vsel %vm3887, %v3866, %v3868
        %v3914 = vsel %vm3887, %v3870, %v3872
        %v3915 = vsel %vm3887, %v3872, %v3874
        %v3916 = vsel %vm3887, %v3876, %v3878
        %v3917 = vsel %vm3887, %v3878, %v3880
        %v3918 = vsel %vm3887, %v3882, %v3884
        %v3919 = vsel %vm3887, %v3884, %v3886
        %3952 = vmatprep.subr.mxu0 %v3889
        %3953 = vmatpush1.msra.mxu0 %v3888
        %3954 = vmatprep.subr.mxu0 %v3891
        %3955 = vmatpush1.msra.mxu0 %v3890
        %3956 = vmatprep.subr.mxu0 %v3893
        %3957 = vmatpush1.msra.mxu0 %v3892
        %3958 = vmatprep.subr.mxu0 %v3895
        %3959 = vmatpush1.msra.mxu0 %v3894
        %3960 = vmatprep.subr.mxu0 %v3897
        %3961 = vmatpush1.msra.mxu0 %v3896
        %3962 = vmatprep.subr.mxu0 %v3899
        %3963 = vmatpush1.msra.mxu0 %v3898
        %3964 = vmatprep.subr.mxu0 %v3901
        %3965 = vmatpush1.msra.mxu0 %v3900
        %3966 = vmatprep.subr.mxu0 %v3903
        %3967 = vmatpush1.msra.mxu0 %v3902
        %3968 = vmatprep.subr.mxu0 %v3905
        %3969 = vmatpush1.msra.mxu0 %v3904
        %3970 = vmatprep.subr.mxu0 %v3907
        %3971 = vmatpush1.msra.mxu0 %v3906
        %3972 = vmatprep.subr.mxu0 %v3909
        %3973 = vmatpush1.msra.mxu0 %v3908
        %3974 = vmatprep.subr.mxu0 %v3911
        %3975 = vmatpush1.msra.mxu0 %v3910
        %3976 = vmatprep.subr.mxu0 %v3913
        %3977 = vmatpush1.msra.mxu0 %v3912
        %3978 = vmatprep.subr.mxu0 %v3915
        %3979 = vmatpush1.msra.mxu0 %v3914
        %3980 = vmatprep.subr.mxu0 %v3917
        %3981 = vmatpush1.msra.mxu0 %v3916
        %3982 = vmatprep.subr.mxu0 %v3919
        %3983 = vmatpush1.msra.mxu0 %v3918
        %3984 = vmatprep.subr.mxu0 0.0
        %3985 = vmatpush1.msra.mxu0 0.0
        %3986 = vmatprep.subr.mxu0 0.0
        %3987 = vmatpush1.msra.mxu0 0.0
        %3988 = vmatprep.subr.mxu0 0.0
        %3989 = vmatpush1.msra.mxu0 0.0
        %3990 = vmatprep.subr.mxu0 0.0
        %3991 = vmatpush1.msra.mxu0 0.0
        %3992 = vmatprep.subr.mxu0 0.0
        %3993 = vmatpush1.msra.mxu0 0.0
        %3994 = vmatprep.subr.mxu0 0.0
        %3995 = vmatpush1.msra.mxu0 0.0
        %3996 = vmatprep.subr.mxu0 0.0
        %3997 = vmatpush1.msra.mxu0 0.0
        %3998 = vmatprep.subr.mxu0 0.0
        %3999 = vmatpush1.msra.mxu0 0.0
        %4000 = vmatprep.subr.mxu0 0.0
        %4001 = vmatpush1.msra.mxu0 0.0
        %4002 = vmatprep.subr.mxu0 0.0
        %4003 = vmatpush1.msra.mxu0 0.0
        %4004 = vmatprep.subr.mxu0 0.0
        %4005 = vmatpush1.msra.mxu0 0.0
        %4006 = vmatprep.subr.mxu0 0.0
        %4007 = vmatpush1.msra.mxu0 0.0
        %4008 = vmatprep.subr.mxu0 0.0
        %4009 = vmatpush1.msra.mxu0 0.0
        %4010 = vmatprep.subr.mxu0 0.0
        %4011 = vmatpush1.msra.mxu0 0.0
        %4012 = vmatprep.subr.mxu0 0.0
        %4013 = vmatpush1.msra.mxu0 0.0
        %4014 = vmatprep.subr.mxu0 0.0
        %4015 = vmatpush1.msra.mxu0 0.0
        %4016 = vmatprep.mubr.f32.mxu0 0.0
        %4017 = vmatmul.mubr.f32.gmra.mrb[0].mxu0 %v3783
        %v4018 = vpop.f32.mrb[0].mxu0
        %v4019 = vadd.f32 0.0, %v4018
        %v4020 = vpop.f32.mrb[0].mxu0
        %v4021 = vadd.f32 0.0, %v4020
        %4022 = vmatprep.mubr.f32.mxu0 0.0
        %4023 = vmatmul.mubr.f32.gmra.mrb[0].mxu0 %v3784
        %v4024 = vpop.f32.mrb[0].mxu0
        %v4025 = vadd.f32 0.0, %v4024
        %v4026 = vpop.f32.mrb[0].mxu0
        %v4027 = vadd.f32 0.0, %v4026
        %4028 = vmatprep.mubr.f32.mxu0 0.0
        %4029 = vmatmul.mubr.f32.gmra.mrb[0].mxu0 %v3785
        %v4030 = vpop.f32.mrb[0].mxu0
        %v4031 = vadd.f32 0.0, %v4030
        %v4032 = vpop.f32.mrb[0].mxu0
        %v4033 = vadd.f32 0.0, %v4032
        %4034 = vmatprep.mubr.f32.mxu0 0.0
        %4035 = vmatmul.mubr.f32.gmra.mrb[0].mxu0 %v3786
        %v4036 = vpop.f32.mrb[0].mxu0
        %v4037 = vadd.f32 0.0, %v4036
        %v4038 = vpop.f32.mrb[0].mxu0
        %v4039 = vadd.f32 0.0, %v4038
        %4040 = vmatprep.mubr.f32.mxu0 0.0
        %4041 = vmatmul.mubr.f32.gmra.mrb[0].mxu0 %v3787
        %v4042 = vpop.f32.mrb[0].mxu0
        %v4043 = vadd.f32 0.0, %v4042
        %v4044 = vpop.f32.mrb[0].mxu0
        %v4045 = vadd.f32 0.0, %v4044
        %4046 = vmatprep.mubr.f32.mxu0 0.0
        %4047 = vmatmul.mubr.f32.gmra.mrb[0].mxu0 %v3788
        %v4048 = vpop.f32.mrb[0].mxu0
        %v4049 = vadd.f32 0.0, %v4048
        %v4050 = vpop.f32.mrb[0].mxu0
        %v4051 = vadd.f32 0.0, %v4050
        %4052 = vmatprep.mubr.f32.mxu0 0.0
        %4053 = vmatmul.mubr.f32.gmra.mrb[0].mxu0 %v3789
        %v4054 = vpop.f32.mrb[0].mxu0
        %v4055 = vadd.f32 0.0, %v4054
        %v4056 = vpop.f32.mrb[0].mxu0
        %v4057 = vadd.f32 0.0, %v4056
        %4058 = vmatprep.mubr.f32.mxu0 0.0
        %4059 = vmatmul.mubr.f32.gmra.mrb[0].mxu0 %v3790
        %v4060 = vpop.f32.mrb[0].mxu0
        %v4061 = vadd.f32 0.0, %v4060
        %v4062 = vpop.f32.mrb[0].mxu0
        %v4063 = vadd.f32 0.0, %v4062
        %4064 = vdwg.mxu0
        %v4065 = vadd.f32 %v3766, %v4019
        %v4066 = vadd.f32 %v3767, %v4021
        %v4067 = vadd.f32 %v3768, %v4025
        %v4068 = vadd.f32 %v3769, %v4027
        %v4069 = vadd.f32 %v3770, %v4031
        %v4070 = vadd.f32 %v3771, %v4033
        %v4071 = vadd.f32 %v3772, %v4037
        %v4072 = vadd.f32 %v3773, %v4039
        %v4073 = vadd.f32 %v3774, %v4043
        %v4074 = vadd.f32 %v3775, %v4045
        %v4075 = vadd.f32 %v3776, %v4049
        %v4076 = vadd.f32 %v3777, %v4051
        %v4077 = vadd.f32 %v3778, %v4055
        %v4078 = vadd.f32 %v3779, %v4057
        %v4079 = vadd.f32 %v3780, %v4061
        %v4080 = vadd.f32 %v3781, %v4063
        %s4081 = scalar_lea.vmem %s3, 832
        %v4082 = vld [vmem:[%s4081] sm:$0xff]
        %v4083 = vld [vmem:[%s4081 + $0x8] sm:$0xff]
        %v4084 = vld [vmem:[%s4081 + $0x10] sm:$0xff]
        %v4085 = vld [vmem:[%s4081 + $0x18] sm:$0xff]
        %v4086 = vld [vmem:[%s4081 + $0x20] sm:$0xff]
        %v4087 = vld [vmem:[%s4081 + $0x28] sm:$0xff]
        %v4088 = vld [vmem:[%s4081 + $0x30] sm:$0xff]
        %v4089 = vld [vmem:[%s4081 + $0x38] sm:$0xff]
        %4090 = vrot.lane.b32.xlu0 %v406, 115
        %v4091 = vpop.permute.xlu0 %4090
        %4092 = vrot.lane.b32.xlu0 %v407, 115
        %v4093 = vpop.permute.xlu0 %4092
        %4094 = vrot.lane.b32.xlu0 %v408, 115
        %v4095 = vpop.permute.xlu0 %4094
        %4096 = vrot.lane.b32.xlu0 %v409, 115
        %v4097 = vpop.permute.xlu0 %4096
        %4098 = vrot.lane.b32.xlu0 %v410, 115
        %v4099 = vpop.permute.xlu0 %4098
        %4100 = vrot.lane.b32.xlu0 %v411, 115
        %v4101 = vpop.permute.xlu0 %4100
        %4102 = vrot.lane.b32.xlu0 %v412, 115
        %v4103 = vpop.permute.xlu0 %4102
        %4104 = vrot.lane.b32.xlu0 %v413, 115
        %v4105 = vpop.permute.xlu0 %4104
        %4106 = vrot.lane.b32.xlu0 %v414, 115
        %v4107 = vpop.permute.xlu0 %4106
        %4108 = vrot.lane.b32.xlu0 %v415, 115
        %v4109 = vpop.permute.xlu0 %4108
        %4110 = vrot.lane.b32.xlu0 %v416, 115
        %v4111 = vpop.permute.xlu0 %4110
        %4112 = vrot.lane.b32.xlu0 %v417, 115
        %v4113 = vpop.permute.xlu0 %4112
        %4114 = vrot.lane.b32.xlu0 %v418, 115
        %v4115 = vpop.permute.xlu0 %4114
        %4116 = vrot.lane.b32.xlu0 %v419, 115
        %v4117 = vpop.permute.xlu0 %4116
        %4118 = vrot.lane.b32.xlu0 %v420, 115
        %v4119 = vpop.permute.xlu0 %4118
        %4120 = vrot.lane.b32.xlu0 %v421, 115
        %v4121 = vpop.permute.xlu0 %4120
        %4122 = vrot.lane.b32.xlu0 %v422, 115
        %v4123 = vpop.permute.xlu0 %4122
        %4124 = vrot.lane.b32.xlu0 %v423, 115
        %v4125 = vpop.permute.xlu0 %4124
        %4126 = vrot.lane.b32.xlu0 %v424, 115
        %v4127 = vpop.permute.xlu0 %4126
        %4128 = vrot.lane.b32.xlu0 %v425, 115
        %v4129 = vpop.permute.xlu0 %4128
        %4130 = vrot.lane.b32.xlu0 %v426, 115
        %v4131 = vpop.permute.xlu0 %4130
        %4132 = vrot.lane.b32.xlu0 %v427, 115
        %v4133 = vpop.permute.xlu0 %4132
        %4134 = vrot.lane.b32.xlu0 %v428, 115
        %v4135 = vpop.permute.xlu0 %4134
        %4136 = vrot.lane.b32.xlu0 %v429, 115
        %v4137 = vpop.permute.xlu0 %4136
        %4138 = vrot.lane.b32.xlu0 %v430, 115
        %v4139 = vpop.permute.xlu0 %4138
        %4140 = vrot.lane.b32.xlu0 %v431, 115
        %v4141 = vpop.permute.xlu0 %4140
        %4142 = vrot.lane.b32.xlu0 %v432, 115
        %v4143 = vpop.permute.xlu0 %4142
        %4144 = vrot.lane.b32.xlu0 %v433, 115
        %v4145 = vpop.permute.xlu0 %4144
        %4146 = vrot.lane.b32.xlu0 %v434, 115
        %v4147 = vpop.permute.xlu0 %4146
        %4148 = vrot.lane.b32.xlu0 %v435, 115
        %v4149 = vpop.permute.xlu0 %4148
        %4150 = vrot.lane.b32.xlu0 %v436, 115
        %v4151 = vpop.permute.xlu0 %4150
        %4152 = vrot.lane.b32.xlu0 %v437, 115
        %v4153 = vpop.permute.xlu0 %4152
        %4154 = vrot.lane.b32.xlu0 %v438, 115
        %v4155 = vpop.permute.xlu0 %4154
        %4156 = vrot.lane.b32.xlu0 %v439, 115
        %v4157 = vpop.permute.xlu0 %4156
        %4158 = vrot.lane.b32.xlu0 %v440, 115
        %v4159 = vpop.permute.xlu0 %4158
        %4160 = vrot.lane.b32.xlu0 %v441, 115
        %v4161 = vpop.permute.xlu0 %4160
        %4162 = vrot.lane.b32.xlu0 %v442, 115
        %v4163 = vpop.permute.xlu0 %4162
        %4164 = vrot.lane.b32.xlu0 %v443, 115
        %v4165 = vpop.permute.xlu0 %4164
        %4166 = vrot.lane.b32.xlu0 %v444, 115
        %v4167 = vpop.permute.xlu0 %4166
        %4168 = vrot.lane.b32.xlu0 %v445, 115
        %v4169 = vpop.permute.xlu0 %4168
        %4170 = vrot.lane.b32.xlu0 %v446, 115
        %v4171 = vpop.permute.xlu0 %4170
        %4172 = vrot.lane.b32.xlu0 %v447, 115
        %v4173 = vpop.permute.xlu0 %4172
        %4174 = vrot.lane.b32.xlu0 %v448, 115
        %v4175 = vpop.permute.xlu0 %4174
        %4176 = vrot.lane.b32.xlu0 %v449, 115
        %v4177 = vpop.permute.xlu0 %4176
        %4178 = vrot.lane.b32.xlu0 %v450, 115
        %v4179 = vpop.permute.xlu0 %4178
        %4180 = vrot.lane.b32.xlu0 %v451, 115
        %v4181 = vpop.permute.xlu0 %4180
        %4182 = vrot.lane.b32.xlu0 %v452, 115
        %v4183 = vpop.permute.xlu0 %4182
        %4184 = vrot.lane.b32.xlu0 %v453, 115
        %v4185 = vpop.permute.xlu0 %4184
        %vm4186 = vcmask 941056
        %v4187 = vsel %vm4186, %v4091, %v4093
        %v4188 = vsel %vm4186, %v4093, %v4095
        %v4189 = vsel %vm4186, %v4097, %v4099
        %v4190 = vsel %vm4186, %v4099, %v4101
        %v4191 = vsel %vm4186, %v4103, %v4105
        %v4192 = vsel %vm4186, %v4105, %v4107
        %v4193 = vsel %vm4186, %v4109, %v4111
        %v4194 = vsel %vm4186, %v4111, %v4113
        %v4195 = vsel %vm4186, %v4115, %v4117
        %v4196 = vsel %vm4186, %v4117, %v4119
        %v4197 = vsel %vm4186, %v4121, %v4123
        %v4198 = vsel %vm4186, %v4123, %v4125
        %v4199 = vsel %vm4186, %v4127, %v4129
        %v4200 = vsel %vm4186, %v4129, %v4131
        %v4201 = vsel %vm4186, %v4133, %v4135
        %v4202 = vsel %vm4186, %v4135, %v4137
        %v4203 = vsel %vm4186, %v4139, %v4141
        %v4204 = vsel %vm4186, %v4141, %v4143
        %v4205 = vsel %vm4186, %v4145, %v4147
        %v4206 = vsel %vm4186, %v4147, %v4149
        %v4207 = vsel %vm4186, %v4151, %v4153
        %v4208 = vsel %vm4186, %v4153, %v4155
        %v4209 = vsel %vm4186, %v4157, %v4159
        %v4210 = vsel %vm4186, %v4159, %v4161
        %v4211 = vsel %vm4186, %v4163, %v4165
        %v4212 = vsel %vm4186, %v4165, %v4167
        %v4213 = vsel %vm4186, %v4169, %v4171
        %v4214 = vsel %vm4186, %v4171, %v4173
        %v4215 = vsel %vm4186, %v4175, %v4177
        %v4216 = vsel %vm4186, %v4177, %v4179
        %v4217 = vsel %vm4186, %v4181, %v4183
        %v4218 = vsel %vm4186, %v4183, %v4185
        %4251 = vmatprep.subr.mxu0 %v4188
        %4252 = vmatpush1.msra.mxu0 %v4187
        %4253 = vmatprep.subr.mxu0 %v4190
        %4254 = vmatpush1.msra.mxu0 %v4189
        %4255 = vmatprep.subr.mxu0 %v4192
        %4256 = vmatpush1.msra.mxu0 %v4191
        %4257 = vmatprep.subr.mxu0 %v4194
        %4258 = vmatpush1.msra.mxu0 %v4193
        %4259 = vmatprep.subr.mxu0 %v4196
        %4260 = vmatpush1.msra.mxu0 %v4195
        %4261 = vmatprep.subr.mxu0 %v4198
        %4262 = vmatpush1.msra.mxu0 %v4197
        %4263 = vmatprep.subr.mxu0 %v4200
        %4264 = vmatpush1.msra.mxu0 %v4199
        %4265 = vmatprep.subr.mxu0 %v4202
        %4266 = vmatpush1.msra.mxu0 %v4201
        %4267 = vmatprep.subr.mxu0 %v4204
        %4268 = vmatpush1.msra.mxu0 %v4203
        %4269 = vmatprep.subr.mxu0 %v4206
        %4270 = vmatpush1.msra.mxu0 %v4205
        %4271 = vmatprep.subr.mxu0 %v4208
        %4272 = vmatpush1.msra.mxu0 %v4207
        %4273 = vmatprep.subr.mxu0 %v4210
        %4274 = vmatpush1.msra.mxu0 %v4209
        %4275 = vmatprep.subr.mxu0 %v4212
        %4276 = vmatpush1.msra.mxu0 %v4211
        %4277 = vmatprep.subr.mxu0 %v4214
        %4278 = vmatpush1.msra.mxu0 %v4213
        %4279 = vmatprep.subr.mxu0 %v4216
        %4280 = vmatpush1.msra.mxu0 %v4215
        %4281 = vmatprep.subr.mxu0 %v4218
        %4282 = vmatpush1.msra.mxu0 %v4217
        %4283 = vmatprep.subr.mxu0 0.0
        %4284 = vmatpush1.msra.mxu0 0.0
        %4285 = vmatprep.subr.mxu0 0.0
        %4286 = vmatpush1.msra.mxu0 0.0
        %4287 = vmatprep.subr.mxu0 0.0
        %4288 = vmatpush1.msra.mxu0 0.0
        %4289 = vmatprep.subr.mxu0 0.0
        %4290 = vmatpush1.msra.mxu0 0.0
        %4291 = vmatprep.subr.mxu0 0.0
        %4292 = vmatpush1.msra.mxu0 0.0
        %4293 = vmatprep.subr.mxu0 0.0
        %4294 = vmatpush1.msra.mxu0 0.0
        %4295 = vmatprep.subr.mxu0 0.0
        %4296 = vmatpush1.msra.mxu0 0.0
        %4297 = vmatprep.subr.mxu0 0.0
        %4298 = vmatpush1.msra.mxu0 0.0
        %4299 = vmatprep.subr.mxu0 0.0
        %4300 = vmatpush1.msra.mxu0 0.0
        %4301 = vmatprep.subr.mxu0 0.0
        %4302 = vmatpush1.msra.mxu0 0.0
        %4303 = vmatprep.subr.mxu0 0.0
        %4304 = vmatpush1.msra.mxu0 0.0
        %4305 = vmatprep.subr.mxu0 0.0
        %4306 = vmatpush1.msra.mxu0 0.0
        %4307 = vmatprep.subr.mxu0 0.0
        %4308 = vmatpush1.msra.mxu0 0.0
        %4309 = vmatprep.subr.mxu0 0.0
        %4310 = vmatpush1.msra.mxu0 0.0
        %4311 = vmatprep.subr.mxu0 0.0
        %4312 = vmatpush1.msra.mxu0 0.0
        %4313 = vmatprep.subr.mxu0 0.0
        %4314 = vmatpush1.msra.mxu0 0.0
        %4315 = vmatprep.mubr.f32.mxu0 0.0
        %4316 = vmatmul.mubr.f32.gmra.mrb[0].mxu0 %v4082
        %v4317 = vpop.f32.mrb[0].mxu0
        %v4318 = vadd.f32 0.0, %v4317
        %v4319 = vpop.f32.mrb[0].mxu0
        %v4320 = vadd.f32 0.0, %v4319
        %4321 = vmatprep.mubr.f32.mxu0 0.0
        %4322 = vmatmul.mubr.f32.gmra.mrb[0].mxu0 %v4083
        %v4323 = vpop.f32.mrb[0].mxu0
        %v4324 = vadd.f32 0.0, %v4323
        %v4325 = vpop.f32.mrb[0].mxu0
        %v4326 = vadd.f32 0.0, %v4325
        %4327 = vmatprep.mubr.f32.mxu0 0.0
        %4328 = vmatmul.mubr.f32.gmra.mrb[0].mxu0 %v4084
        %v4329 = vpop.f32.mrb[0].mxu0
        %v4330 = vadd.f32 0.0, %v4329
        %v4331 = vpop.f32.mrb[0].mxu0
        %v4332 = vadd.f32 0.0, %v4331
        %4333 = vmatprep.mubr.f32.mxu0 0.0
        %4334 = vmatmul.mubr.f32.gmra.mrb[0].mxu0 %v4085
        %v4335 = vpop.f32.mrb[0].mxu0
        %v4336 = vadd.f32 0.0, %v4335
        %v4337 = vpop.f32.mrb[0].mxu0
        %v4338 = vadd.f32 0.0, %v4337
        %4339 = vmatprep.mubr.f32.mxu0 0.0
        %4340 = vmatmul.mubr.f32.gmra.mrb[0].mxu0 %v4086
        %v4341 = vpop.f32.mrb[0].mxu0
        %v4342 = vadd.f32 0.0, %v4341
        %v4343 = vpop.f32.mrb[0].mxu0
        %v4344 = vadd.f32 0.0, %v4343
        %4345 = vmatprep.mubr.f32.mxu0 0.0
        %4346 = vmatmul.mubr.f32.gmra.mrb[0].mxu0 %v4087
        %v4347 = vpop.f32.mrb[0].mxu0
        %v4348 = vadd.f32 0.0, %v4347
        %v4349 = vpop.f32.mrb[0].mxu0
        %v4350 = vadd.f32 0.0, %v4349
        %4351 = vmatprep.mubr.f32.mxu0 0.0
        %4352 = vmatmul.mubr.f32.gmra.mrb[0].mxu0 %v4088
        %v4353 = vpop.f32.mrb[0].mxu0
        %v4354 = vadd.f32 0.0, %v4353
        %v4355 = vpop.f32.mrb[0].mxu0
        %v4356 = vadd.f32 0.0, %v4355
        %4357 = vmatprep.mubr.f32.mxu0 0.0
        %4358 = vmatmul.mubr.f32.gmra.mrb[0].mxu0 %v4089
        %v4359 = vpop.f32.mrb[0].mxu0
        %v4360 = vadd.f32 0.0, %v4359
        %v4361 = vpop.f32.mrb[0].mxu0
        %v4362 = vadd.f32 0.0, %v4361
        %4363 = vdwg.mxu0
        %v4364 = vadd.f32 %v4065, %v4318
        %v4365 = vadd.f32 %v4066, %v4320
        %v4366 = vadd.f32 %v4067, %v4324
        %v4367 = vadd.f32 %v4068, %v4326
        %v4368 = vadd.f32 %v4069, %v4330
        %v4369 = vadd.f32 %v4070, %v4332
        %v4370 = vadd.f32 %v4071, %v4336
        %v4371 = vadd.f32 %v4072, %v4338
        %v4372 = vadd.f32 %v4073, %v4342
        %v4373 = vadd.f32 %v4074, %v4344
        %v4374 = vadd.f32 %v4075, %v4348
        %v4375 = vadd.f32 %v4076, %v4350
        %v4376 = vadd.f32 %v4077, %v4354
        %v4377 = vadd.f32 %v4078, %v4356
        %v4378 = vadd.f32 %v4079, %v4360
        %v4379 = vadd.f32 %v4080, %v4362
        %s4380 = scalar_lea.vmem %s3, 896
        %v4381 = vld [vmem:[%s4380] sm:$0xff]
        %v4382 = vld [vmem:[%s4380 + $0x8] sm:$0xff]
        %v4383 = vld [vmem:[%s4380 + $0x10] sm:$0xff]
        %v4384 = vld [vmem:[%s4380 + $0x18] sm:$0xff]
        %v4385 = vld [vmem:[%s4380 + $0x20] sm:$0xff]
        %v4386 = vld [vmem:[%s4380 + $0x28] sm:$0xff]
        %v4387 = vld [vmem:[%s4380 + $0x30] sm:$0xff]
        %v4388 = vld [vmem:[%s4380 + $0x38] sm:$0xff]
        %4389 = vrot.lane.b32.xlu0 %v406, 114
        %v4390 = vpop.permute.xlu0 %4389
        %4391 = vrot.lane.b32.xlu0 %v407, 114
        %v4392 = vpop.permute.xlu0 %4391
        %4393 = vrot.lane.b32.xlu0 %v408, 114
        %v4394 = vpop.permute.xlu0 %4393
        %4395 = vrot.lane.b32.xlu0 %v409, 114
        %v4396 = vpop.permute.xlu0 %4395
        %4397 = vrot.lane.b32.xlu0 %v410, 114
        %v4398 = vpop.permute.xlu0 %4397
        %4399 = vrot.lane.b32.xlu0 %v411, 114
        %v4400 = vpop.permute.xlu0 %4399
        %4401 = vrot.lane.b32.xlu0 %v412, 114
        %v4402 = vpop.permute.xlu0 %4401
        %4403 = vrot.lane.b32.xlu0 %v413, 114
        %v4404 = vpop.permute.xlu0 %4403
        %4405 = vrot.lane.b32.xlu0 %v414, 114
        %v4406 = vpop.permute.xlu0 %4405
        %4407 = vrot.lane.b32.xlu0 %v415, 114
        %v4408 = vpop.permute.xlu0 %4407
        %4409 = vrot.lane.b32.xlu0 %v416, 114
        %v4410 = vpop.permute.xlu0 %4409
        %4411 = vrot.lane.b32.xlu0 %v417, 114
        %v4412 = vpop.permute.xlu0 %4411
        %4413 = vrot.lane.b32.xlu0 %v418, 114
        %v4414 = vpop.permute.xlu0 %4413
        %4415 = vrot.lane.b32.xlu0 %v419, 114
        %v4416 = vpop.permute.xlu0 %4415
        %4417 = vrot.lane.b32.xlu0 %v420, 114
        %v4418 = vpop.permute.xlu0 %4417
        %4419 = vrot.lane.b32.xlu0 %v421, 114
        %v4420 = vpop.permute.xlu0 %4419
        %4421 = vrot.lane.b32.xlu0 %v422, 114
        %v4422 = vpop.permute.xlu0 %4421
        %4423 = vrot.lane.b32.xlu0 %v423, 114
        %v4424 = vpop.permute.xlu0 %4423
        %4425 = vrot.lane.b32.xlu0 %v424, 114
        %v4426 = vpop.permute.xlu0 %4425
        %4427 = vrot.lane.b32.xlu0 %v425, 114
        %v4428 = vpop.permute.xlu0 %4427
        %4429 = vrot.lane.b32.xlu0 %v426, 114
        %v4430 = vpop.permute.xlu0 %4429
        %4431 = vrot.lane.b32.xlu0 %v427, 114
        %v4432 = vpop.permute.xlu0 %4431
        %4433 = vrot.lane.b32.xlu0 %v428, 114
        %v4434 = vpop.permute.xlu0 %4433
        %4435 = vrot.lane.b32.xlu0 %v429, 114
        %v4436 = vpop.permute.xlu0 %4435
        %4437 = vrot.lane.b32.xlu0 %v430, 114
        %v4438 = vpop.permute.xlu0 %4437
        %4439 = vrot.lane.b32.xlu0 %v431, 114
        %v4440 = vpop.permute.xlu0 %4439
        %4441 = vrot.lane.b32.xlu0 %v432, 114
        %v4442 = vpop.permute.xlu0 %4441
        %4443 = vrot.lane.b32.xlu0 %v433, 114
        %v4444 = vpop.permute.xlu0 %4443
        %4445 = vrot.lane.b32.xlu0 %v434, 114
        %v4446 = vpop.permute.xlu0 %4445
        %4447 = vrot.lane.b32.xlu0 %v435, 114
        %v4448 = vpop.permute.xlu0 %4447
        %4449 = vrot.lane.b32.xlu0 %v436, 114
        %v4450 = vpop.permute.xlu0 %4449
        %4451 = vrot.lane.b32.xlu0 %v437, 114
        %v4452 = vpop.permute.xlu0 %4451
        %4453 = vrot.lane.b32.xlu0 %v438, 114
        %v4454 = vpop.permute.xlu0 %4453
        %4455 = vrot.lane.b32.xlu0 %v439, 114
        %v4456 = vpop.permute.xlu0 %4455
        %4457 = vrot.lane.b32.xlu0 %v440, 114
        %v4458 = vpop.permute.xlu0 %4457
        %4459 = vrot.lane.b32.xlu0 %v441, 114
        %v4460 = vpop.permute.xlu0 %4459
        %4461 = vrot.lane.b32.xlu0 %v442, 114
        %v4462 = vpop.permute.xlu0 %4461
        %4463 = vrot.lane.b32.xlu0 %v443, 114
        %v4464 = vpop.permute.xlu0 %4463
        %4465 = vrot.lane.b32.xlu0 %v444, 114
        %v4466 = vpop.permute.xlu0 %4465
        %4467 = vrot.lane.b32.xlu0 %v445, 114
        %v4468 = vpop.permute.xlu0 %4467
        %4469 = vrot.lane.b32.xlu0 %v446, 114
        %v4470 = vpop.permute.xlu0 %4469
        %4471 = vrot.lane.b32.xlu0 %v447, 114
        %v4472 = vpop.permute.xlu0 %4471
        %4473 = vrot.lane.b32.xlu0 %v448, 114
        %v4474 = vpop.permute.xlu0 %4473
        %4475 = vrot.lane.b32.xlu0 %v449, 114
        %v4476 = vpop.permute.xlu0 %4475
        %4477 = vrot.lane.b32.xlu0 %v450, 114
        %v4478 = vpop.permute.xlu0 %4477
        %4479 = vrot.lane.b32.xlu0 %v451, 114
        %v4480 = vpop.permute.xlu0 %4479
        %4481 = vrot.lane.b32.xlu0 %v452, 114
        %v4482 = vpop.permute.xlu0 %4481
        %4483 = vrot.lane.b32.xlu0 %v453, 114
        %v4484 = vpop.permute.xlu0 %4483
        %vm4485 = vcmask 932864
        %v4486 = vsel %vm4485, %v4390, %v4392
        %v4487 = vsel %vm4485, %v4392, %v4394
        %v4488 = vsel %vm4485, %v4396, %v4398
        %v4489 = vsel %vm4485, %v4398, %v4400
        %v4490 = vsel %vm4485, %v4402, %v4404
        %v4491 = vsel %vm4485, %v4404, %v4406
        %v4492 = vsel %vm4485, %v4408, %v4410
        %v4493 = vsel %vm4485, %v4410, %v4412
        %v4494 = vsel %vm4485, %v4414, %v4416
        %v4495 = vsel %vm4485, %v4416, %v4418
        %v4496 = vsel %vm4485, %v4420, %v4422
        %v4497 = vsel %vm4485, %v4422, %v4424
        %v4498 = vsel %vm4485, %v4426, %v4428
        %v4499 = vsel %vm4485, %v4428, %v4430
        %v4500 = vsel %vm4485, %v4432, %v4434
        %v4501 = vsel %vm4485, %v4434, %v4436
        %v4502 = vsel %vm4485, %v4438, %v4440
        %v4503 = vsel %vm4485, %v4440, %v4442
        %v4504 = vsel %vm4485, %v4444, %v4446
        %v4505 = vsel %vm4485, %v4446, %v4448
        %v4506 = vsel %vm4485, %v4450, %v4452
        %v4507 = vsel %vm4485, %v4452, %v4454
        %v4508 = vsel %vm4485, %v4456, %v4458
        %v4509 = vsel %vm4485, %v4458, %v4460
        %v4510 = vsel %vm4485, %v4462, %v4464
        %v4511 = vsel %vm4485, %v4464, %v4466
        %v4512 = vsel %vm4485, %v4468, %v4470
        %v4513 = vsel %vm4485, %v4470, %v4472
        %v4514 = vsel %vm4485, %v4474, %v4476
        %v4515 = vsel %vm4485, %v4476, %v4478
        %v4516 = vsel %vm4485, %v4480, %v4482
        %v4517 = vsel %vm4485, %v4482, %v4484
        %4550 = vmatprep.subr.mxu0 %v4487
        %4551 = vmatpush1.msra.mxu0 %v4486
        %4552 = vmatprep.subr.mxu0 %v4489
        %4553 = vmatpush1.msra.mxu0 %v4488
        %4554 = vmatprep.subr.mxu0 %v4491
        %4555 = vmatpush1.msra.mxu0 %v4490
        %4556 = vmatprep.subr.mxu0 %v4493
        %4557 = vmatpush1.msra.mxu0 %v4492
        %4558 = vmatprep.subr.mxu0 %v4495
        %4559 = vmatpush1.msra.mxu0 %v4494
        %4560 = vmatprep.subr.mxu0 %v4497
        %4561 = vmatpush1.msra.mxu0 %v4496
        %4562 = vmatprep.subr.mxu0 %v4499
        %4563 = vmatpush1.msra.mxu0 %v4498
        %4564 = vmatprep.subr.mxu0 %v4501
        %4565 = vmatpush1.msra.mxu0 %v4500
        %4566 = vmatprep.subr.mxu0 %v4503
        %4567 = vmatpush1.msra.mxu0 %v4502
        %4568 = vmatprep.subr.mxu0 %v4505
        %4569 = vmatpush1.msra.mxu0 %v4504
        %4570 = vmatprep.subr.mxu0 %v4507
        %4571 = vmatpush1.msra.mxu0 %v4506
        %4572 = vmatprep.subr.mxu0 %v4509
        %4573 = vmatpush1.msra.mxu0 %v4508
        %4574 = vmatprep.subr.mxu0 %v4511
        %4575 = vmatpush1.msra.mxu0 %v4510
        %4576 = vmatprep.subr.mxu0 %v4513
        %4577 = vmatpush1.msra.mxu0 %v4512
        %4578 = vmatprep.subr.mxu0 %v4515
        %4579 = vmatpush1.msra.mxu0 %v4514
        %4580 = vmatprep.subr.mxu0 %v4517
        %4581 = vmatpush1.msra.mxu0 %v4516
        %4582 = vmatprep.subr.mxu0 0.0
        %4583 = vmatpush1.msra.mxu0 0.0
        %4584 = vmatprep.subr.mxu0 0.0
        %4585 = vmatpush1.msra.mxu0 0.0
        %4586 = vmatprep.subr.mxu0 0.0
        %4587 = vmatpush1.msra.mxu0 0.0
        %4588 = vmatprep.subr.mxu0 0.0
        %4589 = vmatpush1.msra.mxu0 0.0
        %4590 = vmatprep.subr.mxu0 0.0
        %4591 = vmatpush1.msra.mxu0 0.0
        %4592 = vmatprep.subr.mxu0 0.0
        %4593 = vmatpush1.msra.mxu0 0.0
        %4594 = vmatprep.subr.mxu0 0.0
        %4595 = vmatpush1.msra.mxu0 0.0
        %4596 = vmatprep.subr.mxu0 0.0
        %4597 = vmatpush1.msra.mxu0 0.0
        %4598 = vmatprep.subr.mxu0 0.0
        %4599 = vmatpush1.msra.mxu0 0.0
        %4600 = vmatprep.subr.mxu0 0.0
        %4601 = vmatpush1.msra.mxu0 0.0
        %4602 = vmatprep.subr.mxu0 0.0
        %4603 = vmatpush1.msra.mxu0 0.0
        %4604 = vmatprep.subr.mxu0 0.0
        %4605 = vmatpush1.msra.mxu0 0.0
        %4606 = vmatprep.subr.mxu0 0.0
        %4607 = vmatpush1.msra.mxu0 0.0
        %4608 = vmatprep.subr.mxu0 0.0
        %4609 = vmatpush1.msra.mxu0 0.0
        %4610 = vmatprep.subr.mxu0 0.0
        %4611 = vmatpush1.msra.mxu0 0.0
        %4612 = vmatprep.subr.mxu0 0.0
        %4613 = vmatpush1.msra.mxu0 0.0
        %4614 = vmatprep.mubr.f32.mxu0 0.0
        %4615 = vmatmul.mubr.f32.gmra.mrb[0].mxu0 %v4381
        %v4616 = vpop.f32.mrb[0].mxu0
        %v4617 = vadd.f32 0.0, %v4616
        %v4618 = vpop.f32.mrb[0].mxu0
        %v4619 = vadd.f32 0.0, %v4618
        %4620 = vmatprep.mubr.f32.mxu0 0.0
        %4621 = vmatmul.mubr.f32.gmra.mrb[0].mxu0 %v4382
        %v4622 = vpop.f32.mrb[0].mxu0
        %v4623 = vadd.f32 0.0, %v4622
        %v4624 = vpop.f32.mrb[0].mxu0
        %v4625 = vadd.f32 0.0, %v4624
        %4626 = vmatprep.mubr.f32.mxu0 0.0
        %4627 = vmatmul.mubr.f32.gmra.mrb[0].mxu0 %v4383
        %v4628 = vpop.f32.mrb[0].mxu0
        %v4629 = vadd.f32 0.0, %v4628
        %v4630 = vpop.f32.mrb[0].mxu0
        %v4631 = vadd.f32 0.0, %v4630
        %4632 = vmatprep.mubr.f32.mxu0 0.0
        %4633 = vmatmul.mubr.f32.gmra.mrb[0].mxu0 %v4384
        %v4634 = vpop.f32.mrb[0].mxu0
        %v4635 = vadd.f32 0.0, %v4634
        %v4636 = vpop.f32.mrb[0].mxu0
        %v4637 = vadd.f32 0.0, %v4636
        %4638 = vmatprep.mubr.f32.mxu0 0.0
        %4639 = vmatmul.mubr.f32.gmra.mrb[0].mxu0 %v4385
        %v4640 = vpop.f32.mrb[0].mxu0
        %v4641 = vadd.f32 0.0, %v4640
        %v4642 = vpop.f32.mrb[0].mxu0
        %v4643 = vadd.f32 0.0, %v4642
        %4644 = vmatprep.mubr.f32.mxu0 0.0
        %4645 = vmatmul.mubr.f32.gmra.mrb[0].mxu0 %v4386
        %v4646 = vpop.f32.mrb[0].mxu0
        %v4647 = vadd.f32 0.0, %v4646
        %v4648 = vpop.f32.mrb[0].mxu0
        %v4649 = vadd.f32 0.0, %v4648
        %4650 = vmatprep.mubr.f32.mxu0 0.0
        %4651 = vmatmul.mubr.f32.gmra.mrb[0].mxu0 %v4387
        %v4652 = vpop.f32.mrb[0].mxu0
        %v4653 = vadd.f32 0.0, %v4652
        %v4654 = vpop.f32.mrb[0].mxu0
        %v4655 = vadd.f32 0.0, %v4654
        %4656 = vmatprep.mubr.f32.mxu0 0.0
        %4657 = vmatmul.mubr.f32.gmra.mrb[0].mxu0 %v4388
        %v4658 = vpop.f32.mrb[0].mxu0
        %v4659 = vadd.f32 0.0, %v4658
        %v4660 = vpop.f32.mrb[0].mxu0
        %v4661 = vadd.f32 0.0, %v4660
        %4662 = vdwg.mxu0
        %v4663 = vadd.f32 %v4364, %v4617
        %v4664 = vadd.f32 %v4365, %v4619
        %v4665 = vadd.f32 %v4366, %v4623
        %v4666 = vadd.f32 %v4367, %v4625
        %v4667 = vadd.f32 %v4368, %v4629
        %v4668 = vadd.f32 %v4369, %v4631
        %v4669 = vadd.f32 %v4370, %v4635
        %v4670 = vadd.f32 %v4371, %v4637
        %v4671 = vadd.f32 %v4372, %v4641
        %v4672 = vadd.f32 %v4373, %v4643
        %v4673 = vadd.f32 %v4374, %v4647
        %v4674 = vadd.f32 %v4375, %v4649
        %v4675 = vadd.f32 %v4376, %v4653
        %v4676 = vadd.f32 %v4377, %v4655
        %v4677 = vadd.f32 %v4378, %v4659
        %v4678 = vadd.f32 %v4379, %v4661
        %s4679 = scalar_lea.vmem %s3, 960
        %v4680 = vld [vmem:[%s4679] sm:$0xff]
        %v4681 = vld [vmem:[%s4679 + $0x8] sm:$0xff]
        %v4682 = vld [vmem:[%s4679 + $0x10] sm:$0xff]
        %v4683 = vld [vmem:[%s4679 + $0x18] sm:$0xff]
        %v4684 = vld [vmem:[%s4679 + $0x20] sm:$0xff]
        %v4685 = vld [vmem:[%s4679 + $0x28] sm:$0xff]
        %v4686 = vld [vmem:[%s4679 + $0x30] sm:$0xff]
        %v4687 = vld [vmem:[%s4679 + $0x38] sm:$0xff]
        %4688 = vrot.lane.b32.xlu0 %v406, 113
        %v4689 = vpop.permute.xlu0 %4688
        %4690 = vrot.lane.b32.xlu0 %v407, 113
        %v4691 = vpop.permute.xlu0 %4690
        %4692 = vrot.lane.b32.xlu0 %v408, 113
        %v4693 = vpop.permute.xlu0 %4692
        %4694 = vrot.lane.b32.xlu0 %v409, 113
        %v4695 = vpop.permute.xlu0 %4694
        %4696 = vrot.lane.b32.xlu0 %v410, 113
        %v4697 = vpop.permute.xlu0 %4696
        %4698 = vrot.lane.b32.xlu0 %v411, 113
        %v4699 = vpop.permute.xlu0 %4698
        %4700 = vrot.lane.b32.xlu0 %v412, 113
        %v4701 = vpop.permute.xlu0 %4700
        %4702 = vrot.lane.b32.xlu0 %v413, 113
        %v4703 = vpop.permute.xlu0 %4702
        %4704 = vrot.lane.b32.xlu0 %v414, 113
        %v4705 = vpop.permute.xlu0 %4704
        %4706 = vrot.lane.b32.xlu0 %v415, 113
        %v4707 = vpop.permute.xlu0 %4706
        %4708 = vrot.lane.b32.xlu0 %v416, 113
        %v4709 = vpop.permute.xlu0 %4708
        %4710 = vrot.lane.b32.xlu0 %v417, 113
        %v4711 = vpop.permute.xlu0 %4710
        %4712 = vrot.lane.b32.xlu0 %v418, 113
        %v4713 = vpop.permute.xlu0 %4712
        %4714 = vrot.lane.b32.xlu0 %v419, 113
        %v4715 = vpop.permute.xlu0 %4714
        %4716 = vrot.lane.b32.xlu0 %v420, 113
        %v4717 = vpop.permute.xlu0 %4716
        %4718 = vrot.lane.b32.xlu0 %v421, 113
        %v4719 = vpop.permute.xlu0 %4718
        %4720 = vrot.lane.b32.xlu0 %v422, 113
        %v4721 = vpop.permute.xlu0 %4720
        %4722 = vrot.lane.b32.xlu0 %v423, 113
        %v4723 = vpop.permute.xlu0 %4722
        %4724 = vrot.lane.b32.xlu0 %v424, 113
        %v4725 = vpop.permute.xlu0 %4724
        %4726 = vrot.lane.b32.xlu0 %v425, 113
        %v4727 = vpop.permute.xlu0 %4726
        %4728 = vrot.lane.b32.xlu0 %v426, 113
        %v4729 = vpop.permute.xlu0 %4728
        %4730 = vrot.lane.b32.xlu0 %v427, 113
        %v4731 = vpop.permute.xlu0 %4730
        %4732 = vrot.lane.b32.xlu0 %v428, 113
        %v4733 = vpop.permute.xlu0 %4732
        %4734 = vrot.lane.b32.xlu0 %v429, 113
        %v4735 = vpop.permute.xlu0 %4734
        %4736 = vrot.lane.b32.xlu0 %v430, 113
        %v4737 = vpop.permute.xlu0 %4736
        %4738 = vrot.lane.b32.xlu0 %v431, 113
        %v4739 = vpop.permute.xlu0 %4738
        %4740 = vrot.lane.b32.xlu0 %v432, 113
        %v4741 = vpop.permute.xlu0 %4740
        %4742 = vrot.lane.b32.xlu0 %v433, 113
        %v4743 = vpop.permute.xlu0 %4742
        %4744 = vrot.lane.b32.xlu0 %v434, 113
        %v4745 = vpop.permute.xlu0 %4744
        %4746 = vrot.lane.b32.xlu0 %v435, 113
        %v4747 = vpop.permute.xlu0 %4746
        %4748 = vrot.lane.b32.xlu0 %v436, 113
        %v4749 = vpop.permute.xlu0 %4748
        %4750 = vrot.lane.b32.xlu0 %v437, 113
        %v4751 = vpop.permute.xlu0 %4750
        %4752 = vrot.lane.b32.xlu0 %v438, 113
        %v4753 = vpop.permute.xlu0 %4752
        %4754 = vrot.lane.b32.xlu0 %v439, 113
        %v4755 = vpop.permute.xlu0 %4754
        %4756 = vrot.lane.b32.xlu0 %v440, 113
        %v4757 = vpop.permute.xlu0 %4756
        %4758 = vrot.lane.b32.xlu0 %v441, 113
        %v4759 = vpop.permute.xlu0 %4758
        %4760 = vrot.lane.b32.xlu0 %v442, 113
        %v4761 = vpop.permute.xlu0 %4760
        %4762 = vrot.lane.b32.xlu0 %v443, 113
        %v4763 = vpop.permute.xlu0 %4762
        %4764 = vrot.lane.b32.xlu0 %v444, 113
        %v4765 = vpop.permute.xlu0 %4764
        %4766 = vrot.lane.b32.xlu0 %v445, 113
        %v4767 = vpop.permute.xlu0 %4766
        %4768 = vrot.lane.b32.xlu0 %v446, 113
        %v4769 = vpop.permute.xlu0 %4768
        %4770 = vrot.lane.b32.xlu0 %v447, 113
        %v4771 = vpop.permute.xlu0 %4770
        %4772 = vrot.lane.b32.xlu0 %v448, 113
        %v4773 = vpop.permute.xlu0 %4772
        %4774 = vrot.lane.b32.xlu0 %v449, 113
        %v4775 = vpop.permute.xlu0 %4774
        %4776 = vrot.lane.b32.xlu0 %v450, 113
        %v4777 = vpop.permute.xlu0 %4776
        %4778 = vrot.lane.b32.xlu0 %v451, 113
        %v4779 = vpop.permute.xlu0 %4778
        %4780 = vrot.lane.b32.xlu0 %v452, 113
        %v4781 = vpop.permute.xlu0 %4780
        %4782 = vrot.lane.b32.xlu0 %v453, 113
        %v4783 = vpop.permute.xlu0 %4782
        %vm4784 = vcmask 924672
        %v4785 = vsel %vm4784, %v4689, %v4691
        %v4786 = vsel %vm4784, %v4691, %v4693
        %v4787 = vsel %vm4784, %v4695, %v4697
        %v4788 = vsel %vm4784, %v4697, %v4699
        %v4789 = vsel %vm4784, %v4701, %v4703
        %v4790 = vsel %vm4784, %v4703, %v4705
        %v4791 = vsel %vm4784, %v4707, %v4709
        %v4792 = vsel %vm4784, %v4709, %v4711
        %v4793 = vsel %vm4784, %v4713, %v4715
        %v4794 = vsel %vm4784, %v4715, %v4717
        %v4795 = vsel %vm4784, %v4719, %v4721
        %v4796 = vsel %vm4784, %v4721, %v4723
        %v4797 = vsel %vm4784, %v4725, %v4727
        %v4798 = vsel %vm4784, %v4727, %v4729
        %v4799 = vsel %vm4784, %v4731, %v4733
        %v4800 = vsel %vm4784, %v4733, %v4735
        %v4801 = vsel %vm4784, %v4737, %v4739
        %v4802 = vsel %vm4784, %v4739, %v4741
        %v4803 = vsel %vm4784, %v4743, %v4745
        %v4804 = vsel %vm4784, %v4745, %v4747
        %v4805 = vsel %vm4784, %v4749, %v4751
        %v4806 = vsel %vm4784, %v4751, %v4753
        %v4807 = vsel %vm4784, %v4755, %v4757
        %v4808 = vsel %vm4784, %v4757, %v4759
        %v4809 = vsel %vm4784, %v4761, %v4763
        %v4810 = vsel %vm4784, %v4763, %v4765
        %v4811 = vsel %vm4784, %v4767, %v4769
        %v4812 = vsel %vm4784, %v4769, %v4771
        %v4813 = vsel %vm4784, %v4773, %v4775
        %v4814 = vsel %vm4784, %v4775, %v4777
        %v4815 = vsel %vm4784, %v4779, %v4781
        %v4816 = vsel %vm4784, %v4781, %v4783
        %4849 = vmatprep.subr.mxu0 %v4786
        %4850 = vmatpush1.msra.mxu0 %v4785
        %4851 = vmatprep.subr.mxu0 %v4788
        %4852 = vmatpush1.msra.mxu0 %v4787
        %4853 = vmatprep.subr.mxu0 %v4790
        %4854 = vmatpush1.msra.mxu0 %v4789
        %4855 = vmatprep.subr.mxu0 %v4792
        %4856 = vmatpush1.msra.mxu0 %v4791
        %4857 = vmatprep.subr.mxu0 %v4794
        %4858 = vmatpush1.msra.mxu0 %v4793
        %4859 = vmatprep.subr.mxu0 %v4796
        %4860 = vmatpush1.msra.mxu0 %v4795
        %4861 = vmatprep.subr.mxu0 %v4798
        %4862 = vmatpush1.msra.mxu0 %v4797
        %4863 = vmatprep.subr.mxu0 %v4800
        %4864 = vmatpush1.msra.mxu0 %v4799
        %4865 = vmatprep.subr.mxu0 %v4802
        %4866 = vmatpush1.msra.mxu0 %v4801
        %4867 = vmatprep.subr.mxu0 %v4804
        %4868 = vmatpush1.msra.mxu0 %v4803
        %4869 = vmatprep.subr.mxu0 %v4806
        %4870 = vmatpush1.msra.mxu0 %v4805
        %4871 = vmatprep.subr.mxu0 %v4808
        %4872 = vmatpush1.msra.mxu0 %v4807
        %4873 = vmatprep.subr.mxu0 %v4810
        %4874 = vmatpush1.msra.mxu0 %v4809
        %4875 = vmatprep.subr.mxu0 %v4812
        %4876 = vmatpush1.msra.mxu0 %v4811
        %4877 = vmatprep.subr.mxu0 %v4814
        %4878 = vmatpush1.msra.mxu0 %v4813
        %4879 = vmatprep.subr.mxu0 %v4816
        %4880 = vmatpush1.msra.mxu0 %v4815
        %4881 = vmatprep.subr.mxu0 0.0
        %4882 = vmatpush1.msra.mxu0 0.0
        %4883 = vmatprep.subr.mxu0 0.0
        %4884 = vmatpush1.msra.mxu0 0.0
        %4885 = vmatprep.subr.mxu0 0.0
        %4886 = vmatpush1.msra.mxu0 0.0
        %4887 = vmatprep.subr.mxu0 0.0
        %4888 = vmatpush1.msra.mxu0 0.0
        %4889 = vmatprep.subr.mxu0 0.0
        %4890 = vmatpush1.msra.mxu0 0.0
        %4891 = vmatprep.subr.mxu0 0.0
        %4892 = vmatpush1.msra.mxu0 0.0
        %4893 = vmatprep.subr.mxu0 0.0
        %4894 = vmatpush1.msra.mxu0 0.0
        %4895 = vmatprep.subr.mxu0 0.0
        %4896 = vmatpush1.msra.mxu0 0.0
        %4897 = vmatprep.subr.mxu0 0.0
        %4898 = vmatpush1.msra.mxu0 0.0
        %4899 = vmatprep.subr.mxu0 0.0
        %4900 = vmatpush1.msra.mxu0 0.0
        %4901 = vmatprep.subr.mxu0 0.0
        %4902 = vmatpush1.msra.mxu0 0.0
        %4903 = vmatprep.subr.mxu0 0.0
        %4904 = vmatpush1.msra.mxu0 0.0
        %4905 = vmatprep.subr.mxu0 0.0
        %4906 = vmatpush1.msra.mxu0 0.0
        %4907 = vmatprep.subr.mxu0 0.0
        %4908 = vmatpush1.msra.mxu0 0.0
        %4909 = vmatprep.subr.mxu0 0.0
        %4910 = vmatpush1.msra.mxu0 0.0
        %4911 = vmatprep.subr.mxu0 0.0
        %4912 = vmatpush1.msra.mxu0 0.0
        %4913 = vmatprep.mubr.f32.mxu0 0.0
        %4914 = vmatmul.mubr.f32.gmra.mrb[0].mxu0 %v4680
        %v4915 = vpop.f32.mrb[0].mxu0
        %v4916 = vadd.f32 0.0, %v4915
        %v4917 = vpop.f32.mrb[0].mxu0
        %v4918 = vadd.f32 0.0, %v4917
        %4919 = vmatprep.mubr.f32.mxu0 0.0
        %4920 = vmatmul.mubr.f32.gmra.mrb[0].mxu0 %v4681
        %v4921 = vpop.f32.mrb[0].mxu0
        %v4922 = vadd.f32 0.0, %v4921
        %v4923 = vpop.f32.mrb[0].mxu0
        %v4924 = vadd.f32 0.0, %v4923
        %4925 = vmatprep.mubr.f32.mxu0 0.0
        %4926 = vmatmul.mubr.f32.gmra.mrb[0].mxu0 %v4682
        %v4927 = vpop.f32.mrb[0].mxu0
        %v4928 = vadd.f32 0.0, %v4927
        %v4929 = vpop.f32.mrb[0].mxu0
        %v4930 = vadd.f32 0.0, %v4929
        %4931 = vmatprep.mubr.f32.mxu0 0.0
        %4932 = vmatmul.mubr.f32.gmra.mrb[0].mxu0 %v4683
        %v4933 = vpop.f32.mrb[0].mxu0
        %v4934 = vadd.f32 0.0, %v4933
        %v4935 = vpop.f32.mrb[0].mxu0
        %v4936 = vadd.f32 0.0, %v4935
        %4937 = vmatprep.mubr.f32.mxu0 0.0
        %4938 = vmatmul.mubr.f32.gmra.mrb[0].mxu0 %v4684
        %v4939 = vpop.f32.mrb[0].mxu0
        %v4940 = vadd.f32 0.0, %v4939
        %v4941 = vpop.f32.mrb[0].mxu0
        %v4942 = vadd.f32 0.0, %v4941
        %4943 = vmatprep.mubr.f32.mxu0 0.0
        %4944 = vmatmul.mubr.f32.gmra.mrb[0].mxu0 %v4685
        %v4945 = vpop.f32.mrb[0].mxu0
        %v4946 = vadd.f32 0.0, %v4945
        %v4947 = vpop.f32.mrb[0].mxu0
        %v4948 = vadd.f32 0.0, %v4947
        %4949 = vmatprep.mubr.f32.mxu0 0.0
        %4950 = vmatmul.mubr.f32.gmra.mrb[0].mxu0 %v4686
        %v4951 = vpop.f32.mrb[0].mxu0
        %v4952 = vadd.f32 0.0, %v4951
        %v4953 = vpop.f32.mrb[0].mxu0
        %v4954 = vadd.f32 0.0, %v4953
        %4955 = vmatprep.mubr.f32.mxu0 0.0
        %4956 = vmatmul.mubr.f32.gmra.mrb[0].mxu0 %v4687
        %v4957 = vpop.f32.mrb[0].mxu0
        %v4958 = vadd.f32 0.0, %v4957
        %v4959 = vpop.f32.mrb[0].mxu0
        %v4960 = vadd.f32 0.0, %v4959
        %4961 = vdwg.mxu0
        %v4962 = vadd.f32 %v4663, %v4916
        %v4963 = vadd.f32 %v4664, %v4918
        %v4964 = vadd.f32 %v4665, %v4922
        %v4965 = vadd.f32 %v4666, %v4924
        %v4966 = vadd.f32 %v4667, %v4928
        %v4967 = vadd.f32 %v4668, %v4930
        %v4968 = vadd.f32 %v4669, %v4934
        %v4969 = vadd.f32 %v4670, %v4936
        %v4970 = vadd.f32 %v4671, %v4940
        %v4971 = vadd.f32 %v4672, %v4942
        %v4972 = vadd.f32 %v4673, %v4946
        %v4973 = vadd.f32 %v4674, %v4948
        %v4974 = vadd.f32 %v4675, %v4952
        %v4975 = vadd.f32 %v4676, %v4954
        %v4976 = vadd.f32 %v4677, %v4958
        %v4977 = vadd.f32 %v4678, %v4960
        %s4978 = scalar_lea.vmem %s3, 1024
        %v4979 = vld [vmem:[%s4978] sm:$0xff]
        %v4980 = vld [vmem:[%s4978 + $0x8] sm:$0xff]
        %v4981 = vld [vmem:[%s4978 + $0x10] sm:$0xff]
        %v4982 = vld [vmem:[%s4978 + $0x18] sm:$0xff]
        %v4983 = vld [vmem:[%s4978 + $0x20] sm:$0xff]
        %v4984 = vld [vmem:[%s4978 + $0x28] sm:$0xff]
        %v4985 = vld [vmem:[%s4978 + $0x30] sm:$0xff]
        %v4986 = vld [vmem:[%s4978 + $0x38] sm:$0xff]
        %4987 = vrot.lane.b32.xlu0 %v406, 112
        %v4988 = vpop.permute.xlu0 %4987
        %4989 = vrot.lane.b32.xlu0 %v407, 112
        %v4990 = vpop.permute.xlu0 %4989
        %4991 = vrot.lane.b32.xlu0 %v408, 112
        %v4992 = vpop.permute.xlu0 %4991
        %4993 = vrot.lane.b32.xlu0 %v409, 112
        %v4994 = vpop.permute.xlu0 %4993
        %4995 = vrot.lane.b32.xlu0 %v410, 112
        %v4996 = vpop.permute.xlu0 %4995
        %4997 = vrot.lane.b32.xlu0 %v411, 112
        %v4998 = vpop.permute.xlu0 %4997
        %4999 = vrot.lane.b32.xlu0 %v412, 112
        %v5000 = vpop.permute.xlu0 %4999
        %5001 = vrot.lane.b32.xlu0 %v413, 112
        %v5002 = vpop.permute.xlu0 %5001
        %5003 = vrot.lane.b32.xlu0 %v414, 112
        %v5004 = vpop.permute.xlu0 %5003
        %5005 = vrot.lane.b32.xlu0 %v415, 112
        %v5006 = vpop.permute.xlu0 %5005
        %5007 = vrot.lane.b32.xlu0 %v416, 112
        %v5008 = vpop.permute.xlu0 %5007
        %5009 = vrot.lane.b32.xlu0 %v417, 112
        %v5010 = vpop.permute.xlu0 %5009
        %5011 = vrot.lane.b32.xlu0 %v418, 112
        %v5012 = vpop.permute.xlu0 %5011
        %5013 = vrot.lane.b32.xlu0 %v419, 112
        %v5014 = vpop.permute.xlu0 %5013
        %5015 = vrot.lane.b32.xlu0 %v420, 112
        %v5016 = vpop.permute.xlu0 %5015
        %5017 = vrot.lane.b32.xlu0 %v421, 112
        %v5018 = vpop.permute.xlu0 %5017
        %5019 = vrot.lane.b32.xlu0 %v422, 112
        %v5020 = vpop.permute.xlu0 %5019
        %5021 = vrot.lane.b32.xlu0 %v423, 112
        %v5022 = vpop.permute.xlu0 %5021
        %5023 = vrot.lane.b32.xlu0 %v424, 112
        %v5024 = vpop.permute.xlu0 %5023
        %5025 = vrot.lane.b32.xlu0 %v425, 112
        %v5026 = vpop.permute.xlu0 %5025
        %5027 = vrot.lane.b32.xlu0 %v426, 112
        %v5028 = vpop.permute.xlu0 %5027
        %5029 = vrot.lane.b32.xlu0 %v427, 112
        %v5030 = vpop.permute.xlu0 %5029
        %5031 = vrot.lane.b32.xlu0 %v428, 112
        %v5032 = vpop.permute.xlu0 %5031
        %5033 = vrot.lane.b32.xlu0 %v429, 112
        %v5034 = vpop.permute.xlu0 %5033
        %5035 = vrot.lane.b32.xlu0 %v430, 112
        %v5036 = vpop.permute.xlu0 %5035
        %5037 = vrot.lane.b32.xlu0 %v431, 112
        %v5038 = vpop.permute.xlu0 %5037
        %5039 = vrot.lane.b32.xlu0 %v432, 112
        %v5040 = vpop.permute.xlu0 %5039
        %5041 = vrot.lane.b32.xlu0 %v433, 112
        %v5042 = vpop.permute.xlu0 %5041
        %5043 = vrot.lane.b32.xlu0 %v434, 112
        %v5044 = vpop.permute.xlu0 %5043
        %5045 = vrot.lane.b32.xlu0 %v435, 112
        %v5046 = vpop.permute.xlu0 %5045
        %5047 = vrot.lane.b32.xlu0 %v436, 112
        %v5048 = vpop.permute.xlu0 %5047
        %5049 = vrot.lane.b32.xlu0 %v437, 112
        %v5050 = vpop.permute.xlu0 %5049
        %5051 = vrot.lane.b32.xlu0 %v438, 112
        %v5052 = vpop.permute.xlu0 %5051
        %5053 = vrot.lane.b32.xlu0 %v439, 112
        %v5054 = vpop.permute.xlu0 %5053
        %5055 = vrot.lane.b32.xlu0 %v440, 112
        %v5056 = vpop.permute.xlu0 %5055
        %5057 = vrot.lane.b32.xlu0 %v441, 112
        %v5058 = vpop.permute.xlu0 %5057
        %5059 = vrot.lane.b32.xlu0 %v442, 112
        %v5060 = vpop.permute.xlu0 %5059
        %5061 = vrot.lane.b32.xlu0 %v443, 112
        %v5062 = vpop.permute.xlu0 %5061
        %5063 = vrot.lane.b32.xlu0 %v444, 112
        %v5064 = vpop.permute.xlu0 %5063
        %5065 = vrot.lane.b32.xlu0 %v445, 112
        %v5066 = vpop.permute.xlu0 %5065
        %5067 = vrot.lane.b32.xlu0 %v446, 112
        %v5068 = vpop.permute.xlu0 %5067
        %5069 = vrot.lane.b32.xlu0 %v447, 112
        %v5070 = vpop.permute.xlu0 %5069
        %5071 = vrot.lane.b32.xlu0 %v448, 112
        %v5072 = vpop.permute.xlu0 %5071
        %5073 = vrot.lane.b32.xlu0 %v449, 112
        %v5074 = vpop.permute.xlu0 %5073
        %5075 = vrot.lane.b32.xlu0 %v450, 112
        %v5076 = vpop.permute.xlu0 %5075
        %5077 = vrot.lane.b32.xlu0 %v451, 112
        %v5078 = vpop.permute.xlu0 %5077
        %5079 = vrot.lane.b32.xlu0 %v452, 112
        %v5080 = vpop.permute.xlu0 %5079
        %5081 = vrot.lane.b32.xlu0 %v453, 112
        %v5082 = vpop.permute.xlu0 %5081
        %vm5083 = vcmask 916480
        %v5084 = vsel %vm5083, %v4988, %v4990
        %v5085 = vsel %vm5083, %v4990, %v4992
        %v5086 = vsel %vm5083, %v4994, %v4996
        %v5087 = vsel %vm5083, %v4996, %v4998
        %v5088 = vsel %vm5083, %v5000, %v5002
        %v5089 = vsel %vm5083, %v5002, %v5004
        %v5090 = vsel %vm5083, %v5006, %v5008
        %v5091 = vsel %vm5083, %v5008, %v5010
        %v5092 = vsel %vm5083, %v5012, %v5014
        %v5093 = vsel %vm5083, %v5014, %v5016
        %v5094 = vsel %vm5083, %v5018, %v5020
        %v5095 = vsel %vm5083, %v5020, %v5022
        %v5096 = vsel %vm5083, %v5024, %v5026
        %v5097 = vsel %vm5083, %v5026, %v5028
        %v5098 = vsel %vm5083, %v5030, %v5032
        %v5099 = vsel %vm5083, %v5032, %v5034
        %v5100 = vsel %vm5083, %v5036, %v5038
        %v5101 = vsel %vm5083, %v5038, %v5040
        %v5102 = vsel %vm5083, %v5042, %v5044
        %v5103 = vsel %vm5083, %v5044, %v5046
        %v5104 = vsel %vm5083, %v5048, %v5050
        %v5105 = vsel %vm5083, %v5050, %v5052
        %v5106 = vsel %vm5083, %v5054, %v5056
        %v5107 = vsel %vm5083, %v5056, %v5058
        %v5108 = vsel %vm5083, %v5060, %v5062
        %v5109 = vsel %vm5083, %v5062, %v5064
        %v5110 = vsel %vm5083, %v5066, %v5068
        %v5111 = vsel %vm5083, %v5068, %v5070
        %v5112 = vsel %vm5083, %v5072, %v5074
        %v5113 = vsel %vm5083, %v5074, %v5076
        %v5114 = vsel %vm5083, %v5078, %v5080
        %v5115 = vsel %vm5083, %v5080, %v5082
        %5148 = vmatprep.subr.mxu0 %v5085
        %5149 = vmatpush1.msra.mxu0 %v5084
        %5150 = vmatprep.subr.mxu0 %v5087
        %5151 = vmatpush1.msra.mxu0 %v5086
        %5152 = vmatprep.subr.mxu0 %v5089
        %5153 = vmatpush1.msra.mxu0 %v5088
        %5154 = vmatprep.subr.mxu0 %v5091
        %5155 = vmatpush1.msra.mxu0 %v5090
        %5156 = vmatprep.subr.mxu0 %v5093
        %5157 = vmatpush1.msra.mxu0 %v5092
        %5158 = vmatprep.subr.mxu0 %v5095
        %5159 = vmatpush1.msra.mxu0 %v5094
        %5160 = vmatprep.subr.mxu0 %v5097
        %5161 = vmatpush1.msra.mxu0 %v5096
        %5162 = vmatprep.subr.mxu0 %v5099
        %5163 = vmatpush1.msra.mxu0 %v5098
        %5164 = vmatprep.subr.mxu0 %v5101
        %5165 = vmatpush1.msra.mxu0 %v5100
        %5166 = vmatprep.subr.mxu0 %v5103
        %5167 = vmatpush1.msra.mxu0 %v5102
        %5168 = vmatprep.subr.mxu0 %v5105
        %5169 = vmatpush1.msra.mxu0 %v5104
        %5170 = vmatprep.subr.mxu0 %v5107
        %5171 = vmatpush1.msra.mxu0 %v5106
        %5172 = vmatprep.subr.mxu0 %v5109
        %5173 = vmatpush1.msra.mxu0 %v5108
        %5174 = vmatprep.subr.mxu0 %v5111
        %5175 = vmatpush1.msra.mxu0 %v5110
        %5176 = vmatprep.subr.mxu0 %v5113
        %5177 = vmatpush1.msra.mxu0 %v5112
        %5178 = vmatprep.subr.mxu0 %v5115
        %5179 = vmatpush1.msra.mxu0 %v5114
        %5180 = vmatprep.subr.mxu0 0.0
        %5181 = vmatpush1.msra.mxu0 0.0
        %5182 = vmatprep.subr.mxu0 0.0
        %5183 = vmatpush1.msra.mxu0 0.0
        %5184 = vmatprep.subr.mxu0 0.0
        %5185 = vmatpush1.msra.mxu0 0.0
        %5186 = vmatprep.subr.mxu0 0.0
        %5187 = vmatpush1.msra.mxu0 0.0
        %5188 = vmatprep.subr.mxu0 0.0
        %5189 = vmatpush1.msra.mxu0 0.0
        %5190 = vmatprep.subr.mxu0 0.0
        %5191 = vmatpush1.msra.mxu0 0.0
        %5192 = vmatprep.subr.mxu0 0.0
        %5193 = vmatpush1.msra.mxu0 0.0
        %5194 = vmatprep.subr.mxu0 0.0
        %5195 = vmatpush1.msra.mxu0 0.0
        %5196 = vmatprep.subr.mxu0 0.0
        %5197 = vmatpush1.msra.mxu0 0.0
        %5198 = vmatprep.subr.mxu0 0.0
        %5199 = vmatpush1.msra.mxu0 0.0
        %5200 = vmatprep.subr.mxu0 0.0
        %5201 = vmatpush1.msra.mxu0 0.0
        %5202 = vmatprep.subr.mxu0 0.0
        %5203 = vmatpush1.msra.mxu0 0.0
        %5204 = vmatprep.subr.mxu0 0.0
        %5205 = vmatpush1.msra.mxu0 0.0
        %5206 = vmatprep.subr.mxu0 0.0
        %5207 = vmatpush1.msra.mxu0 0.0
        %5208 = vmatprep.subr.mxu0 0.0
        %5209 = vmatpush1.msra.mxu0 0.0
        %5210 = vmatprep.subr.mxu0 0.0
        %5211 = vmatpush1.msra.mxu0 0.0
        %5212 = vmatprep.mubr.f32.mxu0 0.0
        %5213 = vmatmul.mubr.f32.gmra.mrb[0].mxu0 %v4979
        %v5214 = vpop.f32.mrb[0].mxu0
        %v5215 = vadd.f32 0.0, %v5214
        %v5216 = vpop.f32.mrb[0].mxu0
        %v5217 = vadd.f32 0.0, %v5216
        %5218 = vmatprep.mubr.f32.mxu0 0.0
        %5219 = vmatmul.mubr.f32.gmra.mrb[0].mxu0 %v4980
        %v5220 = vpop.f32.mrb[0].mxu0
        %v5221 = vadd.f32 0.0, %v5220
        %v5222 = vpop.f32.mrb[0].mxu0
        %v5223 = vadd.f32 0.0, %v5222
        %5224 = vmatprep.mubr.f32.mxu0 0.0
        %5225 = vmatmul.mubr.f32.gmra.mrb[0].mxu0 %v4981
        %v5226 = vpop.f32.mrb[0].mxu0
        %v5227 = vadd.f32 0.0, %v5226
        %v5228 = vpop.f32.mrb[0].mxu0
        %v5229 = vadd.f32 0.0, %v5228
        %5230 = vmatprep.mubr.f32.mxu0 0.0
        %5231 = vmatmul.mubr.f32.gmra.mrb[0].mxu0 %v4982
        %v5232 = vpop.f32.mrb[0].mxu0
        %v5233 = vadd.f32 0.0, %v5232
        %v5234 = vpop.f32.mrb[0].mxu0
        %v5235 = vadd.f32 0.0, %v5234
        %5236 = vmatprep.mubr.f32.mxu0 0.0
        %5237 = vmatmul.mubr.f32.gmra.mrb[0].mxu0 %v4983
        %v5238 = vpop.f32.mrb[0].mxu0
        %v5239 = vadd.f32 0.0, %v5238
        %v5240 = vpop.f32.mrb[0].mxu0
        %v5241 = vadd.f32 0.0, %v5240
        %5242 = vmatprep.mubr.f32.mxu0 0.0
        %5243 = vmatmul.mubr.f32.gmra.mrb[0].mxu0 %v4984
        %v5244 = vpop.f32.mrb[0].mxu0
        %v5245 = vadd.f32 0.0, %v5244
        %v5246 = vpop.f32.mrb[0].mxu0
        %v5247 = vadd.f32 0.0, %v5246
        %5248 = vmatprep.mubr.f32.mxu0 0.0
        %5249 = vmatmul.mubr.f32.gmra.mrb[0].mxu0 %v4985
        %v5250 = vpop.f32.mrb[0].mxu0
        %v5251 = vadd.f32 0.0, %v5250
        %v5252 = vpop.f32.mrb[0].mxu0
        %v5253 = vadd.f32 0.0, %v5252
        %5254 = vmatprep.mubr.f32.mxu0 0.0
        %5255 = vmatmul.mubr.f32.gmra.mrb[0].mxu0 %v4986
        %v5256 = vpop.f32.mrb[0].mxu0
        %v5257 = vadd.f32 0.0, %v5256
        %v5258 = vpop.f32.mrb[0].mxu0
        %v5259 = vadd.f32 0.0, %v5258
        %5260 = vdwg.mxu0
        %v5261 = vadd.f32 %v4962, %v5215
        %v5262 = vadd.f32 %v4963, %v5217
        %v5263 = vadd.f32 %v4964, %v5221
        %v5264 = vadd.f32 %v4965, %v5223
        %v5265 = vadd.f32 %v4966, %v5227
        %v5266 = vadd.f32 %v4967, %v5229
        %v5267 = vadd.f32 %v4968, %v5233
        %v5268 = vadd.f32 %v4969, %v5235
        %v5269 = vadd.f32 %v4970, %v5239
        %v5270 = vadd.f32 %v4971, %v5241
        %v5271 = vadd.f32 %v4972, %v5245
        %v5272 = vadd.f32 %v4973, %v5247
        %v5273 = vadd.f32 %v4974, %v5251
        %v5274 = vadd.f32 %v4975, %v5253
        %v5275 = vadd.f32 %v4976, %v5257
        %v5276 = vadd.f32 %v4977, %v5259
        %s5277 = scalar_lea.vmem %s3, 1088
        %v5278 = vld [vmem:[%s5277] sm:$0xff]
        %v5279 = vld [vmem:[%s5277 + $0x8] sm:$0xff]
        %v5280 = vld [vmem:[%s5277 + $0x10] sm:$0xff]
        %v5281 = vld [vmem:[%s5277 + $0x18] sm:$0xff]
        %v5282 = vld [vmem:[%s5277 + $0x20] sm:$0xff]
        %v5283 = vld [vmem:[%s5277 + $0x28] sm:$0xff]
        %v5284 = vld [vmem:[%s5277 + $0x30] sm:$0xff]
        %v5285 = vld [vmem:[%s5277 + $0x38] sm:$0xff]
        %5286 = vrot.lane.b32.xlu0 %v406, 111
        %v5287 = vpop.permute.xlu0 %5286
        %5288 = vrot.lane.b32.xlu0 %v407, 111
        %v5289 = vpop.permute.xlu0 %5288
        %5290 = vrot.lane.b32.xlu0 %v408, 111
        %v5291 = vpop.permute.xlu0 %5290
        %5292 = vrot.lane.b32.xlu0 %v409, 111
        %v5293 = vpop.permute.xlu0 %5292
        %5294 = vrot.lane.b32.xlu0 %v410, 111
        %v5295 = vpop.permute.xlu0 %5294
        %5296 = vrot.lane.b32.xlu0 %v411, 111
        %v5297 = vpop.permute.xlu0 %5296
        %5298 = vrot.lane.b32.xlu0 %v412, 111
        %v5299 = vpop.permute.xlu0 %5298
        %5300 = vrot.lane.b32.xlu0 %v413, 111
        %v5301 = vpop.permute.xlu0 %5300
        %5302 = vrot.lane.b32.xlu0 %v414, 111
        %v5303 = vpop.permute.xlu0 %5302
        %5304 = vrot.lane.b32.xlu0 %v415, 111
        %v5305 = vpop.permute.xlu0 %5304
        %5306 = vrot.lane.b32.xlu0 %v416, 111
        %v5307 = vpop.permute.xlu0 %5306
        %5308 = vrot.lane.b32.xlu0 %v417, 111
        %v5309 = vpop.permute.xlu0 %5308
        %5310 = vrot.lane.b32.xlu0 %v418, 111
        %v5311 = vpop.permute.xlu0 %5310
        %5312 = vrot.lane.b32.xlu0 %v419, 111
        %v5313 = vpop.permute.xlu0 %5312
        %5314 = vrot.lane.b32.xlu0 %v420, 111
        %v5315 = vpop.permute.xlu0 %5314
        %5316 = vrot.lane.b32.xlu0 %v421, 111
        %v5317 = vpop.permute.xlu0 %5316
        %5318 = vrot.lane.b32.xlu0 %v422, 111
        %v5319 = vpop.permute.xlu0 %5318
        %5320 = vrot.lane.b32.xlu0 %v423, 111
        %v5321 = vpop.permute.xlu0 %5320
        %5322 = vrot.lane.b32.xlu0 %v424, 111
        %v5323 = vpop.permute.xlu0 %5322
        %5324 = vrot.lane.b32.xlu0 %v425, 111
        %v5325 = vpop.permute.xlu0 %5324
        %5326 = vrot.lane.b32.xlu0 %v426, 111
        %v5327 = vpop.permute.xlu0 %5326
        %5328 = vrot.lane.b32.xlu0 %v427, 111
        %v5329 = vpop.permute.xlu0 %5328
        %5330 = vrot.lane.b32.xlu0 %v428, 111
        %v5331 = vpop.permute.xlu0 %5330
        %5332 = vrot.lane.b32.xlu0 %v429, 111
        %v5333 = vpop.permute.xlu0 %5332
        %5334 = vrot.lane.b32.xlu0 %v430, 111
        %v5335 = vpop.permute.xlu0 %5334
        %5336 = vrot.lane.b32.xlu0 %v431, 111
        %v5337 = vpop.permute.xlu0 %5336
        %5338 = vrot.lane.b32.xlu0 %v432, 111
        %v5339 = vpop.permute.xlu0 %5338
        %5340 = vrot.lane.b32.xlu0 %v433, 111
        %v5341 = vpop.permute.xlu0 %5340
        %5342 = vrot.lane.b32.xlu0 %v434, 111
        %v5343 = vpop.permute.xlu0 %5342
        %5344 = vrot.lane.b32.xlu0 %v435, 111
        %v5345 = vpop.permute.xlu0 %5344
        %5346 = vrot.lane.b32.xlu0 %v436, 111
        %v5347 = vpop.permute.xlu0 %5346
        %5348 = vrot.lane.b32.xlu0 %v437, 111
        %v5349 = vpop.permute.xlu0 %5348
        %5350 = vrot.lane.b32.xlu0 %v438, 111
        %v5351 = vpop.permute.xlu0 %5350
        %5352 = vrot.lane.b32.xlu0 %v439, 111
        %v5353 = vpop.permute.xlu0 %5352
        %5354 = vrot.lane.b32.xlu0 %v440, 111
        %v5355 = vpop.permute.xlu0 %5354
        %5356 = vrot.lane.b32.xlu0 %v441, 111
        %v5357 = vpop.permute.xlu0 %5356
        %5358 = vrot.lane.b32.xlu0 %v442, 111
        %v5359 = vpop.permute.xlu0 %5358
        %5360 = vrot.lane.b32.xlu0 %v443, 111
        %v5361 = vpop.permute.xlu0 %5360
        %5362 = vrot.lane.b32.xlu0 %v444, 111
        %v5363 = vpop.permute.xlu0 %5362
        %5364 = vrot.lane.b32.xlu0 %v445, 111
        %v5365 = vpop.permute.xlu0 %5364
        %5366 = vrot.lane.b32.xlu0 %v446, 111
        %v5367 = vpop.permute.xlu0 %5366
        %5368 = vrot.lane.b32.xlu0 %v447, 111
        %v5369 = vpop.permute.xlu0 %5368
        %5370 = vrot.lane.b32.xlu0 %v448, 111
        %v5371 = vpop.permute.xlu0 %5370
        %5372 = vrot.lane.b32.xlu0 %v449, 111
        %v5373 = vpop.permute.xlu0 %5372
        %5374 = vrot.lane.b32.xlu0 %v450, 111
        %v5375 = vpop.permute.xlu0 %5374
        %5376 = vrot.lane.b32.xlu0 %v451, 111
        %v5377 = vpop.permute.xlu0 %5376
        %5378 = vrot.lane.b32.xlu0 %v452, 111
        %v5379 = vpop.permute.xlu0 %5378
        %5380 = vrot.lane.b32.xlu0 %v453, 111
        %v5381 = vpop.permute.xlu0 %5380
        %vm5382 = vcmask 908288
        %v5383 = vsel %vm5382, %v5287, %v5289
        %v5384 = vsel %vm5382, %v5289, %v5291
        %v5385 = vsel %vm5382, %v5293, %v5295
        %v5386 = vsel %vm5382, %v5295, %v5297
        %v5387 = vsel %vm5382, %v5299, %v5301
        %v5388 = vsel %vm5382, %v5301, %v5303
        %v5389 = vsel %vm5382, %v5305, %v5307
        %v5390 = vsel %vm5382, %v5307, %v5309
        %v5391 = vsel %vm5382, %v5311, %v5313
        %v5392 = vsel %vm5382, %v5313, %v5315
        %v5393 = vsel %vm5382, %v5317, %v5319
        %v5394 = vsel %vm5382, %v5319, %v5321
        %v5395 = vsel %vm5382, %v5323, %v5325
        %v5396 = vsel %vm5382, %v5325, %v5327
        %v5397 = vsel %vm5382, %v5329, %v5331
        %v5398 = vsel %vm5382, %v5331, %v5333
        %v5399 = vsel %vm5382, %v5335, %v5337
        %v5400 = vsel %vm5382, %v5337, %v5339
        %v5401 = vsel %vm5382, %v5341, %v5343
        %v5402 = vsel %vm5382, %v5343, %v5345
        %v5403 = vsel %vm5382, %v5347, %v5349
        %v5404 = vsel %vm5382, %v5349, %v5351
        %v5405 = vsel %vm5382, %v5353, %v5355
        %v5406 = vsel %vm5382, %v5355, %v5357
        %v5407 = vsel %vm5382, %v5359, %v5361
        %v5408 = vsel %vm5382, %v5361, %v5363
        %v5409 = vsel %vm5382, %v5365, %v5367
        %v5410 = vsel %vm5382, %v5367, %v5369
        %v5411 = vsel %vm5382, %v5371, %v5373
        %v5412 = vsel %vm5382, %v5373, %v5375
        %v5413 = vsel %vm5382, %v5377, %v5379
        %v5414 = vsel %vm5382, %v5379, %v5381
        %5447 = vmatprep.subr.mxu0 %v5384
        %5448 = vmatpush1.msra.mxu0 %v5383
        %5449 = vmatprep.subr.mxu0 %v5386
        %5450 = vmatpush1.msra.mxu0 %v5385
        %5451 = vmatprep.subr.mxu0 %v5388
        %5452 = vmatpush1.msra.mxu0 %v5387
        %5453 = vmatprep.subr.mxu0 %v5390
        %5454 = vmatpush1.msra.mxu0 %v5389
        %5455 = vmatprep.subr.mxu0 %v5392
        %5456 = vmatpush1.msra.mxu0 %v5391
        %5457 = vmatprep.subr.mxu0 %v5394
        %5458 = vmatpush1.msra.mxu0 %v5393
        %5459 = vmatprep.subr.mxu0 %v5396
        %5460 = vmatpush1.msra.mxu0 %v5395
        %5461 = vmatprep.subr.mxu0 %v5398
        %5462 = vmatpush1.msra.mxu0 %v5397
        %5463 = vmatprep.subr.mxu0 %v5400
        %5464 = vmatpush1.msra.mxu0 %v5399
        %5465 = vmatprep.subr.mxu0 %v5402
        %5466 = vmatpush1.msra.mxu0 %v5401
        %5467 = vmatprep.subr.mxu0 %v5404
        %5468 = vmatpush1.msra.mxu0 %v5403
        %5469 = vmatprep.subr.mxu0 %v5406
        %5470 = vmatpush1.msra.mxu0 %v5405
        %5471 = vmatprep.subr.mxu0 %v5408
        %5472 = vmatpush1.msra.mxu0 %v5407
        %5473 = vmatprep.subr.mxu0 %v5410
        %5474 = vmatpush1.msra.mxu0 %v5409
        %5475 = vmatprep.subr.mxu0 %v5412
        %5476 = vmatpush1.msra.mxu0 %v5411
        %5477 = vmatprep.subr.mxu0 %v5414
        %5478 = vmatpush1.msra.mxu0 %v5413
        %5479 = vmatprep.subr.mxu0 0.0
        %5480 = vmatpush1.msra.mxu0 0.0
        %5481 = vmatprep.subr.mxu0 0.0
        %5482 = vmatpush1.msra.mxu0 0.0
        %5483 = vmatprep.subr.mxu0 0.0
        %5484 = vmatpush1.msra.mxu0 0.0
        %5485 = vmatprep.subr.mxu0 0.0
        %5486 = vmatpush1.msra.mxu0 0.0
        %5487 = vmatprep.subr.mxu0 0.0
        %5488 = vmatpush1.msra.mxu0 0.0
        %5489 = vmatprep.subr.mxu0 0.0
        %5490 = vmatpush1.msra.mxu0 0.0
        %5491 = vmatprep.subr.mxu0 0.0
        %5492 = vmatpush1.msra.mxu0 0.0
        %5493 = vmatprep.subr.mxu0 0.0
        %5494 = vmatpush1.msra.mxu0 0.0
        %5495 = vmatprep.subr.mxu0 0.0
        %5496 = vmatpush1.msra.mxu0 0.0
        %5497 = vmatprep.subr.mxu0 0.0
        %5498 = vmatpush1.msra.mxu0 0.0
        %5499 = vmatprep.subr.mxu0 0.0
        %5500 = vmatpush1.msra.mxu0 0.0
        %5501 = vmatprep.subr.mxu0 0.0
        %5502 = vmatpush1.msra.mxu0 0.0
        %5503 = vmatprep.subr.mxu0 0.0
        %5504 = vmatpush1.msra.mxu0 0.0
        %5505 = vmatprep.subr.mxu0 0.0
        %5506 = vmatpush1.msra.mxu0 0.0
        %5507 = vmatprep.subr.mxu0 0.0
        %5508 = vmatpush1.msra.mxu0 0.0
        %5509 = vmatprep.subr.mxu0 0.0
        %5510 = vmatpush1.msra.mxu0 0.0
        %5511 = vmatprep.mubr.f32.mxu0 0.0
        %5512 = vmatmul.mubr.f32.gmra.mrb[0].mxu0 %v5278
        %v5513 = vpop.f32.mrb[0].mxu0
        %v5514 = vadd.f32 0.0, %v5513
        %v5515 = vpop.f32.mrb[0].mxu0
        %v5516 = vadd.f32 0.0, %v5515
        %5517 = vmatprep.mubr.f32.mxu0 0.0
        %5518 = vmatmul.mubr.f32.gmra.mrb[0].mxu0 %v5279
        %v5519 = vpop.f32.mrb[0].mxu0
        %v5520 = vadd.f32 0.0, %v5519
        %v5521 = vpop.f32.mrb[0].mxu0
        %v5522 = vadd.f32 0.0, %v5521
        %5523 = vmatprep.mubr.f32.mxu0 0.0
        %5524 = vmatmul.mubr.f32.gmra.mrb[0].mxu0 %v5280
        %v5525 = vpop.f32.mrb[0].mxu0
        %v5526 = vadd.f32 0.0, %v5525
        %v5527 = vpop.f32.mrb[0].mxu0
        %v5528 = vadd.f32 0.0, %v5527
        %5529 = vmatprep.mubr.f32.mxu0 0.0
        %5530 = vmatmul.mubr.f32.gmra.mrb[0].mxu0 %v5281
        %v5531 = vpop.f32.mrb[0].mxu0
        %v5532 = vadd.f32 0.0, %v5531
        %v5533 = vpop.f32.mrb[0].mxu0
        %v5534 = vadd.f32 0.0, %v5533
        %5535 = vmatprep.mubr.f32.mxu0 0.0
        %5536 = vmatmul.mubr.f32.gmra.mrb[0].mxu0 %v5282
        %v5537 = vpop.f32.mrb[0].mxu0
        %v5538 = vadd.f32 0.0, %v5537
        %v5539 = vpop.f32.mrb[0].mxu0
        %v5540 = vadd.f32 0.0, %v5539
        %5541 = vmatprep.mubr.f32.mxu0 0.0
        %5542 = vmatmul.mubr.f32.gmra.mrb[0].mxu0 %v5283
        %v5543 = vpop.f32.mrb[0].mxu0
        %v5544 = vadd.f32 0.0, %v5543
        %v5545 = vpop.f32.mrb[0].mxu0
        %v5546 = vadd.f32 0.0, %v5545
        %5547 = vmatprep.mubr.f32.mxu0 0.0
        %5548 = vmatmul.mubr.f32.gmra.mrb[0].mxu0 %v5284
        %v5549 = vpop.f32.mrb[0].mxu0
        %v5550 = vadd.f32 0.0, %v5549
        %v5551 = vpop.f32.mrb[0].mxu0
        %v5552 = vadd.f32 0.0, %v5551
        %5553 = vmatprep.mubr.f32.mxu0 0.0
        %5554 = vmatmul.mubr.f32.gmra.mrb[0].mxu0 %v5285
        %v5555 = vpop.f32.mrb[0].mxu0
        %v5556 = vadd.f32 0.0, %v5555
        %v5557 = vpop.f32.mrb[0].mxu0
        %v5558 = vadd.f32 0.0, %v5557
        %5559 = vdwg.mxu0
        %v5560 = vadd.f32 %v5261, %v5514
        %v5561 = vadd.f32 %v5262, %v5516
        %v5562 = vadd.f32 %v5263, %v5520
        %v5563 = vadd.f32 %v5264, %v5522
        %v5564 = vadd.f32 %v5265, %v5526
        %v5565 = vadd.f32 %v5266, %v5528
        %v5566 = vadd.f32 %v5267, %v5532
        %v5567 = vadd.f32 %v5268, %v5534
        %v5568 = vadd.f32 %v5269, %v5538
        %v5569 = vadd.f32 %v5270, %v5540
        %v5570 = vadd.f32 %v5271, %v5544
        %v5571 = vadd.f32 %v5272, %v5546
        %v5572 = vadd.f32 %v5273, %v5550
        %v5573 = vadd.f32 %v5274, %v5552
        %v5574 = vadd.f32 %v5275, %v5556
        %v5575 = vadd.f32 %v5276, %v5558
        %s5576 = scalar_lea.vmem %s3, 1152
        %v5577 = vld [vmem:[%s5576] sm:$0xff]
        %v5578 = vld [vmem:[%s5576 + $0x8] sm:$0xff]
        %v5579 = vld [vmem:[%s5576 + $0x10] sm:$0xff]
        %v5580 = vld [vmem:[%s5576 + $0x18] sm:$0xff]
        %v5581 = vld [vmem:[%s5576 + $0x20] sm:$0xff]
        %v5582 = vld [vmem:[%s5576 + $0x28] sm:$0xff]
        %v5583 = vld [vmem:[%s5576 + $0x30] sm:$0xff]
        %v5584 = vld [vmem:[%s5576 + $0x38] sm:$0xff]
        %5585 = vrot.lane.b32.xlu0 %v406, 110
        %v5586 = vpop.permute.xlu0 %5585
        %5587 = vrot.lane.b32.xlu0 %v407, 110
        %v5588 = vpop.permute.xlu0 %5587
        %5589 = vrot.lane.b32.xlu0 %v408, 110
        %v5590 = vpop.permute.xlu0 %5589
        %5591 = vrot.lane.b32.xlu0 %v409, 110
        %v5592 = vpop.permute.xlu0 %5591
        %5593 = vrot.lane.b32.xlu0 %v410, 110
        %v5594 = vpop.permute.xlu0 %5593
        %5595 = vrot.lane.b32.xlu0 %v411, 110
        %v5596 = vpop.permute.xlu0 %5595
        %5597 = vrot.lane.b32.xlu0 %v412, 110
        %v5598 = vpop.permute.xlu0 %5597
        %5599 = vrot.lane.b32.xlu0 %v413, 110
        %v5600 = vpop.permute.xlu0 %5599
        %5601 = vrot.lane.b32.xlu0 %v414, 110
        %v5602 = vpop.permute.xlu0 %5601
        %5603 = vrot.lane.b32.xlu0 %v415, 110
        %v5604 = vpop.permute.xlu0 %5603
        %5605 = vrot.lane.b32.xlu0 %v416, 110
        %v5606 = vpop.permute.xlu0 %5605
        %5607 = vrot.lane.b32.xlu0 %v417, 110
        %v5608 = vpop.permute.xlu0 %5607
        %5609 = vrot.lane.b32.xlu0 %v418, 110
        %v5610 = vpop.permute.xlu0 %5609
        %5611 = vrot.lane.b32.xlu0 %v419, 110
        %v5612 = vpop.permute.xlu0 %5611
        %5613 = vrot.lane.b32.xlu0 %v420, 110
        %v5614 = vpop.permute.xlu0 %5613
        %5615 = vrot.lane.b32.xlu0 %v421, 110
        %v5616 = vpop.permute.xlu0 %5615
        %5617 = vrot.lane.b32.xlu0 %v422, 110
        %v5618 = vpop.permute.xlu0 %5617
        %5619 = vrot.lane.b32.xlu0 %v423, 110
        %v5620 = vpop.permute.xlu0 %5619
        %5621 = vrot.lane.b32.xlu0 %v424, 110
        %v5622 = vpop.permute.xlu0 %5621
        %5623 = vrot.lane.b32.xlu0 %v425, 110
        %v5624 = vpop.permute.xlu0 %5623
        %5625 = vrot.lane.b32.xlu0 %v426, 110
        %v5626 = vpop.permute.xlu0 %5625
        %5627 = vrot.lane.b32.xlu0 %v427, 110
        %v5628 = vpop.permute.xlu0 %5627
        %5629 = vrot.lane.b32.xlu0 %v428, 110
        %v5630 = vpop.permute.xlu0 %5629
        %5631 = vrot.lane.b32.xlu0 %v429, 110
        %v5632 = vpop.permute.xlu0 %5631
        %5633 = vrot.lane.b32.xlu0 %v430, 110
        %v5634 = vpop.permute.xlu0 %5633
        %5635 = vrot.lane.b32.xlu0 %v431, 110
        %v5636 = vpop.permute.xlu0 %5635
        %5637 = vrot.lane.b32.xlu0 %v432, 110
        %v5638 = vpop.permute.xlu0 %5637
        %5639 = vrot.lane.b32.xlu0 %v433, 110
        %v5640 = vpop.permute.xlu0 %5639
        %5641 = vrot.lane.b32.xlu0 %v434, 110
        %v5642 = vpop.permute.xlu0 %5641
        %5643 = vrot.lane.b32.xlu0 %v435, 110
        %v5644 = vpop.permute.xlu0 %5643
        %5645 = vrot.lane.b32.xlu0 %v436, 110
        %v5646 = vpop.permute.xlu0 %5645
        %5647 = vrot.lane.b32.xlu0 %v437, 110
        %v5648 = vpop.permute.xlu0 %5647
        %5649 = vrot.lane.b32.xlu0 %v438, 110
        %v5650 = vpop.permute.xlu0 %5649
        %5651 = vrot.lane.b32.xlu0 %v439, 110
        %v5652 = vpop.permute.xlu0 %5651
        %5653 = vrot.lane.b32.xlu0 %v440, 110
        %v5654 = vpop.permute.xlu0 %5653
        %5655 = vrot.lane.b32.xlu0 %v441, 110
        %v5656 = vpop.permute.xlu0 %5655
        %5657 = vrot.lane.b32.xlu0 %v442, 110
        %v5658 = vpop.permute.xlu0 %5657
        %5659 = vrot.lane.b32.xlu0 %v443, 110
        %v5660 = vpop.permute.xlu0 %5659
        %5661 = vrot.lane.b32.xlu0 %v444, 110
        %v5662 = vpop.permute.xlu0 %5661
        %5663 = vrot.lane.b32.xlu0 %v445, 110
        %v5664 = vpop.permute.xlu0 %5663
        %5665 = vrot.lane.b32.xlu0 %v446, 110
        %v5666 = vpop.permute.xlu0 %5665
        %5667 = vrot.lane.b32.xlu0 %v447, 110
        %v5668 = vpop.permute.xlu0 %5667
        %5669 = vrot.lane.b32.xlu0 %v448, 110
        %v5670 = vpop.permute.xlu0 %5669
        %5671 = vrot.lane.b32.xlu0 %v449, 110
        %v5672 = vpop.permute.xlu0 %5671
        %5673 = vrot.lane.b32.xlu0 %v450, 110
        %v5674 = vpop.permute.xlu0 %5673
        %5675 = vrot.lane.b32.xlu0 %v451, 110
        %v5676 = vpop.permute.xlu0 %5675
        %5677 = vrot.lane.b32.xlu0 %v452, 110
        %v5678 = vpop.permute.xlu0 %5677
        %5679 = vrot.lane.b32.xlu0 %v453, 110
        %v5680 = vpop.permute.xlu0 %5679
        %vm5681 = vcmask 900096
        %v5682 = vsel %vm5681, %v5586, %v5588
        %v5683 = vsel %vm5681, %v5588, %v5590
        %v5684 = vsel %vm5681, %v5592, %v5594
        %v5685 = vsel %vm5681, %v5594, %v5596
        %v5686 = vsel %vm5681, %v5598, %v5600
        %v5687 = vsel %vm5681, %v5600, %v5602
        %v5688 = vsel %vm5681, %v5604, %v5606
        %v5689 = vsel %vm5681, %v5606, %v5608
        %v5690 = vsel %vm5681, %v5610, %v5612
        %v5691 = vsel %vm5681, %v5612, %v5614
        %v5692 = vsel %vm5681, %v5616, %v5618
        %v5693 = vsel %vm5681, %v5618, %v5620
        %v5694 = vsel %vm5681, %v5622, %v5624
        %v5695 = vsel %vm5681, %v5624, %v5626
        %v5696 = vsel %vm5681, %v5628, %v5630
        %v5697 = vsel %vm5681, %v5630, %v5632
        %v5698 = vsel %vm5681, %v5634, %v5636
        %v5699 = vsel %vm5681, %v5636, %v5638
        %v5700 = vsel %vm5681, %v5640, %v5642
        %v5701 = vsel %vm5681, %v5642, %v5644
        %v5702 = vsel %vm5681, %v5646, %v5648
        %v5703 = vsel %vm5681, %v5648, %v5650
        %v5704 = vsel %vm5681, %v5652, %v5654
        %v5705 = vsel %vm5681, %v5654, %v5656
        %v5706 = vsel %vm5681, %v5658, %v5660
        %v5707 = vsel %vm5681, %v5660, %v5662
        %v5708 = vsel %vm5681, %v5664, %v5666
        %v5709 = vsel %vm5681, %v5666, %v5668
        %v5710 = vsel %vm5681, %v5670, %v5672
        %v5711 = vsel %vm5681, %v5672, %v5674
        %v5712 = vsel %vm5681, %v5676, %v5678
        %v5713 = vsel %vm5681, %v5678, %v5680
        %5746 = vmatprep.subr.mxu0 %v5683
        %5747 = vmatpush1.msra.mxu0 %v5682
        %5748 = vmatprep.subr.mxu0 %v5685
        %5749 = vmatpush1.msra.mxu0 %v5684
        %5750 = vmatprep.subr.mxu0 %v5687
        %5751 = vmatpush1.msra.mxu0 %v5686
        %5752 = vmatprep.subr.mxu0 %v5689
        %5753 = vmatpush1.msra.mxu0 %v5688
        %5754 = vmatprep.subr.mxu0 %v5691
        %5755 = vmatpush1.msra.mxu0 %v5690
        %5756 = vmatprep.subr.mxu0 %v5693
        %5757 = vmatpush1.msra.mxu0 %v5692
        %5758 = vmatprep.subr.mxu0 %v5695
        %5759 = vmatpush1.msra.mxu0 %v5694
        %5760 = vmatprep.subr.mxu0 %v5697
        %5761 = vmatpush1.msra.mxu0 %v5696
        %5762 = vmatprep.subr.mxu0 %v5699
        %5763 = vmatpush1.msra.mxu0 %v5698
        %5764 = vmatprep.subr.mxu0 %v5701
        %5765 = vmatpush1.msra.mxu0 %v5700
        %5766 = vmatprep.subr.mxu0 %v5703
        %5767 = vmatpush1.msra.mxu0 %v5702
        %5768 = vmatprep.subr.mxu0 %v5705
        %5769 = vmatpush1.msra.mxu0 %v5704
        %5770 = vmatprep.subr.mxu0 %v5707
        %5771 = vmatpush1.msra.mxu0 %v5706
        %5772 = vmatprep.subr.mxu0 %v5709
        %5773 = vmatpush1.msra.mxu0 %v5708
        %5774 = vmatprep.subr.mxu0 %v5711
        %5775 = vmatpush1.msra.mxu0 %v5710
        %5776 = vmatprep.subr.mxu0 %v5713
        %5777 = vmatpush1.msra.mxu0 %v5712
        %5778 = vmatprep.subr.mxu0 0.0
        %5779 = vmatpush1.msra.mxu0 0.0
        %5780 = vmatprep.subr.mxu0 0.0
        %5781 = vmatpush1.msra.mxu0 0.0
        %5782 = vmatprep.subr.mxu0 0.0
        %5783 = vmatpush1.msra.mxu0 0.0
        %5784 = vmatprep.subr.mxu0 0.0
        %5785 = vmatpush1.msra.mxu0 0.0
        %5786 = vmatprep.subr.mxu0 0.0
        %5787 = vmatpush1.msra.mxu0 0.0
        %5788 = vmatprep.subr.mxu0 0.0
        %5789 = vmatpush1.msra.mxu0 0.0
        %5790 = vmatprep.subr.mxu0 0.0
        %5791 = vmatpush1.msra.mxu0 0.0
        %5792 = vmatprep.subr.mxu0 0.0
        %5793 = vmatpush1.msra.mxu0 0.0
        %5794 = vmatprep.subr.mxu0 0.0
        %5795 = vmatpush1.msra.mxu0 0.0
        %5796 = vmatprep.subr.mxu0 0.0
        %5797 = vmatpush1.msra.mxu0 0.0
        %5798 = vmatprep.subr.mxu0 0.0
        %5799 = vmatpush1.msra.mxu0 0.0
        %5800 = vmatprep.subr.mxu0 0.0
        %5801 = vmatpush1.msra.mxu0 0.0
        %5802 = vmatprep.subr.mxu0 0.0
        %5803 = vmatpush1.msra.mxu0 0.0
        %5804 = vmatprep.subr.mxu0 0.0
        %5805 = vmatpush1.msra.mxu0 0.0
        %5806 = vmatprep.subr.mxu0 0.0
        %5807 = vmatpush1.msra.mxu0 0.0
        %5808 = vmatprep.subr.mxu0 0.0
        %5809 = vmatpush1.msra.mxu0 0.0
        %5810 = vmatprep.mubr.f32.mxu0 0.0
        %5811 = vmatmul.mubr.f32.gmra.mrb[0].mxu0 %v5577
        %v5812 = vpop.f32.mrb[0].mxu0
        %v5813 = vadd.f32 0.0, %v5812
        %v5814 = vpop.f32.mrb[0].mxu0
        %v5815 = vadd.f32 0.0, %v5814
        %5816 = vmatprep.mubr.f32.mxu0 0.0
        %5817 = vmatmul.mubr.f32.gmra.mrb[0].mxu0 %v5578
        %v5818 = vpop.f32.mrb[0].mxu0
        %v5819 = vadd.f32 0.0, %v5818
        %v5820 = vpop.f32.mrb[0].mxu0
        %v5821 = vadd.f32 0.0, %v5820
        %5822 = vmatprep.mubr.f32.mxu0 0.0
        %5823 = vmatmul.mubr.f32.gmra.mrb[0].mxu0 %v5579
        %v5824 = vpop.f32.mrb[0].mxu0
        %v5825 = vadd.f32 0.0, %v5824
        %v5826 = vpop.f32.mrb[0].mxu0
        %v5827 = vadd.f32 0.0, %v5826
        %5828 = vmatprep.mubr.f32.mxu0 0.0
        %5829 = vmatmul.mubr.f32.gmra.mrb[0].mxu0 %v5580
        %v5830 = vpop.f32.mrb[0].mxu0
        %v5831 = vadd.f32 0.0, %v5830
        %v5832 = vpop.f32.mrb[0].mxu0
        %v5833 = vadd.f32 0.0, %v5832
        %5834 = vmatprep.mubr.f32.mxu0 0.0
        %5835 = vmatmul.mubr.f32.gmra.mrb[0].mxu0 %v5581
        %v5836 = vpop.f32.mrb[0].mxu0
        %v5837 = vadd.f32 0.0, %v5836
        %v5838 = vpop.f32.mrb[0].mxu0
        %v5839 = vadd.f32 0.0, %v5838
        %5840 = vmatprep.mubr.f32.mxu0 0.0
        %5841 = vmatmul.mubr.f32.gmra.mrb[0].mxu0 %v5582
        %v5842 = vpop.f32.mrb[0].mxu0
        %v5843 = vadd.f32 0.0, %v5842
        %v5844 = vpop.f32.mrb[0].mxu0
        %v5845 = vadd.f32 0.0, %v5844
        %5846 = vmatprep.mubr.f32.mxu0 0.0
        %5847 = vmatmul.mubr.f32.gmra.mrb[0].mxu0 %v5583
        %v5848 = vpop.f32.mrb[0].mxu0
        %v5849 = vadd.f32 0.0, %v5848
        %v5850 = vpop.f32.mrb[0].mxu0
        %v5851 = vadd.f32 0.0, %v5850
        %5852 = vmatprep.mubr.f32.mxu0 0.0
        %5853 = vmatmul.mubr.f32.gmra.mrb[0].mxu0 %v5584
        %v5854 = vpop.f32.mrb[0].mxu0
        %v5855 = vadd.f32 0.0, %v5854
        %v5856 = vpop.f32.mrb[0].mxu0
        %v5857 = vadd.f32 0.0, %v5856
        %5858 = vdwg.mxu0
        %v5859 = vadd.f32 %v5560, %v5813
        %v5860 = vadd.f32 %v5561, %v5815
        %v5861 = vadd.f32 %v5562, %v5819
        %v5862 = vadd.f32 %v5563, %v5821
        %v5863 = vadd.f32 %v5564, %v5825
        %v5864 = vadd.f32 %v5565, %v5827
        %v5865 = vadd.f32 %v5566, %v5831
        %v5866 = vadd.f32 %v5567, %v5833
        %v5867 = vadd.f32 %v5568, %v5837
        %v5868 = vadd.f32 %v5569, %v5839
        %v5869 = vadd.f32 %v5570, %v5843
        %v5870 = vadd.f32 %v5571, %v5845
        %v5871 = vadd.f32 %v5572, %v5849
        %v5872 = vadd.f32 %v5573, %v5851
        %v5873 = vadd.f32 %v5574, %v5855
        %v5874 = vadd.f32 %v5575, %v5857
        %v5875 = vxor.u32 %v5859, 2147483648
        %v5876 = vxor.u32 %v5860, 2147483648
        %v5877 = vxor.u32 %v5861, 2147483648
        %v5878 = vxor.u32 %v5862, 2147483648
        %v5879 = vxor.u32 %v5863, 2147483648
        %v5880 = vxor.u32 %v5864, 2147483648
        %v5881 = vxor.u32 %v5865, 2147483648
        %v5882 = vxor.u32 %v5866, 2147483648
        %v5883 = vxor.u32 %v5867, 2147483648
        %v5884 = vxor.u32 %v5868, 2147483648
        %v5885 = vxor.u32 %v5869, 2147483648
        %v5886 = vxor.u32 %v5870, 2147483648
        %v5887 = vxor.u32 %v5871, 2147483648
        %v5888 = vxor.u32 %v5872, 2147483648
        %v5889 = vxor.u32 %v5873, 2147483648
        %v5890 = vxor.u32 %v5874, 2147483648
        %v5891 = vmul.f32 %v5875, 1.442695
        %v5892 = vpow.pop %v5891
        %v5893 = vmul.f32 %v5876, 1.442695
        %v5894 = vpow.pop %v5893
        %v5895 = vmul.f32 %v5877, 1.442695
        %v5896 = vpow.pop %v5895
        %v5897 = vmul.f32 %v5878, 1.442695
        %v5898 = vpow.pop %v5897
        %v5899 = vmul.f32 %v5879, 1.442695
        %v5900 = vpow.pop %v5899
        %v5901 = vmul.f32 %v5880, 1.442695
        %v5902 = vpow.pop %v5901
        %v5903 = vmul.f32 %v5881, 1.442695
        %v5904 = vpow.pop %v5903
        %v5905 = vmul.f32 %v5882, 1.442695
        %v5906 = vpow.pop %v5905
        %v5907 = vmul.f32 %v5883, 1.442695
        %v5908 = vpow.pop %v5907
        %v5909 = vmul.f32 %v5884, 1.442695
        %v5910 = vpow.pop %v5909
        %v5911 = vmul.f32 %v5885, 1.442695
        %v5912 = vpow.pop %v5911
        %v5913 = vmul.f32 %v5886, 1.442695
        %v5914 = vpow.pop %v5913
        %v5915 = vmul.f32 %v5887, 1.442695
        %v5916 = vpow.pop %v5915
        %v5917 = vmul.f32 %v5888, 1.442695
        %v5918 = vpow.pop %v5917
        %v5919 = vmul.f32 %v5889, 1.442695
        %v5920 = vpow.pop %v5919
        %v5921 = vmul.f32 %v5890, 1.442695
        %v5922 = vpow.pop %v5921
        %v5923 = vadd.f32 %v5892, 1.0
        %v5924 = vadd.f32 %v5894, 1.0
        %v5925 = vadd.f32 %v5896, 1.0
        %v5926 = vadd.f32 %v5898, 1.0
        %v5927 = vadd.f32 %v5900, 1.0
        %v5928 = vadd.f32 %v5902, 1.0
        %v5929 = vadd.f32 %v5904, 1.0
        %v5930 = vadd.f32 %v5906, 1.0
        %v5931 = vadd.f32 %v5908, 1.0
        %v5932 = vadd.f32 %v5910, 1.0
        %v5933 = vadd.f32 %v5912, 1.0
        %v5934 = vadd.f32 %v5914, 1.0
        %v5935 = vadd.f32 %v5916, 1.0
        %v5936 = vadd.f32 %v5918, 1.0
        %v5937 = vadd.f32 %v5920, 1.0
        %v5938 = vadd.f32 %v5922, 1.0
        %v5939 = vrcp.pop %v5923
        %v5940 = vmul.f32 1.0, %v5939
        %v5941 = vrcp.pop %v5924
        %v5942 = vmul.f32 1.0, %v5941
        %v5943 = vrcp.pop %v5925
        %v5944 = vmul.f32 1.0, %v5943
        %v5945 = vrcp.pop %v5926
        %v5946 = vmul.f32 1.0, %v5945
        %v5947 = vrcp.pop %v5927
        %v5948 = vmul.f32 1.0, %v5947
        %v5949 = vrcp.pop %v5928
        %v5950 = vmul.f32 1.0, %v5949
        %v5951 = vrcp.pop %v5929
        %v5952 = vmul.f32 1.0, %v5951
        %v5953 = vrcp.pop %v5930
        %v5954 = vmul.f32 1.0, %v5953
        %v5955 = vrcp.pop %v5931
        %v5956 = vmul.f32 1.0, %v5955
        %v5957 = vrcp.pop %v5932
        %v5958 = vmul.f32 1.0, %v5957
        %v5959 = vrcp.pop %v5933
        %v5960 = vmul.f32 1.0, %v5959
        %v5961 = vrcp.pop %v5934
        %v5962 = vmul.f32 1.0, %v5961
        %v5963 = vrcp.pop %v5935
        %v5964 = vmul.f32 1.0, %v5963
        %v5965 = vrcp.pop %v5936
        %v5966 = vmul.f32 1.0, %v5965
        %v5967 = vrcp.pop %v5937
        %v5968 = vmul.f32 1.0, %v5967
        %v5969 = vrcp.pop %v5938
        %v5970 = vmul.f32 1.0, %v5969
        %5971 = vst [vmem:[%s196] sm:$0xff] %v5940
        %5972 = vst [vmem:[%s196 + $0x8] sm:$0xff] %v5942
        %5973 = vst [vmem:[%s196 + $0x10] sm:$0xff] %v5944
        %5974 = vst [vmem:[%s196 + $0x18] sm:$0xff] %v5946
        %5975 = vst [vmem:[%s196 + $0x20] sm:$0xff] %v5948
        %5976 = vst [vmem:[%s196 + $0x28] sm:$0xff] %v5950
        %5977 = vst [vmem:[%s196 + $0x30] sm:$0xff] %v5952
        %5978 = vst [vmem:[%s196 + $0x38] sm:$0xff] %v5954
        %5979 = vst [vmem:[%s196 + $0x40] sm:$0xff] %v5956
        %5980 = vst [vmem:[%s196 + $0x48] sm:$0xff] %v5958
        %5981 = vst [vmem:[%s196 + $0x50] sm:$0xff] %v5960
        %5982 = vst [vmem:[%s196 + $0x58] sm:$0xff] %v5962
        %5983 = vst [vmem:[%s196 + $0x60] sm:$0xff] %v5964
        %5984 = vst [vmem:[%s196 + $0x68] sm:$0xff] %v5966
        %5985 = vst [vmem:[%s196 + $0x70] sm:$0xff] %v5968
        %5986 = vst [vmem:[%s196 + $0x78] sm:$0xff] %v5970
        %s5987 = sand.u32 %s111, 1
        %s5988 = sand.u32 %s111, 1
        %s5989 = smul.addr %s5988, 128
        %s5990 = scalar_lea.vmem [#allocation5], %s5989
        // Predicated region
        $region33: #{model.1} parent=31 // pred_check
          %p5991 = pneg %p121
        $region34: #{model.1} parent=31 // pred_check_branch
          %5993 = sbr.rel (%p5991) target = $region36
        $region35: #{model.1} parent=31 // pred_region
          %s5994 = smul.u32 2, %s26
          %s5995 = smul.addr %s5994, 8
          %s5996 = scalar_lea.vmem %s5, %s5995
          // Predicated region
          $region37: #{model.1} parent=35 // pred_check
            _
          $region38: #{model.1} parent=35 // pred_check_branch
            %5998 = sbr.rel (0) target = $region40
          $region39: #{model.1} parent=35 // pred_region
            // Predicated region
            $region41: #{model.1} parent=39 // pred_check
              _
            $region42: #{model.1} parent=39 // pred_check_branch
              %6000 = sbr.rel (0) target = $region44
            $region43: #{model.1} parent=39 // pred_region
              loop: start=0, step=1, limit=1
              $region45: #{model.1} parent=43 // loop_pre_header
                _
              $region46: #{model.1} parent=43 // loop_header
                %s6002 = sphi 0, %s6006
                %p6003 = scmp.ge.s32.totalorder %s6002, 1
                %s6007 = sphi %s5990, %s5990
                %s6008 = sphi %s5996, %s5996
              $region47: #{model.1} parent=43 // loop_header_branch
                %6005 = sbr.rel (%p6003) target = $region51
              $region48: #{model.1} parent=43 // loop_body
                %v6009 = vld [vmem:[%s6007] sm:$0xff]
                %6010 = vst [vmem:[%s6008] sm:$0xff] %v6009
                %v6011 = vld [vmem:[%s6007 + $0x8] sm:$0xff]
                %6012 = vst [vmem:[%s6008 + $0x8] sm:$0xff] %v6011
                %v6013 = vld [vmem:[%s6007 + $0x10] sm:$0xff]
                %6014 = vst [vmem:[%s6008 + $0x90] sm:$0xff] %v6013
                %v6015 = vld [vmem:[%s6007 + $0x18] sm:$0xff]
                %6016 = vst [vmem:[%s6008 + $0x98] sm:$0xff] %v6015
                %v6017 = vld [vmem:[%s6007 + $0x20] sm:$0xff]
                %6018 = vst [vmem:[%s6008 + $0x120] sm:$0xff] %v6017
                %v6019 = vld [vmem:[%s6007 + $0x28] sm:$0xff]
                %6020 = vst [vmem:[%s6008 + $0x128] sm:$0xff] %v6019
                %v6021 = vld [vmem:[%s6007 + $0x30] sm:$0xff]
                %6022 = vst [vmem:[%s6008 + $0x1b0] sm:$0xff] %v6021
                %v6023 = vld [vmem:[%s6007 + $0x38] sm:$0xff]
                %6024 = vst [vmem:[%s6008 + $0x1b8] sm:$0xff] %v6023
                %v6025 = vld [vmem:[%s6007 + $0x40] sm:$0xff]
                %6026 = vst [vmem:[%s6008 + $0x240] sm:$0xff] %v6025
                %v6027 = vld [vmem:[%s6007 + $0x48] sm:$0xff]
                %6028 = vst [vmem:[%s6008 + $0x248] sm:$0xff] %v6027
                %v6029 = vld [vmem:[%s6007 + $0x50] sm:$0xff]
                %6030 = vst [vmem:[%s6008 + $0x2d0] sm:$0xff] %v6029
                %v6031 = vld [vmem:[%s6007 + $0x58] sm:$0xff]
                %6032 = vst [vmem:[%s6008 + $0x2d8] sm:$0xff] %v6031
                %v6033 = vld [vmem:[%s6007 + $0x60] sm:$0xff]
                %6034 = vst [vmem:[%s6008 + $0x360] sm:$0xff] %v6033
                %v6035 = vld [vmem:[%s6007 + $0x68] sm:$0xff]
                %6036 = vst [vmem:[%s6008 + $0x368] sm:$0xff] %v6035
                %v6037 = vld [vmem:[%s6007 + $0x70] sm:$0xff]
                %6038 = vst [vmem:[%s6008 + $0x3f0] sm:$0xff] %v6037
                %v6039 = vld [vmem:[%s6007 + $0x78] sm:$0xff]
                %6040 = vst [vmem:[%s6008 + $0x3f8] sm:$0xff] %v6039
              $region49: #{model.1} parent=43 // loop_footer
                %s6006 = sadd.s32 1, %s6002
              $region50: #{model.1} parent=43 // loop_footer_branch
                %6001 = sbr.rel target = $region46
              $region51: #{model.1} parent=43 // loop_exit
                _
            $region44: #{model.1} parent=39 // pred_fallthru
              _
            // Predicated region
            $region52: #{model.1} parent=39 // pred_check
              _
            $region53: #{model.1} parent=39 // pred_check_branch
              %6042 = sbr.rel target = $region55
            $region54: #{model.1} parent=39 // pred_region
              _
            $region55: #{model.1} parent=39 // pred_fallthru
              _
          $region40: #{model.1} parent=35 // pred_fallthru
            _
          %6043 = vnop
        $region36: #{model.1} parent=31 // pred_fallthru
          _
      $region32: #{model.1} parent=5 // pred_fallthru
        _
      %p6044 = scmp.le.s32.totalorder 2, %s21
      // Predicated region
      $region56: #{model.1} parent=5 // pred_check
        %p6045 = pneg %p6044
      $region57: #{model.1} parent=5 // pred_check_branch
        %6047 = sbr.rel (%p6045) target = $region59
      $region58: #{model.1} parent=5 // pred_region
        %s6048 = ssub.s32 %s21, 2
        // Predicated region
        $region60: #{model.1} parent=58 // pred_check
          %p6049 = pneg %p127
        $region61: #{model.1} parent=58 // pred_check_branch
          %6051 = sbr.rel (%p6049) target = $region63
        $region62: #{model.1} parent=58 // pred_region
          %s6052 = sand.u32 %s112, 1
          %s6053 = sand.u32 %s112, 1
          %s6054 = smul.addr %s6053, 128
          %s6055 = scalar_lea.vmem [#allocation5], %s6054
        $region63: #{model.1} parent=58 // pred_fallthru
          _
      $region59: #{model.1} parent=5 // pred_fallthru
        _
    $region6: #{model.1} parent=1 // loop_footer
      %s25 = sadd.s32 1, %s21
    $region7: #{model.1} parent=1 // loop_footer_branch
      %20 = sbr.rel target = $region3
    $region8: #{model.1} parent=1 // loop_exit
      _

</llo_original>
